<compile_context>
chip_gen: v7x
topology: tpu7x:2x2x1
jax: 0.10.0
libtpu: 0.0.40
codegen_flags: <defaults>
</compile_context>

<pallas_src>
import math
from functools import partial

import jax
import jax.numpy as jnp
from jax import lax
from jax.experimental import pallas as pl
from jax.experimental.pallas import tpu as pltpu

INPUT_DIM = 32
KQ_DIM = 16
NUM_HEADS = 2
V_DIM = 16
HIDDEN_DIM = 32   # must equal INPUT_DIM (see note above)
SEQ = 8
BATCH = 2
EPS = 1e-5


# --------------------------------------------------------------------------------------
# Kernel
# --------------------------------------------------------------------------------------
def _decoder_layer_kernel(batch, seq, num_heads, kq_dim,
                          x_ref, w_ref, b_ref,
                          out_ref, self_attn_ref, enc_attn_ref):
    """Single-invocation decoder layer.

    x_ref:          (B*S, D)   activations flattened over (batch, seq)
    w_ref:          (19, D, D) zero-padded, per-head-split weight slab
    b_ref:          (17, D)    zero-padded bias slab
    out_ref:        (B*S, D)
    self_attn_ref:  (H, B, S, S)
    enc_attn_ref:   (H, B, S, S)
    """
    x = x_ref[...]                       # (N, D)
    n, d = x.shape
    scale = 1.0 / math.sqrt(kq_dim)

    def layer_norm(y):
        # one-pass LN (sum + sum-of-squares); gamma=1, beta=0, eps=1e-5
        inv_d = 1.0 / y.shape[-1]
        mu = jnp.sum(y, axis=-1, keepdims=True) * inv_d
        ms = jnp.sum(y * y, axis=-1, keepdims=True) * inv_d
        var = ms - mu * mu
        return (y - mu) * lax.rsqrt(var + EPS)

    def mha(xin, wb, bb, attn_ref):
        # start the accumulator at the output-projection bias (one fewer add at the end)
        acc = jnp.broadcast_to(b_ref[bb + 3 * num_heads], (n, d)).astype(jnp.float32)
        for h in range(num_heads):       # static, tiny head loop; no activation slicing
            q = jnp.dot(xin, w_ref[wb + h],
                        preferred_element_type=jnp.float32) + b_ref[bb + h]
            k = jnp.dot(xin, w_ref[wb + num_heads + h],
                        preferred_element_type=jnp.float32) + b_ref[bb + num_heads + h]
            v = jnp.dot(xin, w_ref[wb + 2 * num_heads + h],
                        preferred_element_type=jnp.float32) + b_ref[bb + 2 * num_heads + h]
            # leading-dim-only reshapes (last dim unchanged -> no relayout)
            qb = q.reshape(batch, seq, d)
            kb = k.reshape(batch, seq, d)
            vb = v.reshape(batch, seq, d)
            # scores: contract last dims of Q and K (no explicit transpose)
            s = lax.dot_general(qb, kb, (((2,), (2,)), ((0,), (0,))),
                                preferred_element_type=jnp.float32) * scale
            s = s - jnp.max(s, axis=-1, keepdims=True)
            e = jnp.exp(s)
            attn = e * pl.reciprocal(jnp.sum(e, axis=-1, keepdims=True), approx=True)
            attn_ref[h] = attn                                   # (B, S, S)
            ctx = lax.dot_general(attn, vb, (((2,), (1,)), ((0,), (0,))),
                                  preferred_element_type=jnp.float32)   # (B, S, D)
            # accumulate output projection per head (replaces concat + single matmul)
            acc = acc + jnp.dot(ctx.reshape(n, d), w_ref[wb + 3 * num_heads + h],
                                preferred_element_type=jnp.float32)
        return layer_norm(acc + xin)

    w_per_mha = 4 * num_heads            # wq_h*, wk_h*, wv_h*, wo_h*
    b_per_mha = 3 * num_heads + 1        # bq_h*, bk_h*, bv_h*, bo

    # "self" attention
    y1 = mha(x, 0, 0, self_attn_ref)
    # "enc" attention — still attends over the decoder state only (see notes)
    y2 = mha(y1, w_per_mha, b_per_mha, enc_attn_ref)

    # position-wise feed-forward: Linear -> ReLU -> Linear -> ReLU -> Linear
    wf = 2 * w_per_mha
    bf = 2 * b_per_mha
    h1 = jnp.maximum(jnp.dot(y2, w_ref[wf + 0],
                             preferred_element_type=jnp.float32) + b_ref[bf + 0], 0.0)
    h2 = jnp.maximum(jnp.dot(h1, w_ref[wf + 1],
                             preferred_element_type=jnp.float32) + b_ref[bf + 1], 0.0)
    h3 = jnp.dot(h2, w_ref[wf + 2],
                 preferred_element_type=jnp.float32) + b_ref[bf + 2]
    out_ref[...] = layer_norm(h3 + y2)


# --------------------------------------------------------------------------------------
# Wrapper
# --------------------------------------------------------------------------------------
@jax.jit
def decoder_layer(dec_inputs, enc_outputs, w_slab, b_slab):
    # TODO(synk): enc_outputs is unused — the reference MultiHeadAttention.forward
    # consumes a single tensor, so DecoderLayer's extra call args are dead.
    del enc_outputs
    B, S, D = dec_inputs.shape
    n = B * S
    x2d = dec_inputs.reshape(n, D)

    matmul_flops = (2 * NUM_HEADS * (8 * n * D * D + 4 * B * S * S * D)
                    + 3 * 2 * n * D * D)
    transcendentals = 2 * NUM_HEADS * B * S * S + 2 * NUM_HEADS * B * S + 3 * n
    bytes_accessed = 4 * (x2d.size + w_slab.size + b_slab.size
                          + n * D + 2 * NUM_HEADS * B * S * S)

    out, sa, ea = pl.pallas_call(
        partial(_decoder_layer_kernel, B, S, NUM_HEADS, KQ_DIM),
        out_shape=(
            jax.ShapeDtypeStruct((n, D), jnp.float32),
            jax.ShapeDtypeStruct((NUM_HEADS, B, S, S), jnp.float32),
            jax.ShapeDtypeStruct((NUM_HEADS, B, S, S), jnp.float32),
        ),
        cost_estimate=pl.CostEstimate(flops=matmul_flops,
                                      transcendentals=transcendentals,
                                      bytes_accessed=bytes_accessed),
        compiler_params=pltpu.CompilerParams(vmem_limit_bytes=32 * 1024 * 1024),
    )(x2d, w_slab, b_slab)

    return (out.reshape(B, S, D),
            jnp.transpose(sa, (1, 0, 2, 3)),
            jnp.transpose(ea, (1, 0, 2, 3)))


# --------------------------------------------------------------------------------------
# Parameter packing (one-time, init-time work)
# --------------------------------------------------------------------------------------
def pack_params(params):
    """Pack the 22 parameter arrays into two slabs:
       w_slab: (2*4H + 3, D, D)  per-head-split, zero-padded weight matrices
       b_slab: (2*(3H+1) + 3, D) zero-padded bias vectors
    Zero padding is exact: padded rows/cols contribute nothing to any matmul.
    """
    (wq1, bq1, wk1, bk1, wv1, bv1, wo1, bo1,
     wq2, bq2, wk2, bk2, wv2, bv2, wo2, bo2,
     w1, b1, w2, b2, w3, b3) = params
    D = INPUT_DIM

    def pad_w(w):
        return jnp.zeros((D, D), jnp.float32).at[:w.shape[0], :w.shape[1]].set(w)

    def pad_b(b):
        b = jnp.asarray(b).reshape(-1)
        return jnp.zeros((D,), jnp.float32).at[:b.shape[0]].set(b)

    w_list, b_list = [], []
    for (wq, bq, wk, bk, wv, bv, wo, bo) in (
            (wq1, bq1, wk1, bk1, wv1, bv1, wo1, bo1),
            (wq2, bq2, wk2, bk2, wv2, bv2, wo2, bo2)):
        # weights: wq_h*, wk_h*, wv_h*, then wo_h*
        for w_, dim in ((wq, KQ_DIM), (wk, KQ_DIM), (wv, V_DIM)):
            for h in range(NUM_HEADS):
                w_list.append(pad_w(w_[:, h * dim:(h + 1) * dim]))
        for h in range(NUM_HEADS):
            w_list.append(pad_w(wo[h * V_DIM:(h + 1) * V_DIM, :]))
        # biases: bq_h*, bk_h*, bv_h*, then bo
        for b_, dim in ((bq, KQ_DIM), (bk, KQ_DIM), (bv, V_DIM)):
            bflat = jnp.asarray(b_).reshape(-1)
            for h in range(NUM_HEADS):
                b_list.append(pad_b(bflat[h * dim:(h + 1) * dim]))
        b_list.append(pad_b(bo))
    w_list += [pad_w(w1), pad_w(w2), pad_w(w3)]
    b_list += [pad_b(b1), pad_b(b2), pad_b(b3)]
    return jnp.stack(w_list), jnp.stack(b_list)


# ---------------- deterministic parameter init (PyTorch Linear-style U(-k, k)) ---------
def _init_linear(key, in_dim, out_dim):
    kw, kb = jax.random.split(key)
    bound = 1.0 / math.sqrt(in_dim)
    w = jax.random.uniform(kw, (in_dim, out_dim), jnp.float32, -bound, bound)
    b = jax.random.uniform(kb, (1, out_dim), jnp.float32, -bound, bound)
    return w, b


def init_params(key):
    dims = (
        # MHA 1: W_Q, W_K, W_V, fc
        [(INPUT_DIM, KQ_DIM * NUM_HEADS), (INPUT_DIM, KQ_DIM * NUM_HEADS),
         (INPUT_DIM, V_DIM * NUM_HEADS), (NUM_HEADS * V_DIM, INPUT_DIM)]
        # MHA 2
        + [(INPUT_DIM, KQ_DIM * NUM_HEADS), (INPUT_DIM, KQ_DIM * NUM_HEADS),
           (INPUT_DIM, V_DIM * NUM_HEADS), (NUM_HEADS * V_DIM, INPUT_DIM)]
        # FFN
        + [(INPUT_DIM, HIDDEN_DIM), (HIDDEN_DIM, INPUT_DIM), (HIDDEN_DIM, INPUT_DIM)]
    )
    keys = jax.random.split(key, len(dims))
    params = []
    for k, (di, do) in zip(keys, dims):
        w, b = _init_linear(k, di, do)
        params += [w, b]
    return params


# ---------------- pure-JAX reference (for correctness check) ----------------
def _ref_layer_norm(y):
    mu = jnp.mean(y, axis=-1, keepdims=True)
    var = jnp.mean((y - mu) ** 2, axis=-1, keepdims=True)
    return (y - mu) * lax.rsqrt(var + EPS)


def _ref_mha(x, wq, bq, wk, bk, wv, bv, wo, bo):
    B, S, D = x.shape
    q = (x @ wq + bq).reshape(B, S, NUM_HEADS, KQ_DIM).transpose(0, 2, 1, 3)
    k = (x @ wk + bk).reshape(B, S, NUM_HEADS, KQ_DIM).transpose(0, 2, 1, 3)
    v = (x @ wv + bv).reshape(B, S, NUM_HEADS, V_DIM).transpose(0, 2, 1, 3)
    s = jnp.einsum("bhqd,bhkd->bhqk", q, k) / math.sqrt(KQ_DIM)
    attn = jax.nn.softmax(s, axis=-1)
    ctx = jnp.einsum("bhqk,bhkd->bhqd", attn, v)
    ctx = ctx.transpose(0, 2, 1, 3).reshape(B, S, NUM_HEADS * V_DIM)
    return _ref_layer_norm(ctx @ wo + bo + x), attn


def _ref_decoder_layer(dec_inputs, params):
    y1, sa = _ref_mha(dec_inputs, *params[0:8])
    y2, ea = _ref_mha(y1, *params[8:16])
    w1, b1, w2, b2, w3, b3 = params[16:22]
    h = jnp.maximum(y2 @ w1 + b1, 0.0)
    h = jnp.maximum(h @ w2 + b2, 0.0)
    h = h @ w3 + b3
    return _ref_layer_norm(h + y2), sa, ea


if __name__ == "__main__":
    key = jax.random.PRNGKey(0)
    k_dec, k_enc, k_par = jax.random.split(key, 3)
    dec_inputs = jax.random.normal(k_dec, (BATCH, SEQ, INPUT_DIM), jnp.float32)
    enc_outputs = jax.random.normal(k_enc, (BATCH, SEQ, INPUT_DIM), jnp.float32)
    params = init_params(k_par)
    w_slab, b_slab = pack_params(params)   # one-time packing (parameter-init work)

    dec_out, self_attn, enc_attn = decoder_layer(dec_inputs, enc_outputs, w_slab, b_slab)
    jax.block_until_ready((dec_out, self_attn, enc_attn))

    ref_out, ref_sa, ref_ea = _ref_decoder_layer(dec_inputs, params)
    # tolerance slightly loosened vs 1e-4 because the in-kernel softmax uses the
    # EUP approximate reciprocal (pl.reciprocal(approx=True)).
    assert jnp.allclose(dec_out, ref_out, rtol=2e-3, atol=2e-3)
    assert jnp.allclose(self_attn, ref_sa, rtol=2e-3, atol=2e-3)
    assert jnp.allclose(enc_attn, ref_ea, rtol=2e-3, atol=2e-3)

    print("KERNEL_OK")
</pallas_src>

<mosaic_0001>
module attributes {stable_mosaic.version = 11 : i64} {
  func.func @_decoder_layer_kernel(%arg0: memref<16x32xf32, #tpu.memory_space<vmem>>, %arg1: memref<19x32x32xf32, #tpu.memory_space<vmem>>, %arg2: memref<17x32xf32, #tpu.memory_space<vmem>>, %arg3: memref<16x32xf32, #tpu.memory_space<vmem>>, %arg4: memref<2x2x8x8xf32, #tpu.memory_space<vmem>>, %arg5: memref<2x2x8x8xf32, #tpu.memory_space<vmem>>) attributes {dimension_semantics = [], scalar_prefetch = 0 : i64, scratch_operands = 0 : i64, tpu.core_type = #tpu.core_type<tc>} {
    %c0 = arith.constant 0 : index
    %c0_0 = arith.constant 0 : index
    %0 = vector.load %arg0[%c0, %c0_0] : memref<16x32xf32, #tpu.memory_space<vmem>>, vector<16x32xf32>
    %c6 = arith.constant 6 : index
    %c0_1 = arith.constant 0 : index
    %1 = vector.load %arg2[%c6, %c0_1] : memref<17x32xf32, #tpu.memory_space<vmem>>, vector<1x32xf32>
    %2 = vector.shape_cast %1 : vector<1x32xf32> to vector<32xf32>
    %3 = vector.shape_cast %2 : vector<32xf32> to vector<1x32xf32>
    %4 = vector.broadcast %3 : vector<1x32xf32> to vector<16x32xf32>
    %c0_2 = arith.constant 0 : index
    %c0_3 = arith.constant 0 : index
    %c0_4 = arith.constant 0 : index
    %5 = vector.load %arg1[%c0_2, %c0_3, %c0_4] : memref<19x32x32xf32, #tpu.memory_space<vmem>>, vector<1x32x32xf32>
    %6 = vector.shape_cast %5 : vector<1x32x32xf32> to vector<32x32xf32>
    %cst = arith.constant dense<0.000000e+00> : vector<16x32xf32>
    %7 = tpu.matmul %0, %6, %cst {dimension_numbers = #tpu.dot_dimension_numbers<[1], [0], [0], [1], [0, 0, 1, 1], [], []>} : vector<16x32xf32>, vector<32x32xf32>, vector<16x32xf32> -> vector<16x32xf32>
    %c0_5 = arith.constant 0 : index
    %c0_6 = arith.constant 0 : index
    %8 = vector.load %arg2[%c0_5, %c0_6] : memref<17x32xf32, #tpu.memory_space<vmem>>, vector<1x32xf32>
    %9 = vector.shape_cast %8 : vector<1x32xf32> to vector<32xf32>
    %10 = vector.shape_cast %9 : vector<32xf32> to vector<1x32xf32>
    %11 = vector.broadcast %10 : vector<1x32xf32> to vector<16x32xf32>
    %12 = arith.addf %7, %11 : vector<16x32xf32>
    %c2 = arith.constant 2 : index
    %c0_7 = arith.constant 0 : index
    %c0_8 = arith.constant 0 : index
    %13 = vector.load %arg1[%c2, %c0_7, %c0_8] : memref<19x32x32xf32, #tpu.memory_space<vmem>>, vector<1x32x32xf32>
    %14 = vector.shape_cast %13 : vector<1x32x32xf32> to vector<32x32xf32>
    %cst_9 = arith.constant dense<0.000000e+00> : vector<16x32xf32>
    %15 = tpu.matmul %0, %14, %cst_9 {dimension_numbers = #tpu.dot_dimension_numbers<[1], [0], [0], [1], [0, 0, 1, 1], [], []>} : vector<16x32xf32>, vector<32x32xf32>, vector<16x32xf32> -> vector<16x32xf32>
    %c2_10 = arith.constant 2 : index
    %c0_11 = arith.constant 0 : index
    %16 = vector.load %arg2[%c2_10, %c0_11] : memref<17x32xf32, #tpu.memory_space<vmem>>, vector<1x32xf32>
    %17 = vector.shape_cast %16 : vector<1x32xf32> to vector<32xf32>
    %18 = vector.shape_cast %17 : vector<32xf32> to vector<1x32xf32>
    %19 = vector.broadcast %18 : vector<1x32xf32> to vector<16x32xf32>
    %20 = arith.addf %15, %19 : vector<16x32xf32>
    %c4 = arith.constant 4 : index
    %c0_12 = arith.constant 0 : index
    %c0_13 = arith.constant 0 : index
    %21 = vector.load %arg1[%c4, %c0_12, %c0_13] : memref<19x32x32xf32, #tpu.memory_space<vmem>>, vector<1x32x32xf32>
    %22 = vector.shape_cast %21 : vector<1x32x32xf32> to vector<32x32xf32>
    %cst_14 = arith.constant dense<0.000000e+00> : vector<16x32xf32>
    %23 = tpu.matmul %0, %22, %cst_14 {dimension_numbers = #tpu.dot_dimension_numbers<[1], [0], [0], [1], [0, 0, 1, 1], [], []>} : vector<16x32xf32>, vector<32x32xf32>, vector<16x32xf32> -> vector<16x32xf32>
    %c4_15 = arith.constant 4 : index
    %c0_16 = arith.constant 0 : index
    %24 = vector.load %arg2[%c4_15, %c0_16] : memref<17x32xf32, #tpu.memory_space<vmem>>, vector<1x32xf32>
    %25 = vector.shape_cast %24 : vector<1x32xf32> to vector<32xf32>
    %26 = vector.shape_cast %25 : vector<32xf32> to vector<1x32xf32>
    %27 = vector.broadcast %26 : vector<1x32xf32> to vector<16x32xf32>
    %28 = arith.addf %23, %27 : vector<16x32xf32>
    %29 = vector.shape_cast %12 : vector<16x32xf32> to vector<2x8x32xf32>
    %30 = vector.shape_cast %20 : vector<16x32xf32> to vector<2x8x32xf32>
    %31 = vector.shape_cast %28 : vector<16x32xf32> to vector<2x8x32xf32>
    %cst_17 = arith.constant dense<0.000000e+00> : vector<2x8x8xf32>
    %32 = tpu.matmul %29, %30, %cst_17 {dimension_numbers = #tpu.dot_dimension_numbers<[2], [2], [1], [1], [0, 0, 0, 1, 1, 1], [0], [0]>} : vector<2x8x32xf32>, vector<2x8x32xf32>, vector<2x8x8xf32> -> vector<2x8x8xf32>
    %cst_18 = arith.constant 2.500000e-01 : f32
    %33 = vector.broadcast %cst_18 : f32 to vector<2x8x8xf32>
    %34 = arith.mulf %32, %33 : vector<2x8x8xf32>
    %cst_19 = arith.constant dense<0xFF800000> : vector<2x8xf32>
    %35 = vector.multi_reduction <maximumf>, %34, %cst_19 [2] : vector<2x8x8xf32> to vector<2x8xf32>
    %36 = vector.shape_cast %35 : vector<2x8xf32> to vector<2x8x1xf32>
    %37 = vector.broadcast %36 : vector<2x8x1xf32> to vector<2x8x8xf32>
    %38 = arith.subf %34, %37 : vector<2x8x8xf32>
    %39 = math.exp %38 : vector<2x8x8xf32>
    %cst_20 = arith.constant dense<0.000000e+00> : vector<2x8xf32>
    %40 = vector.multi_reduction <add>, %39, %cst_20 [2] : vector<2x8x8xf32> to vector<2x8xf32>
    %41 = vector.shape_cast %40 : vector<2x8xf32> to vector<2x8x1xf32>
    %42 = tpu.reciprocal %41 {approx = true} : vector<2x8x1xf32> -> vector<2x8x1xf32>
    %43 = vector.broadcast %42 : vector<2x8x1xf32> to vector<2x8x8xf32>
    %44 = arith.mulf %39, %43 : vector<2x8x8xf32>
    %c0_21 = arith.constant 0 : index
    %c0_22 = arith.constant 0 : index
    %c0_23 = arith.constant 0 : index
    %c0_24 = arith.constant 0 : index
    %45 = vector.load %arg4[%c0_21, %c0_22, %c0_23, %c0_24] : memref<2x2x8x8xf32, #tpu.memory_space<vmem>>, vector<1x2x8x8xf32>
    %46 = vector.shape_cast %45 : vector<1x2x8x8xf32> to vector<2x8x8xf32>
    %47 = vector.shape_cast %44 : vector<2x8x8xf32> to vector<1x2x8x8xf32>
    tpu.vector_store %arg4[%c0_21, %c0_22, %c0_23, %c0_24], %47 {strides = array<i32>} : memref<2x2x8x8xf32, #tpu.memory_space<vmem>>, vector<1x2x8x8xf32>,
    %cst_25 = arith.constant dense<0.000000e+00> : vector<2x8x32xf32>
    %48 = tpu.matmul %44, %31, %cst_25 {dimension_numbers = #tpu.dot_dimension_numbers<[2], [1], [1], [2], [0, 0, 0, 1, 1, 2], [0], [0]>} : vector<2x8x8xf32>, vector<2x8x32xf32>, vector<2x8x32xf32> -> vector<2x8x32xf32>
    %49 = vector.shape_cast %48 : vector<2x8x32xf32> to vector<16x32xf32>
    %c6_26 = arith.constant 6 : index
    %c0_27 = arith.constant 0 : index
    %c0_28 = arith.constant 0 : index
    %50 = vector.load %arg1[%c6_26, %c0_27, %c0_28] : memref<19x32x32xf32, #tpu.memory_space<vmem>>, vector<1x32x32xf32>
    %51 = vector.shape_cast %50 : vector<1x32x32xf32> to vector<32x32xf32>
    %cst_29 = arith.constant dense<0.000000e+00> : vector<16x32xf32>
    %52 = tpu.matmul %49, %51, %cst_29 {dimension_numbers = #tpu.dot_dimension_numbers<[1], [0], [0], [1], [0, 0, 1, 1], [], []>} : vector<16x32xf32>, vector<32x32xf32>, vector<16x32xf32> -> vector<16x32xf32>
    %53 = arith.addf %4, %52 : vector<16x32xf32>
    %c1 = arith.constant 1 : index
    %c0_30 = arith.constant 0 : index
    %c0_31 = arith.constant 0 : index
    %54 = vector.load %arg1[%c1, %c0_30, %c0_31] : memref<19x32x32xf32, #tpu.memory_space<vmem>>, vector<1x32x32xf32>
    %55 = vector.shape_cast %54 : vector<1x32x32xf32> to vector<32x32xf32>
    %cst_32 = arith.constant dense<0.000000e+00> : vector<16x32xf32>
    %56 = tpu.matmul %0, %55, %cst_32 {dimension_numbers = #tpu.dot_dimension_numbers<[1], [0], [0], [1], [0, 0, 1, 1], [], []>} : vector<16x32xf32>, vector<32x32xf32>, vector<16x32xf32> -> vector<16x32xf32>
    %c1_33 = arith.constant 1 : index
    %c0_34 = arith.constant 0 : index
    %57 = vector.load %arg2[%c1_33, %c0_34] : memref<17x32xf32, #tpu.memory_space<vmem>>, vector<1x32xf32>
    %58 = vector.shape_cast %57 : vector<1x32xf32> to vector<32xf32>
    %59 = vector.shape_cast %58 : vector<32xf32> to vector<1x32xf32>
    %60 = vector.broadcast %59 : vector<1x32xf32> to vector<16x32xf32>
    %61 = arith.addf %56, %60 : vector<16x32xf32>
    %c3 = arith.constant 3 : index
    %c0_35 = arith.constant 0 : index
    %c0_36 = arith.constant 0 : index
    %62 = vector.load %arg1[%c3, %c0_35, %c0_36] : memref<19x32x32xf32, #tpu.memory_space<vmem>>, vector<1x32x32xf32>
    %63 = vector.shape_cast %62 : vector<1x32x32xf32> to vector<32x32xf32>
    %cst_37 = arith.constant dense<0.000000e+00> : vector<16x32xf32>
    %64 = tpu.matmul %0, %63, %cst_37 {dimension_numbers = #tpu.dot_dimension_numbers<[1], [0], [0], [1], [0, 0, 1, 1], [], []>} : vector<16x32xf32>, vector<32x32xf32>, vector<16x32xf32> -> vector<16x32xf32>
    %c3_38 = arith.constant 3 : index
    %c0_39 = arith.constant 0 : index
    %65 = vector.load %arg2[%c3_38, %c0_39] : memref<17x32xf32, #tpu.memory_space<vmem>>, vector<1x32xf32>
    %66 = vector.shape_cast %65 : vector<1x32xf32> to vector<32xf32>
    %67 = vector.shape_cast %66 : vector<32xf32> to vector<1x32xf32>
    %68 = vector.broadcast %67 : vector<1x32xf32> to vector<16x32xf32>
    %69 = arith.addf %64, %68 : vector<16x32xf32>
    %c5 = arith.constant 5 : index
    %c0_40 = arith.constant 0 : index
    %c0_41 = arith.constant 0 : index
    %70 = vector.load %arg1[%c5, %c0_40, %c0_41] : memref<19x32x32xf32, #tpu.memory_space<vmem>>, vector<1x32x32xf32>
    %71 = vector.shape_cast %70 : vector<1x32x32xf32> to vector<32x32xf32>
    %cst_42 = arith.constant dense<0.000000e+00> : vector<16x32xf32>
    %72 = tpu.matmul %0, %71, %cst_42 {dimension_numbers = #tpu.dot_dimension_numbers<[1], [0], [0], [1], [0, 0, 1, 1], [], []>} : vector<16x32xf32>, vector<32x32xf32>, vector<16x32xf32> -> vector<16x32xf32>
    %c5_43 = arith.constant 5 : index
    %c0_44 = arith.constant 0 : index
    %73 = vector.load %arg2[%c5_43, %c0_44] : memref<17x32xf32, #tpu.memory_space<vmem>>, vector<1x32xf32>
    %74 = vector.shape_cast %73 : vector<1x32xf32> to vector<32xf32>
    %75 = vector.shape_cast %74 : vector<32xf32> to vector<1x32xf32>
    %76 = vector.broadcast %75 : vector<1x32xf32> to vector<16x32xf32>
    %77 = arith.addf %72, %76 : vector<16x32xf32>
    %78 = vector.shape_cast %61 : vector<16x32xf32> to vector<2x8x32xf32>
    %79 = vector.shape_cast %69 : vector<16x32xf32> to vector<2x8x32xf32>
    %80 = vector.shape_cast %77 : vector<16x32xf32> to vector<2x8x32xf32>
    %cst_45 = arith.constant dense<0.000000e+00> : vector<2x8x8xf32>
    %81 = tpu.matmul %78, %79, %cst_45 {dimension_numbers = #tpu.dot_dimension_numbers<[2], [2], [1], [1], [0, 0, 0, 1, 1, 1], [0], [0]>} : vector<2x8x32xf32>, vector<2x8x32xf32>, vector<2x8x8xf32> -> vector<2x8x8xf32>
    %cst_46 = arith.constant 2.500000e-01 : f32
    %82 = vector.broadcast %cst_46 : f32 to vector<2x8x8xf32>
    %83 = arith.mulf %81, %82 : vector<2x8x8xf32>
    %cst_47 = arith.constant dense<0xFF800000> : vector<2x8xf32>
    %84 = vector.multi_reduction <maximumf>, %83, %cst_47 [2] : vector<2x8x8xf32> to vector<2x8xf32>
    %85 = vector.shape_cast %84 : vector<2x8xf32> to vector<2x8x1xf32>
    %86 = vector.broadcast %85 : vector<2x8x1xf32> to vector<2x8x8xf32>
    %87 = arith.subf %83, %86 : vector<2x8x8xf32>
    %88 = math.exp %87 : vector<2x8x8xf32>
    %cst_48 = arith.constant dense<0.000000e+00> : vector<2x8xf32>
    %89 = vector.multi_reduction <add>, %88, %cst_48 [2] : vector<2x8x8xf32> to vector<2x8xf32>
    %90 = vector.shape_cast %89 : vector<2x8xf32> to vector<2x8x1xf32>
    %91 = tpu.reciprocal %90 {approx = true} : vector<2x8x1xf32> -> vector<2x8x1xf32>
    %92 = vector.broadcast %91 : vector<2x8x1xf32> to vector<2x8x8xf32>
    %93 = arith.mulf %88, %92 : vector<2x8x8xf32>
    %c1_49 = arith.constant 1 : index
    %c0_50 = arith.constant 0 : index
    %c0_51 = arith.constant 0 : index
    %c0_52 = arith.constant 0 : index
    %94 = vector.load %arg4[%c1_49, %c0_50, %c0_51, %c0_52] : memref<2x2x8x8xf32, #tpu.memory_space<vmem>>, vector<1x2x8x8xf32>
    %95 = vector.shape_cast %94 : vector<1x2x8x8xf32> to vector<2x8x8xf32>
    %96 = vector.shape_cast %93 : vector<2x8x8xf32> to vector<1x2x8x8xf32>
    tpu.vector_store %arg4[%c1_49, %c0_50, %c0_51, %c0_52], %96 {strides = array<i32>} : memref<2x2x8x8xf32, #tpu.memory_space<vmem>>, vector<1x2x8x8xf32>,
    %cst_53 = arith.constant dense<0.000000e+00> : vector<2x8x32xf32>
    %97 = tpu.matmul %93, %80, %cst_53 {dimension_numbers = #tpu.dot_dimension_numbers<[2], [1], [1], [2], [0, 0, 0, 1, 1, 2], [0], [0]>} : vector<2x8x8xf32>, vector<2x8x32xf32>, vector<2x8x32xf32> -> vector<2x8x32xf32>
    %98 = vector.shape_cast %97 : vector<2x8x32xf32> to vector<16x32xf32>
    %c7 = arith.constant 7 : index
    %c0_54 = arith.constant 0 : index
    %c0_55 = arith.constant 0 : index
    %99 = vector.load %arg1[%c7, %c0_54, %c0_55] : memref<19x32x32xf32, #tpu.memory_space<vmem>>, vector<1x32x32xf32>
    %100 = vector.shape_cast %99 : vector<1x32x32xf32> to vector<32x32xf32>
    %cst_56 = arith.constant dense<0.000000e+00> : vector<16x32xf32>
    %101 = tpu.matmul %98, %100, %cst_56 {dimension_numbers = #tpu.dot_dimension_numbers<[1], [0], [0], [1], [0, 0, 1, 1], [], []>} : vector<16x32xf32>, vector<32x32xf32>, vector<16x32xf32> -> vector<16x32xf32>
    %102 = arith.addf %53, %101 : vector<16x32xf32>
    %103 = arith.addf %102, %0 : vector<16x32xf32>
    %cst_57 = arith.constant dense<0.000000e+00> : vector<16xf32>
    %104 = vector.multi_reduction <add>, %103, %cst_57 [1] : vector<16x32xf32> to vector<16xf32>
    %105 = vector.shape_cast %104 : vector<16xf32> to vector<16x1xf32>
    %cst_58 = arith.constant 3.125000e-02 : f32
    %106 = vector.broadcast %cst_58 : f32 to vector<16x1xf32>
    %107 = arith.mulf %105, %106 : vector<16x1xf32>
    %108 = arith.mulf %103, %103 : vector<16x32xf32>
    %cst_59 = arith.constant dense<0.000000e+00> : vector<16xf32>
    %109 = vector.multi_reduction <add>, %108, %cst_59 [1] : vector<16x32xf32> to vector<16xf32>
    %110 = vector.shape_cast %109 : vector<16xf32> to vector<16x1xf32>
    %cst_60 = arith.constant 3.125000e-02 : f32
    %111 = vector.broadcast %cst_60 : f32 to vector<16x1xf32>
    %112 = arith.mulf %110, %111 : vector<16x1xf32>
    %113 = arith.mulf %107, %107 : vector<16x1xf32>
    %114 = arith.subf %112, %113 : vector<16x1xf32>
    %115 = vector.broadcast %107 : vector<16x1xf32> to vector<16x32xf32>
    %116 = arith.subf %103, %115 : vector<16x32xf32>
    %cst_61 = arith.constant 9.99999974E-6 : f32
    %117 = vector.broadcast %cst_61 : f32 to vector<16x1xf32>
    %118 = arith.addf %114, %117 : vector<16x1xf32>
    %119 = math.rsqrt %118 : vector<16x1xf32>
    %120 = vector.broadcast %119 : vector<16x1xf32> to vector<16x32xf32>
    %121 = arith.mulf %116, %120 : vector<16x32xf32>
    %c13 = arith.constant 13 : index
    %c0_62 = arith.constant 0 : index
    %122 = vector.load %arg2[%c13, %c0_62] : memref<17x32xf32, #tpu.memory_space<vmem>>, vector<1x32xf32>
    %123 = vector.shape_cast %122 : vector<1x32xf32> to vector<32xf32>
    %124 = vector.shape_cast %123 : vector<32xf32> to vector<1x32xf32>
    %125 = vector.broadcast %124 : vector<1x32xf32> to vector<16x32xf32>
    %c8 = arith.constant 8 : index
    %c0_63 = arith.constant 0 : index
    %c0_64 = arith.constant 0 : index
    %126 = vector.load %arg1[%c8, %c0_63, %c0_64] : memref<19x32x32xf32, #tpu.memory_space<vmem>>, vector<1x32x32xf32>
    %127 = vector.shape_cast %126 : vector<1x32x32xf32> to vector<32x32xf32>
    %cst_65 = arith.constant dense<0.000000e+00> : vector<16x32xf32>
    %128 = tpu.matmul %121, %127, %cst_65 {dimension_numbers = #tpu.dot_dimension_numbers<[1], [0], [0], [1], [0, 0, 1, 1], [], []>} : vector<16x32xf32>, vector<32x32xf32>, vector<16x32xf32> -> vector<16x32xf32>
    %c7_66 = arith.constant 7 : index
    %c0_67 = arith.constant 0 : index
    %129 = vector.load %arg2[%c7_66, %c0_67] : memref<17x32xf32, #tpu.memory_space<vmem>>, vector<1x32xf32>
    %130 = vector.shape_cast %129 : vector<1x32xf32> to vector<32xf32>
    %131 = vector.shape_cast %130 : vector<32xf32> to vector<1x32xf32>
    %132 = vector.broadcast %131 : vector<1x32xf32> to vector<16x32xf32>
    %133 = arith.addf %128, %132 : vector<16x32xf32>
    %c10 = arith.constant 10 : index
    %c0_68 = arith.constant 0 : index
    %c0_69 = arith.constant 0 : index
    %134 = vector.load %arg1[%c10, %c0_68, %c0_69] : memref<19x32x32xf32, #tpu.memory_space<vmem>>, vector<1x32x32xf32>
    %135 = vector.shape_cast %134 : vector<1x32x32xf32> to vector<32x32xf32>
    %cst_70 = arith.constant dense<0.000000e+00> : vector<16x32xf32>
    %136 = tpu.matmul %121, %135, %cst_70 {dimension_numbers = #tpu.dot_dimension_numbers<[1], [0], [0], [1], [0, 0, 1, 1], [], []>} : vector<16x32xf32>, vector<32x32xf32>, vector<16x32xf32> -> vector<16x32xf32>
    %c9 = arith.constant 9 : index
    %c0_71 = arith.constant 0 : index
    %137 = vector.load %arg2[%c9, %c0_71] : memref<17x32xf32, #tpu.memory_space<vmem>>, vector<1x32xf32>
    %138 = vector.shape_cast %137 : vector<1x32xf32> to vector<32xf32>
    %139 = vector.shape_cast %138 : vector<32xf32> to vector<1x32xf32>
    %140 = vector.broadcast %139 : vector<1x32xf32> to vector<16x32xf32>
    %141 = arith.addf %136, %140 : vector<16x32xf32>
    %c12 = arith.constant 12 : index
    %c0_72 = arith.constant 0 : index
    %c0_73 = arith.constant 0 : index
    %142 = vector.load %arg1[%c12, %c0_72, %c0_73] : memref<19x32x32xf32, #tpu.memory_space<vmem>>, vector<1x32x32xf32>
    %143 = vector.shape_cast %142 : vector<1x32x32xf32> to vector<32x32xf32>
    %cst_74 = arith.constant dense<0.000000e+00> : vector<16x32xf32>
    %144 = tpu.matmul %121, %143, %cst_74 {dimension_numbers = #tpu.dot_dimension_numbers<[1], [0], [0], [1], [0, 0, 1, 1], [], []>} : vector<16x32xf32>, vector<32x32xf32>, vector<16x32xf32> -> vector<16x32xf32>
    %c11 = arith.constant 11 : index
    %c0_75 = arith.constant 0 : index
    %145 = vector.load %arg2[%c11, %c0_75] : memref<17x32xf32, #tpu.memory_space<vmem>>, vector<1x32xf32>
    %146 = vector.shape_cast %145 : vector<1x32xf32> to vector<32xf32>
    %147 = vector.shape_cast %146 : vector<32xf32> to vector<1x32xf32>
    %148 = vector.broadcast %147 : vector<1x32xf32> to vector<16x32xf32>
    %149 = arith.addf %144, %148 : vector<16x32xf32>
    %150 = vector.shape_cast %133 : vector<16x32xf32> to vector<2x8x32xf32>
    %151 = vector.shape_cast %141 : vector<16x32xf32> to vector<2x8x32xf32>
    %152 = vector.shape_cast %149 : vector<16x32xf32> to vector<2x8x32xf32>
    %cst_76 = arith.constant dense<0.000000e+00> : vector<2x8x8xf32>
    %153 = tpu.matmul %150, %151, %cst_76 {dimension_numbers = #tpu.dot_dimension_numbers<[2], [2], [1], [1], [0, 0, 0, 1, 1, 1], [0], [0]>} : vector<2x8x32xf32>, vector<2x8x32xf32>, vector<2x8x8xf32> -> vector<2x8x8xf32>
    %cst_77 = arith.constant 2.500000e-01 : f32
    %154 = vector.broadcast %cst_77 : f32 to vector<2x8x8xf32>
    %155 = arith.mulf %153, %154 : vector<2x8x8xf32>
    %cst_78 = arith.constant dense<0xFF800000> : vector<2x8xf32>
    %156 = vector.multi_reduction <maximumf>, %155, %cst_78 [2] : vector<2x8x8xf32> to vector<2x8xf32>
    %157 = vector.shape_cast %156 : vector<2x8xf32> to vector<2x8x1xf32>
    %158 = vector.broadcast %157 : vector<2x8x1xf32> to vector<2x8x8xf32>
    %159 = arith.subf %155, %158 : vector<2x8x8xf32>
    %160 = math.exp %159 : vector<2x8x8xf32>
    %cst_79 = arith.constant dense<0.000000e+00> : vector<2x8xf32>
    %161 = vector.multi_reduction <add>, %160, %cst_79 [2] : vector<2x8x8xf32> to vector<2x8xf32>
    %162 = vector.shape_cast %161 : vector<2x8xf32> to vector<2x8x1xf32>
    %163 = tpu.reciprocal %162 {approx = true} : vector<2x8x1xf32> -> vector<2x8x1xf32>
    %164 = vector.broadcast %163 : vector<2x8x1xf32> to vector<2x8x8xf32>
    %165 = arith.mulf %160, %164 : vector<2x8x8xf32>
    %c0_80 = arith.constant 0 : index
    %c0_81 = arith.constant 0 : index
    %c0_82 = arith.constant 0 : index
    %c0_83 = arith.constant 0 : index
    %166 = vector.load %arg5[%c0_80, %c0_81, %c0_82, %c0_83] : memref<2x2x8x8xf32, #tpu.memory_space<vmem>>, vector<1x2x8x8xf32>
    %167 = vector.shape_cast %166 : vector<1x2x8x8xf32> to vector<2x8x8xf32>
    %168 = vector.shape_cast %165 : vector<2x8x8xf32> to vector<1x2x8x8xf32>
    tpu.vector_store %arg5[%c0_80, %c0_81, %c0_82, %c0_83], %168 {strides = array<i32>} : memref<2x2x8x8xf32, #tpu.memory_space<vmem>>, vector<1x2x8x8xf32>,
    %cst_84 = arith.constant dense<0.000000e+00> : vector<2x8x32xf32>
    %169 = tpu.matmul %165, %152, %cst_84 {dimension_numbers = #tpu.dot_dimension_numbers<[2], [1], [1], [2], [0, 0, 0, 1, 1, 2], [0], [0]>} : vector<2x8x8xf32>, vector<2x8x32xf32>, vector<2x8x32xf32> -> vector<2x8x32xf32>
    %170 = vector.shape_cast %169 : vector<2x8x32xf32> to vector<16x32xf32>
    %c14 = arith.constant 14 : index
    %c0_85 = arith.constant 0 : index
    %c0_86 = arith.constant 0 : index
    %171 = vector.load %arg1[%c14, %c0_85, %c0_86] : memref<19x32x32xf32, #tpu.memory_space<vmem>>, vector<1x32x32xf32>
    %172 = vector.shape_cast %171 : vector<1x32x32xf32> to vector<32x32xf32>
    %cst_87 = arith.constant dense<0.000000e+00> : vector<16x32xf32>
    %173 = tpu.matmul %170, %172, %cst_87 {dimension_numbers = #tpu.dot_dimension_numbers<[1], [0], [0], [1], [0, 0, 1, 1], [], []>} : vector<16x32xf32>, vector<32x32xf32>, vector<16x32xf32> -> vector<16x32xf32>
    %174 = arith.addf %125, %173 : vector<16x32xf32>
    %c9_88 = arith.constant 9 : index
    %c0_89 = arith.constant 0 : index
    %c0_90 = arith.constant 0 : index
    %175 = vector.load %arg1[%c9_88, %c0_89, %c0_90] : memref<19x32x32xf32, #tpu.memory_space<vmem>>, vector<1x32x32xf32>
    %176 = vector.shape_cast %175 : vector<1x32x32xf32> to vector<32x32xf32>
    %cst_91 = arith.constant dense<0.000000e+00> : vector<16x32xf32>
    %177 = tpu.matmul %121, %176, %cst_91 {dimension_numbers = #tpu.dot_dimension_numbers<[1], [0], [0], [1], [0, 0, 1, 1], [], []>} : vector<16x32xf32>, vector<32x32xf32>, vector<16x32xf32> -> vector<16x32xf32>
    %c8_92 = arith.constant 8 : index
    %c0_93 = arith.constant 0 : index
    %178 = vector.load %arg2[%c8_92, %c0_93] : memref<17x32xf32, #tpu.memory_space<vmem>>, vector<1x32xf32>
    %179 = vector.shape_cast %178 : vector<1x32xf32> to vector<32xf32>
    %180 = vector.shape_cast %179 : vector<32xf32> to vector<1x32xf32>
    %181 = vector.broadcast %180 : vector<1x32xf32> to vector<16x32xf32>
    %182 = arith.addf %177, %181 : vector<16x32xf32>
    %c11_94 = arith.constant 11 : index
    %c0_95 = arith.constant 0 : index
    %c0_96 = arith.constant 0 : index
    %183 = vector.load %arg1[%c11_94, %c0_95, %c0_96] : memref<19x32x32xf32, #tpu.memory_space<vmem>>, vector<1x32x32xf32>
    %184 = vector.shape_cast %183 : vector<1x32x32xf32> to vector<32x32xf32>
    %cst_97 = arith.constant dense<0.000000e+00> : vector<16x32xf32>
    %185 = tpu.matmul %121, %184, %cst_97 {dimension_numbers = #tpu.dot_dimension_numbers<[1], [0], [0], [1], [0, 0, 1, 1], [], []>} : vector<16x32xf32>, vector<32x32xf32>, vector<16x32xf32> -> vector<16x32xf32>
    %c10_98 = arith.constant 10 : index
    %c0_99 = arith.constant 0 : index
    %186 = vector.load %arg2[%c10_98, %c0_99] : memref<17x32xf32, #tpu.memory_space<vmem>>, vector<1x32xf32>
    %187 = vector.shape_cast %186 : vector<1x32xf32> to vector<32xf32>
    %188 = vector.shape_cast %187 : vector<32xf32> to vector<1x32xf32>
    %189 = vector.broadcast %188 : vector<1x32xf32> to vector<16x32xf32>
    %190 = arith.addf %185, %189 : vector<16x32xf32>
    %c13_100 = arith.constant 13 : index
    %c0_101 = arith.constant 0 : index
    %c0_102 = arith.constant 0 : index
    %191 = vector.load %arg1[%c13_100, %c0_101, %c0_102] : memref<19x32x32xf32, #tpu.memory_space<vmem>>, vector<1x32x32xf32>
    %192 = vector.shape_cast %191 : vector<1x32x32xf32> to vector<32x32xf32>
    %cst_103 = arith.constant dense<0.000000e+00> : vector<16x32xf32>
    %193 = tpu.matmul %121, %192, %cst_103 {dimension_numbers = #tpu.dot_dimension_numbers<[1], [0], [0], [1], [0, 0, 1, 1], [], []>} : vector<16x32xf32>, vector<32x32xf32>, vector<16x32xf32> -> vector<16x32xf32>
    %c12_104 = arith.constant 12 : index
    %c0_105 = arith.constant 0 : index
    %194 = vector.load %arg2[%c12_104, %c0_105] : memref<17x32xf32, #tpu.memory_space<vmem>>, vector<1x32xf32>
    %195 = vector.shape_cast %194 : vector<1x32xf32> to vector<32xf32>
    %196 = vector.shape_cast %195 : vector<32xf32> to vector<1x32xf32>
    %197 = vector.broadcast %196 : vector<1x32xf32> to vector<16x32xf32>
    %198 = arith.addf %193, %197 : vector<16x32xf32>
    %199 = vector.shape_cast %182 : vector<16x32xf32> to vector<2x8x32xf32>
    %200 = vector.shape_cast %190 : vector<16x32xf32> to vector<2x8x32xf32>
    %201 = vector.shape_cast %198 : vector<16x32xf32> to vector<2x8x32xf32>
    %cst_106 = arith.constant dense<0.000000e+00> : vector<2x8x8xf32>
    %202 = tpu.matmul %199, %200, %cst_106 {dimension_numbers = #tpu.dot_dimension_numbers<[2], [2], [1], [1], [0, 0, 0, 1, 1, 1], [0], [0]>} : vector<2x8x32xf32>, vector<2x8x32xf32>, vector<2x8x8xf32> -> vector<2x8x8xf32>
    %cst_107 = arith.constant 2.500000e-01 : f32
    %203 = vector.broadcast %cst_107 : f32 to vector<2x8x8xf32>
    %204 = arith.mulf %202, %203 : vector<2x8x8xf32>
    %cst_108 = arith.constant dense<0xFF800000> : vector<2x8xf32>
    %205 = vector.multi_reduction <maximumf>, %204, %cst_108 [2] : vector<2x8x8xf32> to vector<2x8xf32>
    %206 = vector.shape_cast %205 : vector<2x8xf32> to vector<2x8x1xf32>
    %207 = vector.broadcast %206 : vector<2x8x1xf32> to vector<2x8x8xf32>
    %208 = arith.subf %204, %207 : vector<2x8x8xf32>
    %209 = math.exp %208 : vector<2x8x8xf32>
    %cst_109 = arith.constant dense<0.000000e+00> : vector<2x8xf32>
    %210 = vector.multi_reduction <add>, %209, %cst_109 [2] : vector<2x8x8xf32> to vector<2x8xf32>
    %211 = vector.shape_cast %210 : vector<2x8xf32> to vector<2x8x1xf32>
    %212 = tpu.reciprocal %211 {approx = true} : vector<2x8x1xf32> -> vector<2x8x1xf32>
    %213 = vector.broadcast %212 : vector<2x8x1xf32> to vector<2x8x8xf32>
    %214 = arith.mulf %209, %213 : vector<2x8x8xf32>
    %c1_110 = arith.constant 1 : index
    %c0_111 = arith.constant 0 : index
    %c0_112 = arith.constant 0 : index
    %c0_113 = arith.constant 0 : index
    %215 = vector.load %arg5[%c1_110, %c0_111, %c0_112, %c0_113] : memref<2x2x8x8xf32, #tpu.memory_space<vmem>>, vector<1x2x8x8xf32>
    %216 = vector.shape_cast %215 : vector<1x2x8x8xf32> to vector<2x8x8xf32>
    %217 = vector.shape_cast %214 : vector<2x8x8xf32> to vector<1x2x8x8xf32>
    tpu.vector_store %arg5[%c1_110, %c0_111, %c0_112, %c0_113], %217 {strides = array<i32>} : memref<2x2x8x8xf32, #tpu.memory_space<vmem>>, vector<1x2x8x8xf32>,
    %cst_114 = arith.constant dense<0.000000e+00> : vector<2x8x32xf32>
    %218 = tpu.matmul %214, %201, %cst_114 {dimension_numbers = #tpu.dot_dimension_numbers<[2], [1], [1], [2], [0, 0, 0, 1, 1, 2], [0], [0]>} : vector<2x8x8xf32>, vector<2x8x32xf32>, vector<2x8x32xf32> -> vector<2x8x32xf32>
    %219 = vector.shape_cast %218 : vector<2x8x32xf32> to vector<16x32xf32>
    %c15 = arith.constant 15 : index
    %c0_115 = arith.constant 0 : index
    %c0_116 = arith.constant 0 : index
    %220 = vector.load %arg1[%c15, %c0_115, %c0_116] : memref<19x32x32xf32, #tpu.memory_space<vmem>>, vector<1x32x32xf32>
    %221 = vector.shape_cast %220 : vector<1x32x32xf32> to vector<32x32xf32>
    %cst_117 = arith.constant dense<0.000000e+00> : vector<16x32xf32>
    %222 = tpu.matmul %219, %221, %cst_117 {dimension_numbers = #tpu.dot_dimension_numbers<[1], [0], [0], [1], [0, 0, 1, 1], [], []>} : vector<16x32xf32>, vector<32x32xf32>, vector<16x32xf32> -> vector<16x32xf32>
    %223 = arith.addf %174, %222 : vector<16x32xf32>
    %224 = arith.addf %223, %121 : vector<16x32xf32>
    %cst_118 = arith.constant dense<0.000000e+00> : vector<16xf32>
    %225 = vector.multi_reduction <add>, %224, %cst_118 [1] : vector<16x32xf32> to vector<16xf32>
    %226 = vector.shape_cast %225 : vector<16xf32> to vector<16x1xf32>
    %cst_119 = arith.constant 3.125000e-02 : f32
    %227 = vector.broadcast %cst_119 : f32 to vector<16x1xf32>
    %228 = arith.mulf %226, %227 : vector<16x1xf32>
    %229 = arith.mulf %224, %224 : vector<16x32xf32>
    %cst_120 = arith.constant dense<0.000000e+00> : vector<16xf32>
    %230 = vector.multi_reduction <add>, %229, %cst_120 [1] : vector<16x32xf32> to vector<16xf32>
    %231 = vector.shape_cast %230 : vector<16xf32> to vector<16x1xf32>
    %cst_121 = arith.constant 3.125000e-02 : f32
    %232 = vector.broadcast %cst_121 : f32 to vector<16x1xf32>
    %233 = arith.mulf %231, %232 : vector<16x1xf32>
    %234 = arith.mulf %228, %228 : vector<16x1xf32>
    %235 = arith.subf %233, %234 : vector<16x1xf32>
    %236 = vector.broadcast %228 : vector<16x1xf32> to vector<16x32xf32>
    %237 = arith.subf %224, %236 : vector<16x32xf32>
    %cst_122 = arith.constant 9.99999974E-6 : f32
    %238 = vector.broadcast %cst_122 : f32 to vector<16x1xf32>
    %239 = arith.addf %235, %238 : vector<16x1xf32>
    %240 = math.rsqrt %239 : vector<16x1xf32>
    %241 = vector.broadcast %240 : vector<16x1xf32> to vector<16x32xf32>
    %242 = arith.mulf %237, %241 : vector<16x32xf32>
    %c16 = arith.constant 16 : index
    %c0_123 = arith.constant 0 : index
    %c0_124 = arith.constant 0 : index
    %243 = vector.load %arg1[%c16, %c0_123, %c0_124] : memref<19x32x32xf32, #tpu.memory_space<vmem>>, vector<1x32x32xf32>
    %244 = vector.shape_cast %243 : vector<1x32x32xf32> to vector<32x32xf32>
    %cst_125 = arith.constant dense<0.000000e+00> : vector<16x32xf32>
    %245 = tpu.matmul %242, %244, %cst_125 {dimension_numbers = #tpu.dot_dimension_numbers<[1], [0], [0], [1], [0, 0, 1, 1], [], []>} : vector<16x32xf32>, vector<32x32xf32>, vector<16x32xf32> -> vector<16x32xf32>
    %c14_126 = arith.constant 14 : index
    %c0_127 = arith.constant 0 : index
    %246 = vector.load %arg2[%c14_126, %c0_127] : memref<17x32xf32, #tpu.memory_space<vmem>>, vector<1x32xf32>
    %247 = vector.shape_cast %246 : vector<1x32xf32> to vector<32xf32>
    %248 = vector.shape_cast %247 : vector<32xf32> to vector<1x32xf32>
    %249 = vector.broadcast %248 : vector<1x32xf32> to vector<16x32xf32>
    %250 = arith.addf %245, %249 : vector<16x32xf32>
    %cst_128 = arith.constant 0.000000e+00 : f32
    %251 = vector.broadcast %cst_128 : f32 to vector<16x32xf32>
    %252 = arith.maximumf %250, %251 : vector<16x32xf32>
    %c17 = arith.constant 17 : index
    %c0_129 = arith.constant 0 : index
    %c0_130 = arith.constant 0 : index
    %253 = vector.load %arg1[%c17, %c0_129, %c0_130] : memref<19x32x32xf32, #tpu.memory_space<vmem>>, vector<1x32x32xf32>
    %254 = vector.shape_cast %253 : vector<1x32x32xf32> to vector<32x32xf32>
    %cst_131 = arith.constant dense<0.000000e+00> : vector<16x32xf32>
    %255 = tpu.matmul %252, %254, %cst_131 {dimension_numbers = #tpu.dot_dimension_numbers<[1], [0], [0], [1], [0, 0, 1, 1], [], []>} : vector<16x32xf32>, vector<32x32xf32>, vector<16x32xf32> -> vector<16x32xf32>
    %c15_132 = arith.constant 15 : index
    %c0_133 = arith.constant 0 : index
    %256 = vector.load %arg2[%c15_132, %c0_133] : memref<17x32xf32, #tpu.memory_space<vmem>>, vector<1x32xf32>
    %257 = vector.shape_cast %256 : vector<1x32xf32> to vector<32xf32>
    %258 = vector.shape_cast %257 : vector<32xf32> to vector<1x32xf32>
    %259 = vector.broadcast %258 : vector<1x32xf32> to vector<16x32xf32>
    %260 = arith.addf %255, %259 : vector<16x32xf32>
    %cst_134 = arith.constant 0.000000e+00 : f32
    %261 = vector.broadcast %cst_134 : f32 to vector<16x32xf32>
    %262 = arith.maximumf %260, %261 : vector<16x32xf32>
    %c18 = arith.constant 18 : index
    %c0_135 = arith.constant 0 : index
    %c0_136 = arith.constant 0 : index
    %263 = vector.load %arg1[%c18, %c0_135, %c0_136] : memref<19x32x32xf32, #tpu.memory_space<vmem>>, vector<1x32x32xf32>
    %264 = vector.shape_cast %263 : vector<1x32x32xf32> to vector<32x32xf32>
    %cst_137 = arith.constant dense<0.000000e+00> : vector<16x32xf32>
    %265 = tpu.matmul %262, %264, %cst_137 {dimension_numbers = #tpu.dot_dimension_numbers<[1], [0], [0], [1], [0, 0, 1, 1], [], []>} : vector<16x32xf32>, vector<32x32xf32>, vector<16x32xf32> -> vector<16x32xf32>
    %c16_138 = arith.constant 16 : index
    %c0_139 = arith.constant 0 : index
    %266 = vector.load %arg2[%c16_138, %c0_139] : memref<17x32xf32, #tpu.memory_space<vmem>>, vector<1x32xf32>
    %267 = vector.shape_cast %266 : vector<1x32xf32> to vector<32xf32>
    %268 = vector.shape_cast %267 : vector<32xf32> to vector<1x32xf32>
    %269 = vector.broadcast %268 : vector<1x32xf32> to vector<16x32xf32>
    %270 = arith.addf %265, %269 : vector<16x32xf32>
    %271 = arith.addf %270, %242 : vector<16x32xf32>
    %cst_140 = arith.constant dense<0.000000e+00> : vector<16xf32>
    %272 = vector.multi_reduction <add>, %271, %cst_140 [1] : vector<16x32xf32> to vector<16xf32>
    %273 = vector.shape_cast %272 : vector<16xf32> to vector<16x1xf32>
    %cst_141 = arith.constant 3.125000e-02 : f32
    %274 = vector.broadcast %cst_141 : f32 to vector<16x1xf32>
    %275 = arith.mulf %273, %274 : vector<16x1xf32>
    %276 = arith.mulf %271, %271 : vector<16x32xf32>
    %cst_142 = arith.constant dense<0.000000e+00> : vector<16xf32>
    %277 = vector.multi_reduction <add>, %276, %cst_142 [1] : vector<16x32xf32> to vector<16xf32>
    %278 = vector.shape_cast %277 : vector<16xf32> to vector<16x1xf32>
    %cst_143 = arith.constant 3.125000e-02 : f32
    %279 = vector.broadcast %cst_143 : f32 to vector<16x1xf32>
    %280 = arith.mulf %278, %279 : vector<16x1xf32>
    %281 = arith.mulf %275, %275 : vector<16x1xf32>
    %282 = arith.subf %280, %281 : vector<16x1xf32>
    %283 = vector.broadcast %275 : vector<16x1xf32> to vector<16x32xf32>
    %284 = arith.subf %271, %283 : vector<16x32xf32>
    %cst_144 = arith.constant 9.99999974E-6 : f32
    %285 = vector.broadcast %cst_144 : f32 to vector<16x1xf32>
    %286 = arith.addf %282, %285 : vector<16x1xf32>
    %287 = math.rsqrt %286 : vector<16x1xf32>
    %288 = vector.broadcast %287 : vector<16x1xf32> to vector<16x32xf32>
    %289 = arith.mulf %284, %288 : vector<16x32xf32>
    %c0_145 = arith.constant 0 : index
    %c0_146 = arith.constant 0 : index
    %290 = vector.load %arg3[%c0_145, %c0_146] : memref<16x32xf32, #tpu.memory_space<vmem>>, vector<16x32xf32>
    tpu.vector_store %arg3[%c0_145, %c0_146], %289 {strides = array<i32>} : memref<16x32xf32, #tpu.memory_space<vmem>>, vector<16x32xf32>,
    return
  }
}

</mosaic_0001>

<llo_original>
// kernel: decoder_layer.1
$region0: #{decoder_layer.1}
  #allocation0 [shape = 'u32[]', space=smem, size = 0x4, offset = 0x4, fixed_abs, tag = 'smem constant byte address 0x4 - core index']
  #allocation1 [shape = 'u32[144,128]{1,0:T(1,128)}', space=vmem, size = 0x12000, scoped, tag = 'internal scratch']
  %s0 = inlined_call_operand.hbm [shape: f32[16,32], index: 0, kind: input, shape index: {}]
  %s1 = inlined_call_operand.hbm [shape: f32[19,32,32], index: 1, kind: input, shape index: {}]
  %s2 = inlined_call_operand.hbm [shape: f32[17,32], index: 2, kind: input, shape index: {}]
  %s3 = inlined_call_operand.hbm [shape: f32[16,32], index: 3, kind: output, shape index: {0}]
  %s4 = inlined_call_operand.vmem [shape: f32[2,2,8,8], index: 4, kind: output, shape index: {1}]
  %s5 = inlined_call_operand.vmem [shape: f32[2,2,8,8], index: 5, kind: output, shape index: {2}]
  %6 = xla_tuple %s3, %s4, %s5
  %s7 = sld [smem:[#allocation0]]
  $region50: #{decoder_layer.1} parent=0
    _
  %s9 = ssub.s32 1, %s7
  %s10 = scalar_select 0, %s9, %s7
  $region1: #{decoder_layer.1} parent=0
    #allocation2 [shape = 'u8[8192]{0}', space=vmem, size = 0x2000, scoped, tag = 'input window, operand 0, single buffered']
    #allocation3 [shape = 's32[1]{0}', space=sflag, size = 0x4, scoped, tag = 'scoped memory for decoder_layer.1']
    #allocation4 [shape = 's32[1]{0}', space=sflag, size = 0x4, scoped, tag = 'scoped memory for decoder_layer.1']
    #allocation5 [shape = 'u8[311296]{0}', space=vmem, size = 0x4c000, scoped, tag = 'input window, operand 1, single buffered']
    #allocation6 [shape = 's32[1]{0}', space=sflag, size = 0x4, scoped, tag = 'scoped memory for decoder_layer.1']
    #allocation7 [shape = 'u8[12288]{0}', space=vmem, size = 0x3000, scoped, tag = 'input window, operand 2, single buffered']
    #allocation8 [shape = 'u8[8192]{0}', space=vmem, size = 0x2000, scoped, tag = 'output window, operand 0, single buffered']
    %11 = vsyncpa [#allocation3], 0
    %12 = vsyncpa [#allocation6], 0
    %13 = vsyncpa [#allocation4], 0
    // Predicated region
    $region2: #{decoder_layer.1} parent=1 // pred_check
      _
    $region3: #{decoder_layer.1} parent=1 // pred_check_branch
      %15 = sbr.rel (0) target = $region5
    $region4: #{decoder_layer.1} parent=1 // pred_region
      %s17 = ssub.s32 256, 256
      %18 = vsyncadd [#allocation3], %s17
      %s19 = sshll.u32 [#allocation2], 4
      %s20 = int_to_ptr.vmem [resolvable:$true] %s19
      %25 = dma.hbm_to_vmem [thread:$0]  %s0, 256, %s20, [#allocation3], 128, 128, 8
    $region5: #{decoder_layer.1} parent=1 // pred_fallthru
      _
    // Predicated region
    $region6: #{decoder_layer.1} parent=1 // pred_check
      _
    $region7: #{decoder_layer.1} parent=1 // pred_check_branch
      %27 = sbr.rel (0) target = $region9
    $region8: #{decoder_layer.1} parent=1 // pred_region
      %s29 = ssub.s32 9728, 9728
      %30 = vsyncadd [#allocation6], %s29
      %s31 = sshll.u32 [#allocation5], 4
      %s32 = int_to_ptr.vmem [resolvable:$true] %s31
      %37 = dma.hbm_to_vmem [thread:$0]  %s1, 9728, %s32, [#allocation6], 128, 128, 8
    $region9: #{decoder_layer.1} parent=1 // pred_fallthru
      _
    // Predicated region
    $region10: #{decoder_layer.1} parent=1 // pred_check
      _
    $region11: #{decoder_layer.1} parent=1 // pred_check_branch
      %39 = sbr.rel (0) target = $region13
    $region12: #{decoder_layer.1} parent=1 // pred_region
      %s41 = ssub.s32 384, 384
      %42 = vsyncadd [#allocation6], %s41
      %s43 = sshll.u32 [#allocation7], 4
      %s44 = int_to_ptr.vmem [resolvable:$true] %s43
      %49 = dma.hbm_to_vmem [thread:$0]  %s2, 384, %s44, [#allocation6], 128, 128, 8
    $region13: #{decoder_layer.1} parent=1 // pred_fallthru
      _
    // Predicated region
    $region14: #{decoder_layer.1} parent=1 // pred_check
      _
    $region15: #{decoder_layer.1} parent=1 // pred_check_branch
      %51 = sbr.rel (0) target = $region17
    $region16: #{decoder_layer.1} parent=1 // pred_region
      %52 = dma.done [#allocation3], 256
    $region17: #{decoder_layer.1} parent=1 // pred_fallthru
      _
    // Predicated region
    $region18: #{decoder_layer.1} parent=1 // pred_check
      _
    $region19: #{decoder_layer.1} parent=1 // pred_check_branch
      %54 = sbr.rel (0) target = $region21
    $region20: #{decoder_layer.1} parent=1 // pred_region
      %55 = dma.done [#allocation6], 9728
    $region21: #{decoder_layer.1} parent=1 // pred_fallthru
      _
    // Predicated region
    $region22: #{decoder_layer.1} parent=1 // pred_check
      _
    $region23: #{decoder_layer.1} parent=1 // pred_check_branch
      %57 = sbr.rel (0) target = $region25
    $region24: #{decoder_layer.1} parent=1 // pred_region
      %58 = dma.done [#allocation6], 384
    $region25: #{decoder_layer.1} parent=1 // pred_fallthru
      _
    %v59 = vld [vmem:[#allocation2] sm:$0xff]
    %v60 = vld [vmem:[#allocation2 + $0x8] sm:$0xff]
    %v61 = vld [vmem:[#allocation7 + $0x6] sm:$0x1]
    %v62 = vlaneseq
    %v63 = vshrl.u32 %v62, 7
    %v64 = vsub.s32 0, %v63
    %v65 = vrot.slane %v61, %v64
    %v66 = vld [vmem:[#allocation5] sm:$0xff]
    %v67 = vld [vmem:[#allocation5 + $0x8] sm:$0xff]
    %v68 = vld [vmem:[#allocation5 + $0x10] sm:$0xff]
    %v69 = vld [vmem:[#allocation5 + $0x18] sm:$0xff]
    %v70 = vld [vmem:[#allocation7] sm:$0x1]
    %v71 = vlaneseq
    %v72 = vshrl.u32 %v71, 7
    %v73 = vsub.s32 0, %v72
    %v74 = vrot.slane %v70, %v73
    %vm75 = vcmask 261120
    %v77 = vsel %vm75, %v59, 0
    %v80 = vsel %vm75, %v60, 0
    %82 = vmatprep.subr.mxu0 0.0
    %83 = vmatpush1.msra.mxu0 %v66
    %84 = vmatprep.subr.mxu0 0.0
    %85 = vmatpush1.msra.mxu0 %v67
    %86 = vmatprep.subr.mxu0 0.0
    %87 = vmatpush1.msra.mxu0 %v68
    %88 = vmatprep.subr.mxu0 0.0
    %89 = vmatpush1.msra.mxu0 %v69
    %90 = vmatprep.subr.mxu0 0.0
    %91 = vmatpush1.msra.mxu0 0.0
    %92 = vmatprep.subr.mxu0 0.0
    %93 = vmatpush1.msra.mxu0 0.0
    %94 = vmatprep.subr.mxu0 0.0
    %95 = vmatpush1.msra.mxu0 0.0
    %96 = vmatprep.subr.mxu0 0.0
    %97 = vmatpush1.msra.mxu0 0.0
    %98 = vmatprep.subr.mxu0 0.0
    %99 = vmatpush1.msra.mxu0 0.0
    %100 = vmatprep.subr.mxu0 0.0
    %101 = vmatpush1.msra.mxu0 0.0
    %102 = vmatprep.subr.mxu0 0.0
    %103 = vmatpush1.msra.mxu0 0.0
    %104 = vmatprep.subr.mxu0 0.0
    %105 = vmatpush1.msra.mxu0 0.0
    %106 = vmatprep.subr.mxu0 0.0
    %107 = vmatpush1.msra.mxu0 0.0
    %108 = vmatprep.subr.mxu0 0.0
    %109 = vmatpush1.msra.mxu0 0.0
    %110 = vmatprep.subr.mxu0 0.0
    %111 = vmatpush1.msra.mxu0 0.0
    %112 = vmatprep.subr.mxu0 0.0
    %113 = vmatpush1.msra.mxu0 0.0
    %114 = vmatprep.subr.mxu0 0.0
    %115 = vmatpush1.msra.mxu0 0.0
    %116 = vmatprep.subr.mxu0 0.0
    %117 = vmatpush1.msra.mxu0 0.0
    %118 = vmatprep.subr.mxu0 0.0
    %119 = vmatpush1.msra.mxu0 0.0
    %120 = vmatprep.subr.mxu0 0.0
    %121 = vmatpush1.msra.mxu0 0.0
    %122 = vmatprep.subr.mxu0 0.0
    %123 = vmatpush1.msra.mxu0 0.0
    %124 = vmatprep.subr.mxu0 0.0
    %125 = vmatpush1.msra.mxu0 0.0
    %126 = vmatprep.subr.mxu0 0.0
    %127 = vmatpush1.msra.mxu0 0.0
    %128 = vmatprep.subr.mxu0 0.0
    %129 = vmatpush1.msra.mxu0 0.0
    %130 = vmatprep.subr.mxu0 0.0
    %131 = vmatpush1.msra.mxu0 0.0
    %132 = vmatprep.subr.mxu0 0.0
    %133 = vmatpush1.msra.mxu0 0.0
    %134 = vmatprep.subr.mxu0 0.0
    %135 = vmatpush1.msra.mxu0 0.0
    %136 = vmatprep.subr.mxu0 0.0
    %137 = vmatpush1.msra.mxu0 0.0
    %138 = vmatprep.subr.mxu0 0.0
    %139 = vmatpush1.msra.mxu0 0.0
    %140 = vmatprep.subr.mxu0 0.0
    %141 = vmatpush1.msra.mxu0 0.0
    %142 = vmatprep.subr.mxu0 0.0
    %143 = vmatpush1.msra.mxu0 0.0
    %144 = vmatprep.subr.mxu0 0.0
    %145 = vmatpush1.msra.mxu0 0.0
    %146 = vmatprep.mubr.f32.mxu0 0.0
    %147 = vmatmul.mubr.f32.gmra.mrb[0].mxu0 %v77
    %v148 = vpop.f32.mrb[0].mxu0
    %v149 = vadd.f32 %v74, %v148
    %v150 = vpop.f32.mrb[0].mxu0
    %151 = vmatprep.mubr.f32.mxu0 0.0
    %152 = vmatmul.mubr.f32.gmra.mrb[0].mxu0 %v80
    %v153 = vpop.f32.mrb[0].mxu0
    %v154 = vadd.f32 %v74, %v153
    %v155 = vpop.f32.mrb[0].mxu0
    %156 = vdwg.mxu0
    %s157 = scalar_lea.vmem [#allocation5], 64
    %v158 = vld [vmem:[%s157] sm:$0xff]
    %v159 = vld [vmem:[%s157 + $0x8] sm:$0xff]
    %v160 = vld [vmem:[%s157 + $0x10] sm:$0xff]
    %v161 = vld [vmem:[%s157 + $0x18] sm:$0xff]
    %v162 = vld [vmem:[#allocation7 + $0x2] sm:$0x1]
    %v163 = vlaneseq
    %v164 = vshrl.u32 %v163, 7
    %v165 = vsub.s32 0, %v164
    %v166 = vrot.slane %v162, %v165
    %167 = vmatprep.subr.mxu0 0.0
    %168 = vmatpush1.msra.mxu0 %v158
    %169 = vmatprep.subr.mxu0 0.0
    %170 = vmatpush1.msra.mxu0 %v159
    %171 = vmatprep.subr.mxu0 0.0
    %172 = vmatpush1.msra.mxu0 %v160
    %173 = vmatprep.subr.mxu0 0.0
    %174 = vmatpush1.msra.mxu0 %v161
    %175 = vmatprep.subr.mxu0 0.0
    %176 = vmatpush1.msra.mxu0 0.0
    %177 = vmatprep.subr.mxu0 0.0
    %178 = vmatpush1.msra.mxu0 0.0
    %179 = vmatprep.subr.mxu0 0.0
    %180 = vmatpush1.msra.mxu0 0.0
    %181 = vmatprep.subr.mxu0 0.0
    %182 = vmatpush1.msra.mxu0 0.0
    %183 = vmatprep.subr.mxu0 0.0
    %184 = vmatpush1.msra.mxu0 0.0
    %185 = vmatprep.subr.mxu0 0.0
    %186 = vmatpush1.msra.mxu0 0.0
    %187 = vmatprep.subr.mxu0 0.0
    %188 = vmatpush1.msra.mxu0 0.0
    %189 = vmatprep.subr.mxu0 0.0
    %190 = vmatpush1.msra.mxu0 0.0
    %191 = vmatprep.subr.mxu0 0.0
    %192 = vmatpush1.msra.mxu0 0.0
    %193 = vmatprep.subr.mxu0 0.0
    %194 = vmatpush1.msra.mxu0 0.0
    %195 = vmatprep.subr.mxu0 0.0
    %196 = vmatpush1.msra.mxu0 0.0
    %197 = vmatprep.subr.mxu0 0.0
    %198 = vmatpush1.msra.mxu0 0.0
    %199 = vmatprep.subr.mxu0 0.0
    %200 = vmatpush1.msra.mxu0 0.0
    %201 = vmatprep.subr.mxu0 0.0
    %202 = vmatpush1.msra.mxu0 0.0
    %203 = vmatprep.subr.mxu0 0.0
    %204 = vmatpush1.msra.mxu0 0.0
    %205 = vmatprep.subr.mxu0 0.0
    %206 = vmatpush1.msra.mxu0 0.0
    %207 = vmatprep.subr.mxu0 0.0
    %208 = vmatpush1.msra.mxu0 0.0
    %209 = vmatprep.subr.mxu0 0.0
    %210 = vmatpush1.msra.mxu0 0.0
    %211 = vmatprep.subr.mxu0 0.0
    %212 = vmatpush1.msra.mxu0 0.0
    %213 = vmatprep.subr.mxu0 0.0
    %214 = vmatpush1.msra.mxu0 0.0
    %215 = vmatprep.subr.mxu0 0.0
    %216 = vmatpush1.msra.mxu0 0.0
    %217 = vmatprep.subr.mxu0 0.0
    %218 = vmatpush1.msra.mxu0 0.0
    %219 = vmatprep.subr.mxu0 0.0
    %220 = vmatpush1.msra.mxu0 0.0
    %221 = vmatprep.subr.mxu0 0.0
    %222 = vmatpush1.msra.mxu0 0.0
    %223 = vmatprep.subr.mxu0 0.0
    %224 = vmatpush1.msra.mxu0 0.0
    %225 = vmatprep.subr.mxu0 0.0
    %226 = vmatpush1.msra.mxu0 0.0
    %227 = vmatprep.subr.mxu0 0.0
    %228 = vmatpush1.msra.mxu0 0.0
    %229 = vmatprep.subr.mxu0 0.0
    %230 = vmatpush1.msra.mxu0 0.0
    %231 = vmatprep.mubr.f32.mxu0 0.0
    %232 = vmatmul.mubr.f32.gmra.mrb[0].mxu0 %v77
    %v233 = vpop.f32.mrb[0].mxu0
    %v234 = vadd.f32 %v166, %v233
    %v235 = vpop.f32.mrb[0].mxu0
    %236 = vmatprep.mubr.f32.mxu0 0.0
    %237 = vmatmul.mubr.f32.gmra.mrb[0].mxu0 %v80
    %v238 = vpop.f32.mrb[0].mxu0
    %v239 = vadd.f32 %v166, %v238
    %v240 = vpop.f32.mrb[0].mxu0
    %241 = vdwg.mxu0
    %s242 = scalar_lea.vmem [#allocation5], 128
    %v243 = vld [vmem:[%s242] sm:$0xff]
    %v244 = vld [vmem:[%s242 + $0x8] sm:$0xff]
    %v245 = vld [vmem:[%s242 + $0x10] sm:$0xff]
    %v246 = vld [vmem:[%s242 + $0x18] sm:$0xff]
    %v247 = vld [vmem:[#allocation7 + $0x4] sm:$0x1]
    %v248 = vlaneseq
    %v249 = vshrl.u32 %v248, 7
    %v250 = vsub.s32 0, %v249
    %v251 = vrot.slane %v247, %v250
    %252 = vmatprep.subr.mxu0 0.0
    %253 = vmatpush1.msra.mxu0 %v243
    %254 = vmatprep.subr.mxu0 0.0
    %255 = vmatpush1.msra.mxu0 %v244
    %256 = vmatprep.subr.mxu0 0.0
    %257 = vmatpush1.msra.mxu0 %v245
    %258 = vmatprep.subr.mxu0 0.0
    %259 = vmatpush1.msra.mxu0 %v246
    %260 = vmatprep.subr.mxu0 0.0
    %261 = vmatpush1.msra.mxu0 0.0
    %262 = vmatprep.subr.mxu0 0.0
    %263 = vmatpush1.msra.mxu0 0.0
    %264 = vmatprep.subr.mxu0 0.0
    %265 = vmatpush1.msra.mxu0 0.0
    %266 = vmatprep.subr.mxu0 0.0
    %267 = vmatpush1.msra.mxu0 0.0
    %268 = vmatprep.subr.mxu0 0.0
    %269 = vmatpush1.msra.mxu0 0.0
    %270 = vmatprep.subr.mxu0 0.0
    %271 = vmatpush1.msra.mxu0 0.0
    %272 = vmatprep.subr.mxu0 0.0
    %273 = vmatpush1.msra.mxu0 0.0
    %274 = vmatprep.subr.mxu0 0.0
    %275 = vmatpush1.msra.mxu0 0.0
    %276 = vmatprep.subr.mxu0 0.0
    %277 = vmatpush1.msra.mxu0 0.0
    %278 = vmatprep.subr.mxu0 0.0
    %279 = vmatpush1.msra.mxu0 0.0
    %280 = vmatprep.subr.mxu0 0.0
    %281 = vmatpush1.msra.mxu0 0.0
    %282 = vmatprep.subr.mxu0 0.0
    %283 = vmatpush1.msra.mxu0 0.0
    %284 = vmatprep.subr.mxu0 0.0
    %285 = vmatpush1.msra.mxu0 0.0
    %286 = vmatprep.subr.mxu0 0.0
    %287 = vmatpush1.msra.mxu0 0.0
    %288 = vmatprep.subr.mxu0 0.0
    %289 = vmatpush1.msra.mxu0 0.0
    %290 = vmatprep.subr.mxu0 0.0
    %291 = vmatpush1.msra.mxu0 0.0
    %292 = vmatprep.subr.mxu0 0.0
    %293 = vmatpush1.msra.mxu0 0.0
    %294 = vmatprep.subr.mxu0 0.0
    %295 = vmatpush1.msra.mxu0 0.0
    %296 = vmatprep.subr.mxu0 0.0
    %297 = vmatpush1.msra.mxu0 0.0
    %298 = vmatprep.subr.mxu0 0.0
    %299 = vmatpush1.msra.mxu0 0.0
    %300 = vmatprep.subr.mxu0 0.0
    %301 = vmatpush1.msra.mxu0 0.0
    %302 = vmatprep.subr.mxu0 0.0
    %303 = vmatpush1.msra.mxu0 0.0
    %304 = vmatprep.subr.mxu0 0.0
    %305 = vmatpush1.msra.mxu0 0.0
    %306 = vmatprep.subr.mxu0 0.0
    %307 = vmatpush1.msra.mxu0 0.0
    %308 = vmatprep.subr.mxu0 0.0
    %309 = vmatpush1.msra.mxu0 0.0
    %310 = vmatprep.subr.mxu0 0.0
    %311 = vmatpush1.msra.mxu0 0.0
    %312 = vmatprep.subr.mxu0 0.0
    %313 = vmatpush1.msra.mxu0 0.0
    %314 = vmatprep.subr.mxu0 0.0
    %315 = vmatpush1.msra.mxu0 0.0
    %316 = vmatprep.mubr.f32.mxu0 0.0
    %317 = vmatmul.mubr.f32.gmra.mrb[0].mxu0 %v77
    %v318 = vpop.f32.mrb[0].mxu0
    %v319 = vadd.f32 %v251, %v318
    %v320 = vpop.f32.mrb[0].mxu0
    %321 = vmatprep.mubr.f32.mxu0 0.0
    %322 = vmatmul.mubr.f32.gmra.mrb[0].mxu0 %v80
    %v323 = vpop.f32.mrb[0].mxu0
    %v324 = vadd.f32 %v251, %v323
    %v325 = vpop.f32.mrb[0].mxu0
    %326 = vdwg.mxu0
    %v328 = vsel %vm75, %v149, 0
    %v331 = vsel %vm75, %v234, 0
    %333 = vmatprep.subr.mxu0 0.0
    %334 = vmatpush1.xpose.msra.mxu0 %v331
    %335 = vmatprep.subr.mxu0 0.0
    %336 = vmatpush1.xpose.msra.mxu0 0.0
    %337 = vmatprep.subr.mxu0 0.0
    %338 = vmatpush1.xpose.msra.mxu0 0.0
    %339 = vmatprep.subr.mxu0 0.0
    %340 = vmatpush1.xpose.msra.mxu0 0.0
    %341 = vmatprep.subr.mxu0 0.0
    %342 = vmatpush1.xpose.msra.mxu0 0.0
    %343 = vmatprep.subr.mxu0 0.0
    %344 = vmatpush1.xpose.msra.mxu0 0.0
    %345 = vmatprep.subr.mxu0 0.0
    %346 = vmatpush1.xpose.msra.mxu0 0.0
    %347 = vmatprep.subr.mxu0 0.0
    %348 = vmatpush1.xpose.msra.mxu0 0.0
    %349 = vmatprep.subr.mxu0 0.0
    %350 = vmatpush1.xpose.msra.mxu0 0.0
    %351 = vmatprep.subr.mxu0 0.0
    %352 = vmatpush1.xpose.msra.mxu0 0.0
    %353 = vmatprep.subr.mxu0 0.0
    %354 = vmatpush1.xpose.msra.mxu0 0.0
    %355 = vmatprep.subr.mxu0 0.0
    %356 = vmatpush1.xpose.msra.mxu0 0.0
    %357 = vmatprep.subr.mxu0 0.0
    %358 = vmatpush1.xpose.msra.mxu0 0.0
    %359 = vmatprep.subr.mxu0 0.0
    %360 = vmatpush1.xpose.msra.mxu0 0.0
    %361 = vmatprep.subr.mxu0 0.0
    %362 = vmatpush1.xpose.msra.mxu0 0.0
    %363 = vmatprep.subr.mxu0 0.0
    %364 = vmatpush1.xpose.msra.mxu0 0.0
    %365 = vmatprep.subr.mxu0 0.0
    %366 = vmatpush1.xpose.msra.mxu0 0.0
    %367 = vmatprep.subr.mxu0 0.0
    %368 = vmatpush1.xpose.msra.mxu0 0.0
    %369 = vmatprep.subr.mxu0 0.0
    %370 = vmatpush1.xpose.msra.mxu0 0.0
    %371 = vmatprep.subr.mxu0 0.0
    %372 = vmatpush1.xpose.msra.mxu0 0.0
    %373 = vmatprep.subr.mxu0 0.0
    %374 = vmatpush1.xpose.msra.mxu0 0.0
    %375 = vmatprep.subr.mxu0 0.0
    %376 = vmatpush1.xpose.msra.mxu0 0.0
    %377 = vmatprep.subr.mxu0 0.0
    %378 = vmatpush1.xpose.msra.mxu0 0.0
    %379 = vmatprep.subr.mxu0 0.0
    %380 = vmatpush1.xpose.msra.mxu0 0.0
    %381 = vmatprep.subr.mxu0 0.0
    %382 = vmatpush1.xpose.msra.mxu0 0.0
    %383 = vmatprep.subr.mxu0 0.0
    %384 = vmatpush1.xpose.msra.mxu0 0.0
    %385 = vmatprep.subr.mxu0 0.0
    %386 = vmatpush1.xpose.msra.mxu0 0.0
    %387 = vmatprep.subr.mxu0 0.0
    %388 = vmatpush1.xpose.msra.mxu0 0.0
    %389 = vmatprep.subr.mxu0 0.0
    %390 = vmatpush1.xpose.msra.mxu0 0.0
    %391 = vmatprep.subr.mxu0 0.0
    %392 = vmatpush1.xpose.msra.mxu0 0.0
    %393 = vmatprep.subr.mxu0 0.0
    %394 = vmatpush1.xpose.msra.mxu0 0.0
    %395 = vmatprep.subr.mxu0 0.0
    %396 = vmatpush1.xpose.msra.mxu0 0.0
    %397 = vmatprep.mubr.f32.mxu0 0.0
    %398 = vmatmul.mubr.f32.gmra.mrb[0].mxu0 %v328
    %v399 = vpop.f32.mrb[0].mxu0
    %v400 = vadd.f32 0.0, %v399
    %v401 = vpop.f32.mrb[0].mxu0
    %402 = vdwg.mxu0
    %v404 = vsel %vm75, %v154, 0
    %v407 = vsel %vm75, %v239, 0
    %409 = vmatprep.subr.mxu0 0.0
    %410 = vmatpush1.xpose.msra.mxu0 %v407
    %411 = vmatprep.subr.mxu0 0.0
    %412 = vmatpush1.xpose.msra.mxu0 0.0
    %413 = vmatprep.subr.mxu0 0.0
    %414 = vmatpush1.xpose.msra.mxu0 0.0
    %415 = vmatprep.subr.mxu0 0.0
    %416 = vmatpush1.xpose.msra.mxu0 0.0
    %417 = vmatprep.subr.mxu0 0.0
    %418 = vmatpush1.xpose.msra.mxu0 0.0
    %419 = vmatprep.subr.mxu0 0.0
    %420 = vmatpush1.xpose.msra.mxu0 0.0
    %421 = vmatprep.subr.mxu0 0.0
    %422 = vmatpush1.xpose.msra.mxu0 0.0
    %423 = vmatprep.subr.mxu0 0.0
    %424 = vmatpush1.xpose.msra.mxu0 0.0
    %425 = vmatprep.subr.mxu0 0.0
    %426 = vmatpush1.xpose.msra.mxu0 0.0
    %427 = vmatprep.subr.mxu0 0.0
    %428 = vmatpush1.xpose.msra.mxu0 0.0
    %429 = vmatprep.subr.mxu0 0.0
    %430 = vmatpush1.xpose.msra.mxu0 0.0
    %431 = vmatprep.subr.mxu0 0.0
    %432 = vmatpush1.xpose.msra.mxu0 0.0
    %433 = vmatprep.subr.mxu0 0.0
    %434 = vmatpush1.xpose.msra.mxu0 0.0
    %435 = vmatprep.subr.mxu0 0.0
    %436 = vmatpush1.xpose.msra.mxu0 0.0
    %437 = vmatprep.subr.mxu0 0.0
    %438 = vmatpush1.xpose.msra.mxu0 0.0
    %439 = vmatprep.subr.mxu0 0.0
    %440 = vmatpush1.xpose.msra.mxu0 0.0
    %441 = vmatprep.subr.mxu0 0.0
    %442 = vmatpush1.xpose.msra.mxu0 0.0
    %443 = vmatprep.subr.mxu0 0.0
    %444 = vmatpush1.xpose.msra.mxu0 0.0
    %445 = vmatprep.subr.mxu0 0.0
    %446 = vmatpush1.xpose.msra.mxu0 0.0
    %447 = vmatprep.subr.mxu0 0.0
    %448 = vmatpush1.xpose.msra.mxu0 0.0
    %449 = vmatprep.subr.mxu0 0.0
    %450 = vmatpush1.xpose.msra.mxu0 0.0
    %451 = vmatprep.subr.mxu0 0.0
    %452 = vmatpush1.xpose.msra.mxu0 0.0
    %453 = vmatprep.subr.mxu0 0.0
    %454 = vmatpush1.xpose.msra.mxu0 0.0
    %455 = vmatprep.subr.mxu0 0.0
    %456 = vmatpush1.xpose.msra.mxu0 0.0
    %457 = vmatprep.subr.mxu0 0.0
    %458 = vmatpush1.xpose.msra.mxu0 0.0
    %459 = vmatprep.subr.mxu0 0.0
    %460 = vmatpush1.xpose.msra.mxu0 0.0
    %461 = vmatprep.subr.mxu0 0.0
    %462 = vmatpush1.xpose.msra.mxu0 0.0
    %463 = vmatprep.subr.mxu0 0.0
    %464 = vmatpush1.xpose.msra.mxu0 0.0
    %465 = vmatprep.subr.mxu0 0.0
    %466 = vmatpush1.xpose.msra.mxu0 0.0
    %467 = vmatprep.subr.mxu0 0.0
    %468 = vmatpush1.xpose.msra.mxu0 0.0
    %469 = vmatprep.subr.mxu0 0.0
    %470 = vmatpush1.xpose.msra.mxu0 0.0
    %471 = vmatprep.subr.mxu0 0.0
    %472 = vmatpush1.xpose.msra.mxu0 0.0
    %473 = vmatprep.mubr.f32.mxu0 0.0
    %474 = vmatmul.mubr.f32.gmra.mrb[0].mxu0 %v404
    %v475 = vpop.f32.mrb[0].mxu0
    %v476 = vadd.f32 0.0, %v475
    %v477 = vpop.f32.mrb[0].mxu0
    %478 = vdwg.mxu0
    %v479 = vmul.f32 %v400, 0.25
    %v480 = vmul.f32 %v476, 0.25
    %vm481 = vcmask 64512
    %v482 = vsel %vm481, %v479, -inf
    %483 = vmax.xlane.f32.xlu0 %v482
    %v484 = vpop.xlane.xlu0 %483
    %v485 = vsel %vm481, %v480, -inf
    %486 = vmax.xlane.f32.xlu0 %v485
    %v487 = vpop.xlane.xlu0 %486
    %v488 = vsub.f32 %v479, %v484
    %v489 = vsub.f32 %v480, %v487
    %v490 = vmul.f32 %v488, 1.442695
    %v491 = vpow.pop %v490
    %v492 = vmul.f32 %v489, 1.442695
    %v493 = vpow.pop %v492
    %v494 = vsel %vm481, %v491, 0.0
    %495 = vadd.xlane.f32.xlu0 %v494
    %v496 = vpop.xlane.xlu0 %495
    %v497 = vsel %vm481, %v493, 0.0
    %498 = vadd.xlane.f32.xlu0 %v497
    %v499 = vpop.xlane.xlu0 %498
    %v500 = vrcp.pop %v496
    %v501 = vrcp.pop %v499
    %v502 = vmul.f32 %v491, %v500
    %v503 = vmul.f32 %v493, %v501
    %504 = vst.msk [vmem:[%s4] sm:$0xff] %vm481, %v502
    %505 = vst.msk [vmem:[%s4 + $0x8] sm:$0xff] %vm481, %v503
    %v507 = vsel %vm481, %v502, 0
    %509 = vmatprep.subr.mxu0 0.0
    %510 = vmatpush1.msra.mxu0 %v319
    %511 = vmatprep.subr.mxu0 0.0
    %512 = vmatpush1.msra.mxu0 0.0
    %513 = vmatprep.subr.mxu0 0.0
    %514 = vmatpush1.msra.mxu0 0.0
    %515 = vmatprep.subr.mxu0 0.0
    %516 = vmatpush1.msra.mxu0 0.0
    %517 = vmatprep.subr.mxu0 0.0
    %518 = vmatpush1.msra.mxu0 0.0
    %519 = vmatprep.subr.mxu0 0.0
    %520 = vmatpush1.msra.mxu0 0.0
    %521 = vmatprep.subr.mxu0 0.0
    %522 = vmatpush1.msra.mxu0 0.0
    %523 = vmatprep.subr.mxu0 0.0
    %524 = vmatpush1.msra.mxu0 0.0
    %525 = vmatprep.subr.mxu0 0.0
    %526 = vmatpush1.msra.mxu0 0.0
    %527 = vmatprep.subr.mxu0 0.0
    %528 = vmatpush1.msra.mxu0 0.0
    %529 = vmatprep.subr.mxu0 0.0
    %530 = vmatpush1.msra.mxu0 0.0
    %531 = vmatprep.subr.mxu0 0.0
    %532 = vmatpush1.msra.mxu0 0.0
    %533 = vmatprep.subr.mxu0 0.0
    %534 = vmatpush1.msra.mxu0 0.0
    %535 = vmatprep.subr.mxu0 0.0
    %536 = vmatpush1.msra.mxu0 0.0
    %537 = vmatprep.subr.mxu0 0.0
    %538 = vmatpush1.msra.mxu0 0.0
    %539 = vmatprep.subr.mxu0 0.0
    %540 = vmatpush1.msra.mxu0 0.0
    %541 = vmatprep.subr.mxu0 0.0
    %542 = vmatpush1.msra.mxu0 0.0
    %543 = vmatprep.subr.mxu0 0.0
    %544 = vmatpush1.msra.mxu0 0.0
    %545 = vmatprep.subr.mxu0 0.0
    %546 = vmatpush1.msra.mxu0 0.0
    %547 = vmatprep.subr.mxu0 0.0
    %548 = vmatpush1.msra.mxu0 0.0
    %549 = vmatprep.subr.mxu0 0.0
    %550 = vmatpush1.msra.mxu0 0.0
    %551 = vmatprep.subr.mxu0 0.0
    %552 = vmatpush1.msra.mxu0 0.0
    %553 = vmatprep.subr.mxu0 0.0
    %554 = vmatpush1.msra.mxu0 0.0
    %555 = vmatprep.subr.mxu0 0.0
    %556 = vmatpush1.msra.mxu0 0.0
    %557 = vmatprep.subr.mxu0 0.0
    %558 = vmatpush1.msra.mxu0 0.0
    %559 = vmatprep.subr.mxu0 0.0
    %560 = vmatpush1.msra.mxu0 0.0
    %561 = vmatprep.subr.mxu0 0.0
    %562 = vmatpush1.msra.mxu0 0.0
    %563 = vmatprep.subr.mxu0 0.0
    %564 = vmatpush1.msra.mxu0 0.0
    %565 = vmatprep.subr.mxu0 0.0
    %566 = vmatpush1.msra.mxu0 0.0
    %567 = vmatprep.subr.mxu0 0.0
    %568 = vmatpush1.msra.mxu0 0.0
    %569 = vmatprep.subr.mxu0 0.0
    %570 = vmatpush1.msra.mxu0 0.0
    %571 = vmatprep.subr.mxu0 0.0
    %572 = vmatpush1.msra.mxu0 0.0
    %573 = vmatprep.mubr.f32.mxu0 0.0
    %574 = vmatmul.mubr.f32.gmra.mrb[0].mxu0 %v507
    %v575 = vpop.f32.mrb[0].mxu0
    %v576 = vadd.f32 0.0, %v575
    %v577 = vpop.f32.mrb[0].mxu0
    %578 = vdwg.mxu0
    %v580 = vsel %vm481, %v503, 0
    %582 = vmatprep.subr.mxu0 0.0
    %583 = vmatpush1.msra.mxu0 %v324
    %584 = vmatprep.subr.mxu0 0.0
    %585 = vmatpush1.msra.mxu0 0.0
    %586 = vmatprep.subr.mxu0 0.0
    %587 = vmatpush1.msra.mxu0 0.0
    %588 = vmatprep.subr.mxu0 0.0
    %589 = vmatpush1.msra.mxu0 0.0
    %590 = vmatprep.subr.mxu0 0.0
    %591 = vmatpush1.msra.mxu0 0.0
    %592 = vmatprep.subr.mxu0 0.0
    %593 = vmatpush1.msra.mxu0 0.0
    %594 = vmatprep.subr.mxu0 0.0
    %595 = vmatpush1.msra.mxu0 0.0
    %596 = vmatprep.subr.mxu0 0.0
    %597 = vmatpush1.msra.mxu0 0.0
    %598 = vmatprep.subr.mxu0 0.0
    %599 = vmatpush1.msra.mxu0 0.0
    %600 = vmatprep.subr.mxu0 0.0
    %601 = vmatpush1.msra.mxu0 0.0
    %602 = vmatprep.subr.mxu0 0.0
    %603 = vmatpush1.msra.mxu0 0.0
    %604 = vmatprep.subr.mxu0 0.0
    %605 = vmatpush1.msra.mxu0 0.0
    %606 = vmatprep.subr.mxu0 0.0
    %607 = vmatpush1.msra.mxu0 0.0
    %608 = vmatprep.subr.mxu0 0.0
    %609 = vmatpush1.msra.mxu0 0.0
    %610 = vmatprep.subr.mxu0 0.0
    %611 = vmatpush1.msra.mxu0 0.0
    %612 = vmatprep.subr.mxu0 0.0
    %613 = vmatpush1.msra.mxu0 0.0
    %614 = vmatprep.subr.mxu0 0.0
    %615 = vmatpush1.msra.mxu0 0.0
    %616 = vmatprep.subr.mxu0 0.0
    %617 = vmatpush1.msra.mxu0 0.0
    %618 = vmatprep.subr.mxu0 0.0
    %619 = vmatpush1.msra.mxu0 0.0
    %620 = vmatprep.subr.mxu0 0.0
    %621 = vmatpush1.msra.mxu0 0.0
    %622 = vmatprep.subr.mxu0 0.0
    %623 = vmatpush1.msra.mxu0 0.0
    %624 = vmatprep.subr.mxu0 0.0
    %625 = vmatpush1.msra.mxu0 0.0
    %626 = vmatprep.subr.mxu0 0.0
    %627 = vmatpush1.msra.mxu0 0.0
    %628 = vmatprep.subr.mxu0 0.0
    %629 = vmatpush1.msra.mxu0 0.0
    %630 = vmatprep.subr.mxu0 0.0
    %631 = vmatpush1.msra.mxu0 0.0
    %632 = vmatprep.subr.mxu0 0.0
    %633 = vmatpush1.msra.mxu0 0.0
    %634 = vmatprep.subr.mxu0 0.0
    %635 = vmatpush1.msra.mxu0 0.0
    %636 = vmatprep.subr.mxu0 0.0
    %637 = vmatpush1.msra.mxu0 0.0
    %638 = vmatprep.subr.mxu0 0.0
    %639 = vmatpush1.msra.mxu0 0.0
    %640 = vmatprep.subr.mxu0 0.0
    %641 = vmatpush1.msra.mxu0 0.0
    %642 = vmatprep.subr.mxu0 0.0
    %643 = vmatpush1.msra.mxu0 0.0
    %644 = vmatprep.subr.mxu0 0.0
    %645 = vmatpush1.msra.mxu0 0.0
    %646 = vmatprep.mubr.f32.mxu0 0.0
    %647 = vmatmul.mubr.f32.gmra.mrb[0].mxu0 %v580
    %v648 = vpop.f32.mrb[0].mxu0
    %v649 = vadd.f32 0.0, %v648
    %v650 = vpop.f32.mrb[0].mxu0
    %651 = vdwg.mxu0
    %s652 = scalar_lea.vmem [#allocation5], 192
    %v653 = vld [vmem:[%s652] sm:$0xff]
    %v654 = vld [vmem:[%s652 + $0x8] sm:$0xff]
    %v655 = vld [vmem:[%s652 + $0x10] sm:$0xff]
    %v656 = vld [vmem:[%s652 + $0x18] sm:$0xff]
    %v658 = vsel %vm75, %v576, 0
    %v661 = vsel %vm75, %v649, 0
    %663 = vmatprep.subr.mxu0 0.0
    %664 = vmatpush1.msra.mxu0 %v653
    %665 = vmatprep.subr.mxu0 0.0
    %666 = vmatpush1.msra.mxu0 %v654
    %667 = vmatprep.subr.mxu0 0.0
    %668 = vmatpush1.msra.mxu0 %v655
    %669 = vmatprep.subr.mxu0 0.0
    %670 = vmatpush1.msra.mxu0 %v656
    %671 = vmatprep.subr.mxu0 0.0
    %672 = vmatpush1.msra.mxu0 0.0
    %673 = vmatprep.subr.mxu0 0.0
    %674 = vmatpush1.msra.mxu0 0.0
    %675 = vmatprep.subr.mxu0 0.0
    %676 = vmatpush1.msra.mxu0 0.0
    %677 = vmatprep.subr.mxu0 0.0
    %678 = vmatpush1.msra.mxu0 0.0
    %679 = vmatprep.subr.mxu0 0.0
    %680 = vmatpush1.msra.mxu0 0.0
    %681 = vmatprep.subr.mxu0 0.0
    %682 = vmatpush1.msra.mxu0 0.0
    %683 = vmatprep.subr.mxu0 0.0
    %684 = vmatpush1.msra.mxu0 0.0
    %685 = vmatprep.subr.mxu0 0.0
    %686 = vmatpush1.msra.mxu0 0.0
    %687 = vmatprep.subr.mxu0 0.0
    %688 = vmatpush1.msra.mxu0 0.0
    %689 = vmatprep.subr.mxu0 0.0
    %690 = vmatpush1.msra.mxu0 0.0
    %691 = vmatprep.subr.mxu0 0.0
    %692 = vmatpush1.msra.mxu0 0.0
    %693 = vmatprep.subr.mxu0 0.0
    %694 = vmatpush1.msra.mxu0 0.0
    %695 = vmatprep.subr.mxu0 0.0
    %696 = vmatpush1.msra.mxu0 0.0
    %697 = vmatprep.subr.mxu0 0.0
    %698 = vmatpush1.msra.mxu0 0.0
    %699 = vmatprep.subr.mxu0 0.0
    %700 = vmatpush1.msra.mxu0 0.0
    %701 = vmatprep.subr.mxu0 0.0
    %702 = vmatpush1.msra.mxu0 0.0
    %703 = vmatprep.subr.mxu0 0.0
    %704 = vmatpush1.msra.mxu0 0.0
    %705 = vmatprep.subr.mxu0 0.0
    %706 = vmatpush1.msra.mxu0 0.0
    %707 = vmatprep.subr.mxu0 0.0
    %708 = vmatpush1.msra.mxu0 0.0
    %709 = vmatprep.subr.mxu0 0.0
    %710 = vmatpush1.msra.mxu0 0.0
    %711 = vmatprep.subr.mxu0 0.0
    %712 = vmatpush1.msra.mxu0 0.0
    %713 = vmatprep.subr.mxu0 0.0
    %714 = vmatpush1.msra.mxu0 0.0
    %715 = vmatprep.subr.mxu0 0.0
    %716 = vmatpush1.msra.mxu0 0.0
    %717 = vmatprep.subr.mxu0 0.0
    %718 = vmatpush1.msra.mxu0 0.0
    %719 = vmatprep.subr.mxu0 0.0
    %720 = vmatpush1.msra.mxu0 0.0
    %721 = vmatprep.subr.mxu0 0.0
    %722 = vmatpush1.msra.mxu0 0.0
    %723 = vmatprep.subr.mxu0 0.0
    %724 = vmatpush1.msra.mxu0 0.0
    %725 = vmatprep.subr.mxu0 0.0
    %726 = vmatpush1.msra.mxu0 0.0
    %727 = vmatprep.mubr.f32.mxu0 0.0
    %728 = vmatmul.mubr.f32.gmra.mrb[0].mxu0 %v658
    %v729 = vpop.f32.mrb[0].mxu0
    %v730 = vadd.f32 0.0, %v729
    %v731 = vpop.f32.mrb[0].mxu0
    %732 = vmatprep.mubr.f32.mxu0 0.0
    %733 = vmatmul.mubr.f32.gmra.mrb[0].mxu0 %v661
    %v734 = vpop.f32.mrb[0].mxu0
    %v735 = vadd.f32 0.0, %v734
    %v736 = vpop.f32.mrb[0].mxu0
    %737 = vdwg.mxu0
    %v738 = vadd.f32 %v65, %v730
    %v739 = vadd.f32 %v65, %v735
    %s740 = scalar_lea.vmem [#allocation5], 32
    %v741 = vld [vmem:[%s740] sm:$0xff]
    %v742 = vld [vmem:[%s740 + $0x8] sm:$0xff]
    %v743 = vld [vmem:[%s740 + $0x10] sm:$0xff]
    %v744 = vld [vmem:[%s740 + $0x18] sm:$0xff]
    %v745 = vld [vmem:[#allocation7 + $0x1] sm:$0x1]
    %v746 = vlaneseq
    %v747 = vshrl.u32 %v746, 7
    %v748 = vsub.s32 0, %v747
    %v749 = vrot.slane %v745, %v748
    %750 = vmatprep.subr.mxu0 0.0
    %751 = vmatpush1.msra.mxu0 %v741
    %752 = vmatprep.subr.mxu0 0.0
    %753 = vmatpush1.msra.mxu0 %v742
    %754 = vmatprep.subr.mxu0 0.0
    %755 = vmatpush1.msra.mxu0 %v743
    %756 = vmatprep.subr.mxu0 0.0
    %757 = vmatpush1.msra.mxu0 %v744
    %758 = vmatprep.subr.mxu0 0.0
    %759 = vmatpush1.msra.mxu0 0.0
    %760 = vmatprep.subr.mxu0 0.0
    %761 = vmatpush1.msra.mxu0 0.0
    %762 = vmatprep.subr.mxu0 0.0
    %763 = vmatpush1.msra.mxu0 0.0
    %764 = vmatprep.subr.mxu0 0.0
    %765 = vmatpush1.msra.mxu0 0.0
    %766 = vmatprep.subr.mxu0 0.0
    %767 = vmatpush1.msra.mxu0 0.0
    %768 = vmatprep.subr.mxu0 0.0
    %769 = vmatpush1.msra.mxu0 0.0
    %770 = vmatprep.subr.mxu0 0.0
    %771 = vmatpush1.msra.mxu0 0.0
    %772 = vmatprep.subr.mxu0 0.0
    %773 = vmatpush1.msra.mxu0 0.0
    %774 = vmatprep.subr.mxu0 0.0
    %775 = vmatpush1.msra.mxu0 0.0
    %776 = vmatprep.subr.mxu0 0.0
    %777 = vmatpush1.msra.mxu0 0.0
    %778 = vmatprep.subr.mxu0 0.0
    %779 = vmatpush1.msra.mxu0 0.0
    %780 = vmatprep.subr.mxu0 0.0
    %781 = vmatpush1.msra.mxu0 0.0
    %782 = vmatprep.subr.mxu0 0.0
    %783 = vmatpush1.msra.mxu0 0.0
    %784 = vmatprep.subr.mxu0 0.0
    %785 = vmatpush1.msra.mxu0 0.0
    %786 = vmatprep.subr.mxu0 0.0
    %787 = vmatpush1.msra.mxu0 0.0
    %788 = vmatprep.subr.mxu0 0.0
    %789 = vmatpush1.msra.mxu0 0.0
    %790 = vmatprep.subr.mxu0 0.0
    %791 = vmatpush1.msra.mxu0 0.0
    %792 = vmatprep.subr.mxu0 0.0
    %793 = vmatpush1.msra.mxu0 0.0
    %794 = vmatprep.subr.mxu0 0.0
    %795 = vmatpush1.msra.mxu0 0.0
    %796 = vmatprep.subr.mxu0 0.0
    %797 = vmatpush1.msra.mxu0 0.0
    %798 = vmatprep.subr.mxu0 0.0
    %799 = vmatpush1.msra.mxu0 0.0
    %800 = vmatprep.subr.mxu0 0.0
    %801 = vmatpush1.msra.mxu0 0.0
    %802 = vmatprep.subr.mxu0 0.0
    %803 = vmatpush1.msra.mxu0 0.0
    %804 = vmatprep.subr.mxu0 0.0
    %805 = vmatpush1.msra.mxu0 0.0
    %806 = vmatprep.subr.mxu0 0.0
    %807 = vmatpush1.msra.mxu0 0.0
    %808 = vmatprep.subr.mxu0 0.0
    %809 = vmatpush1.msra.mxu0 0.0
    %810 = vmatprep.subr.mxu0 0.0
    %811 = vmatpush1.msra.mxu0 0.0
    %812 = vmatprep.subr.mxu0 0.0
    %813 = vmatpush1.msra.mxu0 0.0
    %814 = vmatprep.mubr.f32.mxu0 0.0
    %815 = vmatmul.mubr.f32.gmra.mrb[0].mxu0 %v77
    %v816 = vpop.f32.mrb[0].mxu0
    %v817 = vadd.f32 %v749, %v816
    %v818 = vpop.f32.mrb[0].mxu0
    %819 = vmatprep.mubr.f32.mxu0 0.0
    %820 = vmatmul.mubr.f32.gmra.mrb[0].mxu0 %v80
    %v821 = vpop.f32.mrb[0].mxu0
    %v822 = vadd.f32 %v749, %v821
    %v823 = vpop.f32.mrb[0].mxu0
    %824 = vdwg.mxu0
    %s825 = scalar_lea.vmem [#allocation5], 96
    %v826 = vld [vmem:[%s825] sm:$0xff]
    %v827 = vld [vmem:[%s825 + $0x8] sm:$0xff]
    %v828 = vld [vmem:[%s825 + $0x10] sm:$0xff]
    %v829 = vld [vmem:[%s825 + $0x18] sm:$0xff]
    %v830 = vld [vmem:[#allocation7 + $0x3] sm:$0x1]
    %v831 = vlaneseq
    %v832 = vshrl.u32 %v831, 7
    %v833 = vsub.s32 0, %v832
    %v834 = vrot.slane %v830, %v833
    %835 = vmatprep.subr.mxu0 0.0
    %836 = vmatpush1.msra.mxu0 %v826
    %837 = vmatprep.subr.mxu0 0.0
    %838 = vmatpush1.msra.mxu0 %v827
    %839 = vmatprep.subr.mxu0 0.0
    %840 = vmatpush1.msra.mxu0 %v828
    %841 = vmatprep.subr.mxu0 0.0
    %842 = vmatpush1.msra.mxu0 %v829
    %843 = vmatprep.subr.mxu0 0.0
    %844 = vmatpush1.msra.mxu0 0.0
    %845 = vmatprep.subr.mxu0 0.0
    %846 = vmatpush1.msra.mxu0 0.0
    %847 = vmatprep.subr.mxu0 0.0
    %848 = vmatpush1.msra.mxu0 0.0
    %849 = vmatprep.subr.mxu0 0.0
    %850 = vmatpush1.msra.mxu0 0.0
    %851 = vmatprep.subr.mxu0 0.0
    %852 = vmatpush1.msra.mxu0 0.0
    %853 = vmatprep.subr.mxu0 0.0
    %854 = vmatpush1.msra.mxu0 0.0
    %855 = vmatprep.subr.mxu0 0.0
    %856 = vmatpush1.msra.mxu0 0.0
    %857 = vmatprep.subr.mxu0 0.0
    %858 = vmatpush1.msra.mxu0 0.0
    %859 = vmatprep.subr.mxu0 0.0
    %860 = vmatpush1.msra.mxu0 0.0
    %861 = vmatprep.subr.mxu0 0.0
    %862 = vmatpush1.msra.mxu0 0.0
    %863 = vmatprep.subr.mxu0 0.0
    %864 = vmatpush1.msra.mxu0 0.0
    %865 = vmatprep.subr.mxu0 0.0
    %866 = vmatpush1.msra.mxu0 0.0
    %867 = vmatprep.subr.mxu0 0.0
    %868 = vmatpush1.msra.mxu0 0.0
    %869 = vmatprep.subr.mxu0 0.0
    %870 = vmatpush1.msra.mxu0 0.0
    %871 = vmatprep.subr.mxu0 0.0
    %872 = vmatpush1.msra.mxu0 0.0
    %873 = vmatprep.subr.mxu0 0.0
    %874 = vmatpush1.msra.mxu0 0.0
    %875 = vmatprep.subr.mxu0 0.0
    %876 = vmatpush1.msra.mxu0 0.0
    %877 = vmatprep.subr.mxu0 0.0
    %878 = vmatpush1.msra.mxu0 0.0
    %879 = vmatprep.subr.mxu0 0.0
    %880 = vmatpush1.msra.mxu0 0.0
    %881 = vmatprep.subr.mxu0 0.0
    %882 = vmatpush1.msra.mxu0 0.0
    %883 = vmatprep.subr.mxu0 0.0
    %884 = vmatpush1.msra.mxu0 0.0
    %885 = vmatprep.subr.mxu0 0.0
    %886 = vmatpush1.msra.mxu0 0.0
    %887 = vmatprep.subr.mxu0 0.0
    %888 = vmatpush1.msra.mxu0 0.0
    %889 = vmatprep.subr.mxu0 0.0
    %890 = vmatpush1.msra.mxu0 0.0
    %891 = vmatprep.subr.mxu0 0.0
    %892 = vmatpush1.msra.mxu0 0.0
    %893 = vmatprep.subr.mxu0 0.0
    %894 = vmatpush1.msra.mxu0 0.0
    %895 = vmatprep.subr.mxu0 0.0
    %896 = vmatpush1.msra.mxu0 0.0
    %897 = vmatprep.subr.mxu0 0.0
    %898 = vmatpush1.msra.mxu0 0.0
    %899 = vmatprep.mubr.f32.mxu0 0.0
    %900 = vmatmul.mubr.f32.gmra.mrb[0].mxu0 %v77
    %v901 = vpop.f32.mrb[0].mxu0
    %v902 = vadd.f32 %v834, %v901
    %v903 = vpop.f32.mrb[0].mxu0
    %904 = vmatprep.mubr.f32.mxu0 0.0
    %905 = vmatmul.mubr.f32.gmra.mrb[0].mxu0 %v80
    %v906 = vpop.f32.mrb[0].mxu0
    %v907 = vadd.f32 %v834, %v906
    %v908 = vpop.f32.mrb[0].mxu0
    %909 = vdwg.mxu0
    %s910 = scalar_lea.vmem [#allocation5], 160
    %v911 = vld [vmem:[%s910] sm:$0xff]
    %v912 = vld [vmem:[%s910 + $0x8] sm:$0xff]
    %v913 = vld [vmem:[%s910 + $0x10] sm:$0xff]
    %v914 = vld [vmem:[%s910 + $0x18] sm:$0xff]
    %v915 = vld [vmem:[#allocation7 + $0x5] sm:$0x1]
    %v916 = vlaneseq
    %v917 = vshrl.u32 %v916, 7
    %v918 = vsub.s32 0, %v917
    %v919 = vrot.slane %v915, %v918
    %920 = vmatprep.subr.mxu0 0.0
    %921 = vmatpush1.msra.mxu0 %v911
    %922 = vmatprep.subr.mxu0 0.0
    %923 = vmatpush1.msra.mxu0 %v912
    %924 = vmatprep.subr.mxu0 0.0
    %925 = vmatpush1.msra.mxu0 %v913
    %926 = vmatprep.subr.mxu0 0.0
    %927 = vmatpush1.msra.mxu0 %v914
    %928 = vmatprep.subr.mxu0 0.0
    %929 = vmatpush1.msra.mxu0 0.0
    %930 = vmatprep.subr.mxu0 0.0
    %931 = vmatpush1.msra.mxu0 0.0
    %932 = vmatprep.subr.mxu0 0.0
    %933 = vmatpush1.msra.mxu0 0.0
    %934 = vmatprep.subr.mxu0 0.0
    %935 = vmatpush1.msra.mxu0 0.0
    %936 = vmatprep.subr.mxu0 0.0
    %937 = vmatpush1.msra.mxu0 0.0
    %938 = vmatprep.subr.mxu0 0.0
    %939 = vmatpush1.msra.mxu0 0.0
    %940 = vmatprep.subr.mxu0 0.0
    %941 = vmatpush1.msra.mxu0 0.0
    %942 = vmatprep.subr.mxu0 0.0
    %943 = vmatpush1.msra.mxu0 0.0
    %944 = vmatprep.subr.mxu0 0.0
    %945 = vmatpush1.msra.mxu0 0.0
    %946 = vmatprep.subr.mxu0 0.0
    %947 = vmatpush1.msra.mxu0 0.0
    %948 = vmatprep.subr.mxu0 0.0
    %949 = vmatpush1.msra.mxu0 0.0
    %950 = vmatprep.subr.mxu0 0.0
    %951 = vmatpush1.msra.mxu0 0.0
    %952 = vmatprep.subr.mxu0 0.0
    %953 = vmatpush1.msra.mxu0 0.0
    %954 = vmatprep.subr.mxu0 0.0
    %955 = vmatpush1.msra.mxu0 0.0
    %956 = vmatprep.subr.mxu0 0.0
    %957 = vmatpush1.msra.mxu0 0.0
    %958 = vmatprep.subr.mxu0 0.0
    %959 = vmatpush1.msra.mxu0 0.0
    %960 = vmatprep.subr.mxu0 0.0
    %961 = vmatpush1.msra.mxu0 0.0
    %962 = vmatprep.subr.mxu0 0.0
    %963 = vmatpush1.msra.mxu0 0.0
    %964 = vmatprep.subr.mxu0 0.0
    %965 = vmatpush1.msra.mxu0 0.0
    %966 = vmatprep.subr.mxu0 0.0
    %967 = vmatpush1.msra.mxu0 0.0
    %968 = vmatprep.subr.mxu0 0.0
    %969 = vmatpush1.msra.mxu0 0.0
    %970 = vmatprep.subr.mxu0 0.0
    %971 = vmatpush1.msra.mxu0 0.0
    %972 = vmatprep.subr.mxu0 0.0
    %973 = vmatpush1.msra.mxu0 0.0
    %974 = vmatprep.subr.mxu0 0.0
    %975 = vmatpush1.msra.mxu0 0.0
    %976 = vmatprep.subr.mxu0 0.0
    %977 = vmatpush1.msra.mxu0 0.0
    %978 = vmatprep.subr.mxu0 0.0
    %979 = vmatpush1.msra.mxu0 0.0
    %980 = vmatprep.subr.mxu0 0.0
    %981 = vmatpush1.msra.mxu0 0.0
    %982 = vmatprep.subr.mxu0 0.0
    %983 = vmatpush1.msra.mxu0 0.0
    %984 = vmatprep.mubr.f32.mxu0 0.0
    %985 = vmatmul.mubr.f32.gmra.mrb[0].mxu0 %v77
    %v986 = vpop.f32.mrb[0].mxu0
    %v987 = vadd.f32 %v919, %v986
    %v988 = vpop.f32.mrb[0].mxu0
    %989 = vmatprep.mubr.f32.mxu0 0.0
    %990 = vmatmul.mubr.f32.gmra.mrb[0].mxu0 %v80
    %v991 = vpop.f32.mrb[0].mxu0
    %v992 = vadd.f32 %v919, %v991
    %v993 = vpop.f32.mrb[0].mxu0
    %994 = vdwg.mxu0
    %v996 = vsel %vm75, %v817, 0
    %v999 = vsel %vm75, %v902, 0
    %1001 = vmatprep.subr.mxu0 0.0
    %1002 = vmatpush1.xpose.msra.mxu0 %v999
    %1003 = vmatprep.subr.mxu0 0.0
    %1004 = vmatpush1.xpose.msra.mxu0 0.0
    %1005 = vmatprep.subr.mxu0 0.0
    %1006 = vmatpush1.xpose.msra.mxu0 0.0
    %1007 = vmatprep.subr.mxu0 0.0
    %1008 = vmatpush1.xpose.msra.mxu0 0.0
    %1009 = vmatprep.subr.mxu0 0.0
    %1010 = vmatpush1.xpose.msra.mxu0 0.0
    %1011 = vmatprep.subr.mxu0 0.0
    %1012 = vmatpush1.xpose.msra.mxu0 0.0
    %1013 = vmatprep.subr.mxu0 0.0
    %1014 = vmatpush1.xpose.msra.mxu0 0.0
    %1015 = vmatprep.subr.mxu0 0.0
    %1016 = vmatpush1.xpose.msra.mxu0 0.0
    %1017 = vmatprep.subr.mxu0 0.0
    %1018 = vmatpush1.xpose.msra.mxu0 0.0
    %1019 = vmatprep.subr.mxu0 0.0
    %1020 = vmatpush1.xpose.msra.mxu0 0.0
    %1021 = vmatprep.subr.mxu0 0.0
    %1022 = vmatpush1.xpose.msra.mxu0 0.0
    %1023 = vmatprep.subr.mxu0 0.0
    %1024 = vmatpush1.xpose.msra.mxu0 0.0
    %1025 = vmatprep.subr.mxu0 0.0
    %1026 = vmatpush1.xpose.msra.mxu0 0.0
    %1027 = vmatprep.subr.mxu0 0.0
    %1028 = vmatpush1.xpose.msra.mxu0 0.0
    %1029 = vmatprep.subr.mxu0 0.0
    %1030 = vmatpush1.xpose.msra.mxu0 0.0
    %1031 = vmatprep.subr.mxu0 0.0
    %1032 = vmatpush1.xpose.msra.mxu0 0.0
    %1033 = vmatprep.subr.mxu0 0.0
    %1034 = vmatpush1.xpose.msra.mxu0 0.0
    %1035 = vmatprep.subr.mxu0 0.0
    %1036 = vmatpush1.xpose.msra.mxu0 0.0
    %1037 = vmatprep.subr.mxu0 0.0
    %1038 = vmatpush1.xpose.msra.mxu0 0.0
    %1039 = vmatprep.subr.mxu0 0.0
    %1040 = vmatpush1.xpose.msra.mxu0 0.0
    %1041 = vmatprep.subr.mxu0 0.0
    %1042 = vmatpush1.xpose.msra.mxu0 0.0
    %1043 = vmatprep.subr.mxu0 0.0
    %1044 = vmatpush1.xpose.msra.mxu0 0.0
    %1045 = vmatprep.subr.mxu0 0.0
    %1046 = vmatpush1.xpose.msra.mxu0 0.0
    %1047 = vmatprep.subr.mxu0 0.0
    %1048 = vmatpush1.xpose.msra.mxu0 0.0
    %1049 = vmatprep.subr.mxu0 0.0
    %1050 = vmatpush1.xpose.msra.mxu0 0.0
    %1051 = vmatprep.subr.mxu0 0.0
    %1052 = vmatpush1.xpose.msra.mxu0 0.0
    %1053 = vmatprep.subr.mxu0 0.0
    %1054 = vmatpush1.xpose.msra.mxu0 0.0
    %1055 = vmatprep.subr.mxu0 0.0
    %1056 = vmatpush1.xpose.msra.mxu0 0.0
    %1057 = vmatprep.subr.mxu0 0.0
    %1058 = vmatpush1.xpose.msra.mxu0 0.0
    %1059 = vmatprep.subr.mxu0 0.0
    %1060 = vmatpush1.xpose.msra.mxu0 0.0
    %1061 = vmatprep.subr.mxu0 0.0
    %1062 = vmatpush1.xpose.msra.mxu0 0.0
    %1063 = vmatprep.subr.mxu0 0.0
    %1064 = vmatpush1.xpose.msra.mxu0 0.0
    %1065 = vmatprep.mubr.f32.mxu0 0.0
    %1066 = vmatmul.mubr.f32.gmra.mrb[0].mxu0 %v996
    %v1067 = vpop.f32.mrb[0].mxu0
    %v1068 = vadd.f32 0.0, %v1067
    %v1069 = vpop.f32.mrb[0].mxu0
    %1070 = vdwg.mxu0
    %v1072 = vsel %vm75, %v822, 0
    %v1075 = vsel %vm75, %v907, 0
    %1077 = vmatprep.subr.mxu0 0.0
    %1078 = vmatpush1.xpose.msra.mxu0 %v1075
    %1079 = vmatprep.subr.mxu0 0.0
    %1080 = vmatpush1.xpose.msra.mxu0 0.0
    %1081 = vmatprep.subr.mxu0 0.0
    %1082 = vmatpush1.xpose.msra.mxu0 0.0
    %1083 = vmatprep.subr.mxu0 0.0
    %1084 = vmatpush1.xpose.msra.mxu0 0.0
    %1085 = vmatprep.subr.mxu0 0.0
    %1086 = vmatpush1.xpose.msra.mxu0 0.0
    %1087 = vmatprep.subr.mxu0 0.0
    %1088 = vmatpush1.xpose.msra.mxu0 0.0
    %1089 = vmatprep.subr.mxu0 0.0
    %1090 = vmatpush1.xpose.msra.mxu0 0.0
    %1091 = vmatprep.subr.mxu0 0.0
    %1092 = vmatpush1.xpose.msra.mxu0 0.0
    %1093 = vmatprep.subr.mxu0 0.0
    %1094 = vmatpush1.xpose.msra.mxu0 0.0
    %1095 = vmatprep.subr.mxu0 0.0
    %1096 = vmatpush1.xpose.msra.mxu0 0.0
    %1097 = vmatprep.subr.mxu0 0.0
    %1098 = vmatpush1.xpose.msra.mxu0 0.0
    %1099 = vmatprep.subr.mxu0 0.0
    %1100 = vmatpush1.xpose.msra.mxu0 0.0
    %1101 = vmatprep.subr.mxu0 0.0
    %1102 = vmatpush1.xpose.msra.mxu0 0.0
    %1103 = vmatprep.subr.mxu0 0.0
    %1104 = vmatpush1.xpose.msra.mxu0 0.0
    %1105 = vmatprep.subr.mxu0 0.0
    %1106 = vmatpush1.xpose.msra.mxu0 0.0
    %1107 = vmatprep.subr.mxu0 0.0
    %1108 = vmatpush1.xpose.msra.mxu0 0.0
    %1109 = vmatprep.subr.mxu0 0.0
    %1110 = vmatpush1.xpose.msra.mxu0 0.0
    %1111 = vmatprep.subr.mxu0 0.0
    %1112 = vmatpush1.xpose.msra.mxu0 0.0
    %1113 = vmatprep.subr.mxu0 0.0
    %1114 = vmatpush1.xpose.msra.mxu0 0.0
    %1115 = vmatprep.subr.mxu0 0.0
    %1116 = vmatpush1.xpose.msra.mxu0 0.0
    %1117 = vmatprep.subr.mxu0 0.0
    %1118 = vmatpush1.xpose.msra.mxu0 0.0
    %1119 = vmatprep.subr.mxu0 0.0
    %1120 = vmatpush1.xpose.msra.mxu0 0.0
    %1121 = vmatprep.subr.mxu0 0.0
    %1122 = vmatpush1.xpose.msra.mxu0 0.0
    %1123 = vmatprep.subr.mxu0 0.0
    %1124 = vmatpush1.xpose.msra.mxu0 0.0
    %1125 = vmatprep.subr.mxu0 0.0
    %1126 = vmatpush1.xpose.msra.mxu0 0.0
    %1127 = vmatprep.subr.mxu0 0.0
    %1128 = vmatpush1.xpose.msra.mxu0 0.0
    %1129 = vmatprep.subr.mxu0 0.0
    %1130 = vmatpush1.xpose.msra.mxu0 0.0
    %1131 = vmatprep.subr.mxu0 0.0
    %1132 = vmatpush1.xpose.msra.mxu0 0.0
    %1133 = vmatprep.subr.mxu0 0.0
    %1134 = vmatpush1.xpose.msra.mxu0 0.0
    %1135 = vmatprep.subr.mxu0 0.0
    %1136 = vmatpush1.xpose.msra.mxu0 0.0
    %1137 = vmatprep.subr.mxu0 0.0
    %1138 = vmatpush1.xpose.msra.mxu0 0.0
    %1139 = vmatprep.subr.mxu0 0.0
    %1140 = vmatpush1.xpose.msra.mxu0 0.0
    %1141 = vmatprep.mubr.f32.mxu0 0.0
    %1142 = vmatmul.mubr.f32.gmra.mrb[0].mxu0 %v1072
    %v1143 = vpop.f32.mrb[0].mxu0
    %v1144 = vadd.f32 0.0, %v1143
    %v1145 = vpop.f32.mrb[0].mxu0
    %1146 = vdwg.mxu0
    %v1147 = vmul.f32 %v1068, 0.25
    %v1148 = vmul.f32 %v1144, 0.25
    %v1149 = vsel %vm481, %v1147, -inf
    %1150 = vmax.xlane.f32.xlu0 %v1149
    %v1151 = vpop.xlane.xlu0 %1150
    %v1152 = vsel %vm481, %v1148, -inf
    %1153 = vmax.xlane.f32.xlu0 %v1152
    %v1154 = vpop.xlane.xlu0 %1153
    %v1155 = vsub.f32 %v1147, %v1151
    %v1156 = vsub.f32 %v1148, %v1154
    %v1157 = vmul.f32 %v1155, 1.442695
    %v1158 = vpow.pop %v1157
    %v1159 = vmul.f32 %v1156, 1.442695
    %v1160 = vpow.pop %v1159
    %v1161 = vsel %vm481, %v1158, 0.0
    %1162 = vadd.xlane.f32.xlu0 %v1161
    %v1163 = vpop.xlane.xlu0 %1162
    %v1164 = vsel %vm481, %v1160, 0.0
    %1165 = vadd.xlane.f32.xlu0 %v1164
    %v1166 = vpop.xlane.xlu0 %1165
    %v1167 = vrcp.pop %v1163
    %v1168 = vrcp.pop %v1166
    %v1169 = vmul.f32 %v1158, %v1167
    %v1170 = vmul.f32 %v1160, %v1168
    %s1171 = scalar_lea.vmem %s4, 16
    %1172 = vst.msk [vmem:[%s1171] sm:$0xff] %vm481, %v1169
    %1173 = vst.msk [vmem:[%s1171 + $0x8] sm:$0xff] %vm481, %v1170
    %v1175 = vsel %vm481, %v1169, 0
    %1177 = vmatprep.subr.mxu0 0.0
    %1178 = vmatpush1.msra.mxu0 %v987
    %1179 = vmatprep.subr.mxu0 0.0
    %1180 = vmatpush1.msra.mxu0 0.0
    %1181 = vmatprep.subr.mxu0 0.0
    %1182 = vmatpush1.msra.mxu0 0.0
    %1183 = vmatprep.subr.mxu0 0.0
    %1184 = vmatpush1.msra.mxu0 0.0
    %1185 = vmatprep.subr.mxu0 0.0
    %1186 = vmatpush1.msra.mxu0 0.0
    %1187 = vmatprep.subr.mxu0 0.0
    %1188 = vmatpush1.msra.mxu0 0.0
    %1189 = vmatprep.subr.mxu0 0.0
    %1190 = vmatpush1.msra.mxu0 0.0
    %1191 = vmatprep.subr.mxu0 0.0
    %1192 = vmatpush1.msra.mxu0 0.0
    %1193 = vmatprep.subr.mxu0 0.0
    %1194 = vmatpush1.msra.mxu0 0.0
    %1195 = vmatprep.subr.mxu0 0.0
    %1196 = vmatpush1.msra.mxu0 0.0
    %1197 = vmatprep.subr.mxu0 0.0
    %1198 = vmatpush1.msra.mxu0 0.0
    %1199 = vmatprep.subr.mxu0 0.0
    %1200 = vmatpush1.msra.mxu0 0.0
    %1201 = vmatprep.subr.mxu0 0.0
    %1202 = vmatpush1.msra.mxu0 0.0
    %1203 = vmatprep.subr.mxu0 0.0
    %1204 = vmatpush1.msra.mxu0 0.0
    %1205 = vmatprep.subr.mxu0 0.0
    %1206 = vmatpush1.msra.mxu0 0.0
    %1207 = vmatprep.subr.mxu0 0.0
    %1208 = vmatpush1.msra.mxu0 0.0
    %1209 = vmatprep.subr.mxu0 0.0
    %1210 = vmatpush1.msra.mxu0 0.0
    %1211 = vmatprep.subr.mxu0 0.0
    %1212 = vmatpush1.msra.mxu0 0.0
    %1213 = vmatprep.subr.mxu0 0.0
    %1214 = vmatpush1.msra.mxu0 0.0
    %1215 = vmatprep.subr.mxu0 0.0
    %1216 = vmatpush1.msra.mxu0 0.0
    %1217 = vmatprep.subr.mxu0 0.0
    %1218 = vmatpush1.msra.mxu0 0.0
    %1219 = vmatprep.subr.mxu0 0.0
    %1220 = vmatpush1.msra.mxu0 0.0
    %1221 = vmatprep.subr.mxu0 0.0
    %1222 = vmatpush1.msra.mxu0 0.0
    %1223 = vmatprep.subr.mxu0 0.0
    %1224 = vmatpush1.msra.mxu0 0.0
    %1225 = vmatprep.subr.mxu0 0.0
    %1226 = vmatpush1.msra.mxu0 0.0
    %1227 = vmatprep.subr.mxu0 0.0
    %1228 = vmatpush1.msra.mxu0 0.0
    %1229 = vmatprep.subr.mxu0 0.0
    %1230 = vmatpush1.msra.mxu0 0.0
    %1231 = vmatprep.subr.mxu0 0.0
    %1232 = vmatpush1.msra.mxu0 0.0
    %1233 = vmatprep.subr.mxu0 0.0
    %1234 = vmatpush1.msra.mxu0 0.0
    %1235 = vmatprep.subr.mxu0 0.0
    %1236 = vmatpush1.msra.mxu0 0.0
    %1237 = vmatprep.subr.mxu0 0.0
    %1238 = vmatpush1.msra.mxu0 0.0
    %1239 = vmatprep.subr.mxu0 0.0
    %1240 = vmatpush1.msra.mxu0 0.0
    %1241 = vmatprep.mubr.f32.mxu0 0.0
    %1242 = vmatmul.mubr.f32.gmra.mrb[0].mxu0 %v1175
    %v1243 = vpop.f32.mrb[0].mxu0
    %v1244 = vadd.f32 0.0, %v1243
    %v1245 = vpop.f32.mrb[0].mxu0
    %1246 = vdwg.mxu0
    %v1248 = vsel %vm481, %v1170, 0
    %1250 = vmatprep.subr.mxu0 0.0
    %1251 = vmatpush1.msra.mxu0 %v992
    %1252 = vmatprep.subr.mxu0 0.0
    %1253 = vmatpush1.msra.mxu0 0.0
    %1254 = vmatprep.subr.mxu0 0.0
    %1255 = vmatpush1.msra.mxu0 0.0
    %1256 = vmatprep.subr.mxu0 0.0
    %1257 = vmatpush1.msra.mxu0 0.0
    %1258 = vmatprep.subr.mxu0 0.0
    %1259 = vmatpush1.msra.mxu0 0.0
    %1260 = vmatprep.subr.mxu0 0.0
    %1261 = vmatpush1.msra.mxu0 0.0
    %1262 = vmatprep.subr.mxu0 0.0
    %1263 = vmatpush1.msra.mxu0 0.0
    %1264 = vmatprep.subr.mxu0 0.0
    %1265 = vmatpush1.msra.mxu0 0.0
    %1266 = vmatprep.subr.mxu0 0.0
    %1267 = vmatpush1.msra.mxu0 0.0
    %1268 = vmatprep.subr.mxu0 0.0
    %1269 = vmatpush1.msra.mxu0 0.0
    %1270 = vmatprep.subr.mxu0 0.0
    %1271 = vmatpush1.msra.mxu0 0.0
    %1272 = vmatprep.subr.mxu0 0.0
    %1273 = vmatpush1.msra.mxu0 0.0
    %1274 = vmatprep.subr.mxu0 0.0
    %1275 = vmatpush1.msra.mxu0 0.0
    %1276 = vmatprep.subr.mxu0 0.0
    %1277 = vmatpush1.msra.mxu0 0.0
    %1278 = vmatprep.subr.mxu0 0.0
    %1279 = vmatpush1.msra.mxu0 0.0
    %1280 = vmatprep.subr.mxu0 0.0
    %1281 = vmatpush1.msra.mxu0 0.0
    %1282 = vmatprep.subr.mxu0 0.0
    %1283 = vmatpush1.msra.mxu0 0.0
    %1284 = vmatprep.subr.mxu0 0.0
    %1285 = vmatpush1.msra.mxu0 0.0
    %1286 = vmatprep.subr.mxu0 0.0
    %1287 = vmatpush1.msra.mxu0 0.0
    %1288 = vmatprep.subr.mxu0 0.0
    %1289 = vmatpush1.msra.mxu0 0.0
    %1290 = vmatprep.subr.mxu0 0.0
    %1291 = vmatpush1.msra.mxu0 0.0
    %1292 = vmatprep.subr.mxu0 0.0
    %1293 = vmatpush1.msra.mxu0 0.0
    %1294 = vmatprep.subr.mxu0 0.0
    %1295 = vmatpush1.msra.mxu0 0.0
    %1296 = vmatprep.subr.mxu0 0.0
    %1297 = vmatpush1.msra.mxu0 0.0
    %1298 = vmatprep.subr.mxu0 0.0
    %1299 = vmatpush1.msra.mxu0 0.0
    %1300 = vmatprep.subr.mxu0 0.0
    %1301 = vmatpush1.msra.mxu0 0.0
    %1302 = vmatprep.subr.mxu0 0.0
    %1303 = vmatpush1.msra.mxu0 0.0
    %1304 = vmatprep.subr.mxu0 0.0
    %1305 = vmatpush1.msra.mxu0 0.0
    %1306 = vmatprep.subr.mxu0 0.0
    %1307 = vmatpush1.msra.mxu0 0.0
    %1308 = vmatprep.subr.mxu0 0.0
    %1309 = vmatpush1.msra.mxu0 0.0
    %1310 = vmatprep.subr.mxu0 0.0
    %1311 = vmatpush1.msra.mxu0 0.0
    %1312 = vmatprep.subr.mxu0 0.0
    %1313 = vmatpush1.msra.mxu0 0.0
    %1314 = vmatprep.mubr.f32.mxu0 0.0
    %1315 = vmatmul.mubr.f32.gmra.mrb[0].mxu0 %v1248
    %v1316 = vpop.f32.mrb[0].mxu0
    %v1317 = vadd.f32 0.0, %v1316
    %v1318 = vpop.f32.mrb[0].mxu0
    %1319 = vdwg.mxu0
    %s1320 = scalar_lea.vmem [#allocation5], 224
    %v1321 = vld [vmem:[%s1320] sm:$0xff]
    %v1322 = vld [vmem:[%s1320 + $0x8] sm:$0xff]
    %v1323 = vld [vmem:[%s1320 + $0x10] sm:$0xff]
    %v1324 = vld [vmem:[%s1320 + $0x18] sm:$0xff]
    %v1326 = vsel %vm75, %v1244, 0
    %v1329 = vsel %vm75, %v1317, 0
    %1331 = vmatprep.subr.mxu0 0.0
    %1332 = vmatpush1.msra.mxu0 %v1321
    %1333 = vmatprep.subr.mxu0 0.0
    %1334 = vmatpush1.msra.mxu0 %v1322
    %1335 = vmatprep.subr.mxu0 0.0
    %1336 = vmatpush1.msra.mxu0 %v1323
    %1337 = vmatprep.subr.mxu0 0.0
    %1338 = vmatpush1.msra.mxu0 %v1324
    %1339 = vmatprep.subr.mxu0 0.0
    %1340 = vmatpush1.msra.mxu0 0.0
    %1341 = vmatprep.subr.mxu0 0.0
    %1342 = vmatpush1.msra.mxu0 0.0
    %1343 = vmatprep.subr.mxu0 0.0
    %1344 = vmatpush1.msra.mxu0 0.0
    %1345 = vmatprep.subr.mxu0 0.0
    %1346 = vmatpush1.msra.mxu0 0.0
    %1347 = vmatprep.subr.mxu0 0.0
    %1348 = vmatpush1.msra.mxu0 0.0
    %1349 = vmatprep.subr.mxu0 0.0
    %1350 = vmatpush1.msra.mxu0 0.0
    %1351 = vmatprep.subr.mxu0 0.0
    %1352 = vmatpush1.msra.mxu0 0.0
    %1353 = vmatprep.subr.mxu0 0.0
    %1354 = vmatpush1.msra.mxu0 0.0
    %1355 = vmatprep.subr.mxu0 0.0
    %1356 = vmatpush1.msra.mxu0 0.0
    %1357 = vmatprep.subr.mxu0 0.0
    %1358 = vmatpush1.msra.mxu0 0.0
    %1359 = vmatprep.subr.mxu0 0.0
    %1360 = vmatpush1.msra.mxu0 0.0
    %1361 = vmatprep.subr.mxu0 0.0
    %1362 = vmatpush1.msra.mxu0 0.0
    %1363 = vmatprep.subr.mxu0 0.0
    %1364 = vmatpush1.msra.mxu0 0.0
    %1365 = vmatprep.subr.mxu0 0.0
    %1366 = vmatpush1.msra.mxu0 0.0
    %1367 = vmatprep.subr.mxu0 0.0
    %1368 = vmatpush1.msra.mxu0 0.0
    %1369 = vmatprep.subr.mxu0 0.0
    %1370 = vmatpush1.msra.mxu0 0.0
    %1371 = vmatprep.subr.mxu0 0.0
    %1372 = vmatpush1.msra.mxu0 0.0
    %1373 = vmatprep.subr.mxu0 0.0
    %1374 = vmatpush1.msra.mxu0 0.0
    %1375 = vmatprep.subr.mxu0 0.0
    %1376 = vmatpush1.msra.mxu0 0.0
    %1377 = vmatprep.subr.mxu0 0.0
    %1378 = vmatpush1.msra.mxu0 0.0
    %1379 = vmatprep.subr.mxu0 0.0
    %1380 = vmatpush1.msra.mxu0 0.0
    %1381 = vmatprep.subr.mxu0 0.0
    %1382 = vmatpush1.msra.mxu0 0.0
    %1383 = vmatprep.subr.mxu0 0.0
    %1384 = vmatpush1.msra.mxu0 0.0
    %1385 = vmatprep.subr.mxu0 0.0
    %1386 = vmatpush1.msra.mxu0 0.0
    %1387 = vmatprep.subr.mxu0 0.0
    %1388 = vmatpush1.msra.mxu0 0.0
    %1389 = vmatprep.subr.mxu0 0.0
    %1390 = vmatpush1.msra.mxu0 0.0
    %1391 = vmatprep.subr.mxu0 0.0
    %1392 = vmatpush1.msra.mxu0 0.0
    %1393 = vmatprep.subr.mxu0 0.0
    %1394 = vmatpush1.msra.mxu0 0.0
    %1395 = vmatprep.mubr.f32.mxu0 0.0
    %1396 = vmatmul.mubr.f32.gmra.mrb[0].mxu0 %v1326
    %v1397 = vpop.f32.mrb[0].mxu0
    %v1398 = vadd.f32 0.0, %v1397
    %v1399 = vpop.f32.mrb[0].mxu0
    %1400 = vmatprep.mubr.f32.mxu0 0.0
    %1401 = vmatmul.mubr.f32.gmra.mrb[0].mxu0 %v1329
    %v1402 = vpop.f32.mrb[0].mxu0
    %v1403 = vadd.f32 0.0, %v1402
    %v1404 = vpop.f32.mrb[0].mxu0
    %1405 = vdwg.mxu0
    %v1406 = vadd.f32 %v738, %v1398
    %v1407 = vadd.f32 %v739, %v1403
    %v1408 = vadd.f32 %v1406, %v59
    %v1409 = vadd.f32 %v1407, %v60
    %v1410 = vsel %vm75, %v1408, 0.0
    %1411 = vadd.xlane.f32.xlu0 %v1410
    %v1412 = vpop.xlane.xlu0 %1411
    %v1413 = vsel %vm75, %v1409, 0.0
    %1414 = vadd.xlane.f32.xlu0 %v1413
    %v1415 = vpop.xlane.xlu0 %1414
    %v1416 = vmul.f32 %v1412, 0.03125
    %v1417 = vmul.f32 %v1415, 0.03125
    %v1418 = vmul.f32 %v1408, %v1408
    %v1419 = vmul.f32 %v1409, %v1409
    %v1420 = vsel %vm75, %v1418, 0.0
    %1421 = vadd.xlane.f32.xlu0 %v1420
    %v1422 = vpop.xlane.xlu0 %1421
    %v1423 = vsel %vm75, %v1419, 0.0
    %1424 = vadd.xlane.f32.xlu0 %v1423
    %v1425 = vpop.xlane.xlu0 %1424
    %v1426 = vmul.f32 %v1422, 0.03125
    %v1427 = vmul.f32 %v1425, 0.03125
    %v1428 = vmul.f32 %v1416, %v1416
    %v1429 = vmul.f32 %v1417, %v1417
    %v1430 = vsub.f32 %v1426, %v1428
    %v1431 = vsub.f32 %v1427, %v1429
    %v1432 = vsub.f32 %v1408, %v1416
    %v1433 = vsub.f32 %v1409, %v1417
    %v1434 = vadd.f32 %v1430, 1e-05
    %v1435 = vadd.f32 %v1431, 1e-05
    %v1436 = vrsqrt.pop %v1434
    %v1437 = vrsqrt.pop %v1435
    %v1438 = vmul.f32 %v1432, %v1436
    %v1439 = vmul.f32 %v1433, %v1437
    %v1440 = vld [vmem:[#allocation7 + $0xd] sm:$0x1]
    %v1441 = vlaneseq
    %v1442 = vshrl.u32 %v1441, 7
    %v1443 = vsub.s32 0, %v1442
    %v1444 = vrot.slane %v1440, %v1443
    %s1445 = scalar_lea.vmem [#allocation5], 256
    %v1446 = vld [vmem:[%s1445] sm:$0xff]
    %v1447 = vld [vmem:[%s1445 + $0x8] sm:$0xff]
    %v1448 = vld [vmem:[%s1445 + $0x10] sm:$0xff]
    %v1449 = vld [vmem:[%s1445 + $0x18] sm:$0xff]
    %v1450 = vld [vmem:[#allocation7 + $0x7] sm:$0x1]
    %v1451 = vlaneseq
    %v1452 = vshrl.u32 %v1451, 7
    %v1453 = vsub.s32 0, %v1452
    %v1454 = vrot.slane %v1450, %v1453
    %v1456 = vsel %vm75, %v1438, 0
    %v1459 = vsel %vm75, %v1439, 0
    %1461 = vmatprep.subr.mxu0 0.0
    %1462 = vmatpush1.msra.mxu0 %v1446
    %1463 = vmatprep.subr.mxu0 0.0
    %1464 = vmatpush1.msra.mxu0 %v1447
    %1465 = vmatprep.subr.mxu0 0.0
    %1466 = vmatpush1.msra.mxu0 %v1448
    %1467 = vmatprep.subr.mxu0 0.0
    %1468 = vmatpush1.msra.mxu0 %v1449
    %1469 = vmatprep.subr.mxu0 0.0
    %1470 = vmatpush1.msra.mxu0 0.0
    %1471 = vmatprep.subr.mxu0 0.0
    %1472 = vmatpush1.msra.mxu0 0.0
    %1473 = vmatprep.subr.mxu0 0.0
    %1474 = vmatpush1.msra.mxu0 0.0
    %1475 = vmatprep.subr.mxu0 0.0
    %1476 = vmatpush1.msra.mxu0 0.0
    %1477 = vmatprep.subr.mxu0 0.0
    %1478 = vmatpush1.msra.mxu0 0.0
    %1479 = vmatprep.subr.mxu0 0.0
    %1480 = vmatpush1.msra.mxu0 0.0
    %1481 = vmatprep.subr.mxu0 0.0
    %1482 = vmatpush1.msra.mxu0 0.0
    %1483 = vmatprep.subr.mxu0 0.0
    %1484 = vmatpush1.msra.mxu0 0.0
    %1485 = vmatprep.subr.mxu0 0.0
    %1486 = vmatpush1.msra.mxu0 0.0
    %1487 = vmatprep.subr.mxu0 0.0
    %1488 = vmatpush1.msra.mxu0 0.0
    %1489 = vmatprep.subr.mxu0 0.0
    %1490 = vmatpush1.msra.mxu0 0.0
    %1491 = vmatprep.subr.mxu0 0.0
    %1492 = vmatpush1.msra.mxu0 0.0
    %1493 = vmatprep.subr.mxu0 0.0
    %1494 = vmatpush1.msra.mxu0 0.0
    %1495 = vmatprep.subr.mxu0 0.0
    %1496 = vmatpush1.msra.mxu0 0.0
    %1497 = vmatprep.subr.mxu0 0.0
    %1498 = vmatpush1.msra.mxu0 0.0
    %1499 = vmatprep.subr.mxu0 0.0
    %1500 = vmatpush1.msra.mxu0 0.0
    %1501 = vmatprep.subr.mxu0 0.0
    %1502 = vmatpush1.msra.mxu0 0.0
    %1503 = vmatprep.subr.mxu0 0.0
    %1504 = vmatpush1.msra.mxu0 0.0
    %1505 = vmatprep.subr.mxu0 0.0
    %1506 = vmatpush1.msra.mxu0 0.0
    %1507 = vmatprep.subr.mxu0 0.0
    %1508 = vmatpush1.msra.mxu0 0.0
    %1509 = vmatprep.subr.mxu0 0.0
    %1510 = vmatpush1.msra.mxu0 0.0
    %1511 = vmatprep.subr.mxu0 0.0
    %1512 = vmatpush1.msra.mxu0 0.0
    %1513 = vmatprep.subr.mxu0 0.0
    %1514 = vmatpush1.msra.mxu0 0.0
    %1515 = vmatprep.subr.mxu0 0.0
    %1516 = vmatpush1.msra.mxu0 0.0
    %1517 = vmatprep.subr.mxu0 0.0
    %1518 = vmatpush1.msra.mxu0 0.0
    %1519 = vmatprep.subr.mxu0 0.0
    %1520 = vmatpush1.msra.mxu0 0.0
    %1521 = vmatprep.subr.mxu0 0.0
    %1522 = vmatpush1.msra.mxu0 0.0
    %1523 = vmatprep.subr.mxu0 0.0
    %1524 = vmatpush1.msra.mxu0 0.0
    %1525 = vmatprep.mubr.f32.mxu0 0.0
    %1526 = vmatmul.mubr.f32.gmra.mrb[0].mxu0 %v1456
    %v1527 = vpop.f32.mrb[0].mxu0
    %v1528 = vadd.f32 %v1454, %v1527
    %v1529 = vpop.f32.mrb[0].mxu0
    %1530 = vmatprep.mubr.f32.mxu0 0.0
    %1531 = vmatmul.mubr.f32.gmra.mrb[0].mxu0 %v1459
    %v1532 = vpop.f32.mrb[0].mxu0
    %v1533 = vadd.f32 %v1454, %v1532
    %v1534 = vpop.f32.mrb[0].mxu0
    %1535 = vdwg.mxu0
    %s1536 = scalar_lea.vmem [#allocation5], 320
    %v1537 = vld [vmem:[%s1536] sm:$0xff]
    %v1538 = vld [vmem:[%s1536 + $0x8] sm:$0xff]
    %v1539 = vld [vmem:[%s1536 + $0x10] sm:$0xff]
    %v1540 = vld [vmem:[%s1536 + $0x18] sm:$0xff]
    %v1541 = vld [vmem:[#allocation7 + $0x9] sm:$0x1]
    %v1542 = vlaneseq
    %v1543 = vshrl.u32 %v1542, 7
    %v1544 = vsub.s32 0, %v1543
    %v1545 = vrot.slane %v1541, %v1544
    %1546 = vmatprep.subr.mxu0 0.0
    %1547 = vmatpush1.msra.mxu0 %v1537
    %1548 = vmatprep.subr.mxu0 0.0
    %1549 = vmatpush1.msra.mxu0 %v1538
    %1550 = vmatprep.subr.mxu0 0.0
    %1551 = vmatpush1.msra.mxu0 %v1539
    %1552 = vmatprep.subr.mxu0 0.0
    %1553 = vmatpush1.msra.mxu0 %v1540
    %1554 = vmatprep.subr.mxu0 0.0
    %1555 = vmatpush1.msra.mxu0 0.0
    %1556 = vmatprep.subr.mxu0 0.0
    %1557 = vmatpush1.msra.mxu0 0.0
    %1558 = vmatprep.subr.mxu0 0.0
    %1559 = vmatpush1.msra.mxu0 0.0
    %1560 = vmatprep.subr.mxu0 0.0
    %1561 = vmatpush1.msra.mxu0 0.0
    %1562 = vmatprep.subr.mxu0 0.0
    %1563 = vmatpush1.msra.mxu0 0.0
    %1564 = vmatprep.subr.mxu0 0.0
    %1565 = vmatpush1.msra.mxu0 0.0
    %1566 = vmatprep.subr.mxu0 0.0
    %1567 = vmatpush1.msra.mxu0 0.0
    %1568 = vmatprep.subr.mxu0 0.0
    %1569 = vmatpush1.msra.mxu0 0.0
    %1570 = vmatprep.subr.mxu0 0.0
    %1571 = vmatpush1.msra.mxu0 0.0
    %1572 = vmatprep.subr.mxu0 0.0
    %1573 = vmatpush1.msra.mxu0 0.0
    %1574 = vmatprep.subr.mxu0 0.0
    %1575 = vmatpush1.msra.mxu0 0.0
    %1576 = vmatprep.subr.mxu0 0.0
    %1577 = vmatpush1.msra.mxu0 0.0
    %1578 = vmatprep.subr.mxu0 0.0
    %1579 = vmatpush1.msra.mxu0 0.0
    %1580 = vmatprep.subr.mxu0 0.0
    %1581 = vmatpush1.msra.mxu0 0.0
    %1582 = vmatprep.subr.mxu0 0.0
    %1583 = vmatpush1.msra.mxu0 0.0
    %1584 = vmatprep.subr.mxu0 0.0
    %1585 = vmatpush1.msra.mxu0 0.0
    %1586 = vmatprep.subr.mxu0 0.0
    %1587 = vmatpush1.msra.mxu0 0.0
    %1588 = vmatprep.subr.mxu0 0.0
    %1589 = vmatpush1.msra.mxu0 0.0
    %1590 = vmatprep.subr.mxu0 0.0
    %1591 = vmatpush1.msra.mxu0 0.0
    %1592 = vmatprep.subr.mxu0 0.0
    %1593 = vmatpush1.msra.mxu0 0.0
    %1594 = vmatprep.subr.mxu0 0.0
    %1595 = vmatpush1.msra.mxu0 0.0
    %1596 = vmatprep.subr.mxu0 0.0
    %1597 = vmatpush1.msra.mxu0 0.0
    %1598 = vmatprep.subr.mxu0 0.0
    %1599 = vmatpush1.msra.mxu0 0.0
    %1600 = vmatprep.subr.mxu0 0.0
    %1601 = vmatpush1.msra.mxu0 0.0
    %1602 = vmatprep.subr.mxu0 0.0
    %1603 = vmatpush1.msra.mxu0 0.0
    %1604 = vmatprep.subr.mxu0 0.0
    %1605 = vmatpush1.msra.mxu0 0.0
    %1606 = vmatprep.subr.mxu0 0.0
    %1607 = vmatpush1.msra.mxu0 0.0
    %1608 = vmatprep.subr.mxu0 0.0
    %1609 = vmatpush1.msra.mxu0 0.0
    %1610 = vmatprep.mubr.f32.mxu0 0.0
    %1611 = vmatmul.mubr.f32.gmra.mrb[0].mxu0 %v1456
    %v1612 = vpop.f32.mrb[0].mxu0
    %v1613 = vadd.f32 %v1545, %v1612
    %v1614 = vpop.f32.mrb[0].mxu0
    %1615 = vmatprep.mubr.f32.mxu0 0.0
    %1616 = vmatmul.mubr.f32.gmra.mrb[0].mxu0 %v1459
    %v1617 = vpop.f32.mrb[0].mxu0
    %v1618 = vadd.f32 %v1545, %v1617
    %v1619 = vpop.f32.mrb[0].mxu0
    %1620 = vdwg.mxu0
    %s1621 = scalar_lea.vmem [#allocation5], 384
    %v1622 = vld [vmem:[%s1621] sm:$0xff]
    %v1623 = vld [vmem:[%s1621 + $0x8] sm:$0xff]
    %v1624 = vld [vmem:[%s1621 + $0x10] sm:$0xff]
    %v1625 = vld [vmem:[%s1621 + $0x18] sm:$0xff]
    %v1626 = vld [vmem:[#allocation7 + $0xb] sm:$0x1]
    %v1627 = vlaneseq
    %v1628 = vshrl.u32 %v1627, 7
    %v1629 = vsub.s32 0, %v1628
    %v1630 = vrot.slane %v1626, %v1629
    %1631 = vmatprep.subr.mxu0 0.0
    %1632 = vmatpush1.msra.mxu0 %v1622
    %1633 = vmatprep.subr.mxu0 0.0
    %1634 = vmatpush1.msra.mxu0 %v1623
    %1635 = vmatprep.subr.mxu0 0.0
    %1636 = vmatpush1.msra.mxu0 %v1624
    %1637 = vmatprep.subr.mxu0 0.0
    %1638 = vmatpush1.msra.mxu0 %v1625
    %1639 = vmatprep.subr.mxu0 0.0
    %1640 = vmatpush1.msra.mxu0 0.0
    %1641 = vmatprep.subr.mxu0 0.0
    %1642 = vmatpush1.msra.mxu0 0.0
    %1643 = vmatprep.subr.mxu0 0.0
    %1644 = vmatpush1.msra.mxu0 0.0
    %1645 = vmatprep.subr.mxu0 0.0
    %1646 = vmatpush1.msra.mxu0 0.0
    %1647 = vmatprep.subr.mxu0 0.0
    %1648 = vmatpush1.msra.mxu0 0.0
    %1649 = vmatprep.subr.mxu0 0.0
    %1650 = vmatpush1.msra.mxu0 0.0
    %1651 = vmatprep.subr.mxu0 0.0
    %1652 = vmatpush1.msra.mxu0 0.0
    %1653 = vmatprep.subr.mxu0 0.0
    %1654 = vmatpush1.msra.mxu0 0.0
    %1655 = vmatprep.subr.mxu0 0.0
    %1656 = vmatpush1.msra.mxu0 0.0
    %1657 = vmatprep.subr.mxu0 0.0
    %1658 = vmatpush1.msra.mxu0 0.0
    %1659 = vmatprep.subr.mxu0 0.0
    %1660 = vmatpush1.msra.mxu0 0.0
    %1661 = vmatprep.subr.mxu0 0.0
    %1662 = vmatpush1.msra.mxu0 0.0
    %1663 = vmatprep.subr.mxu0 0.0
    %1664 = vmatpush1.msra.mxu0 0.0
    %1665 = vmatprep.subr.mxu0 0.0
    %1666 = vmatpush1.msra.mxu0 0.0
    %1667 = vmatprep.subr.mxu0 0.0
    %1668 = vmatpush1.msra.mxu0 0.0
    %1669 = vmatprep.subr.mxu0 0.0
    %1670 = vmatpush1.msra.mxu0 0.0
    %1671 = vmatprep.subr.mxu0 0.0
    %1672 = vmatpush1.msra.mxu0 0.0
    %1673 = vmatprep.subr.mxu0 0.0
    %1674 = vmatpush1.msra.mxu0 0.0
    %1675 = vmatprep.subr.mxu0 0.0
    %1676 = vmatpush1.msra.mxu0 0.0
    %1677 = vmatprep.subr.mxu0 0.0
    %1678 = vmatpush1.msra.mxu0 0.0
    %1679 = vmatprep.subr.mxu0 0.0
    %1680 = vmatpush1.msra.mxu0 0.0
    %1681 = vmatprep.subr.mxu0 0.0
    %1682 = vmatpush1.msra.mxu0 0.0
    %1683 = vmatprep.subr.mxu0 0.0
    %1684 = vmatpush1.msra.mxu0 0.0
    %1685 = vmatprep.subr.mxu0 0.0
    %1686 = vmatpush1.msra.mxu0 0.0
    %1687 = vmatprep.subr.mxu0 0.0
    %1688 = vmatpush1.msra.mxu0 0.0
    %1689 = vmatprep.subr.mxu0 0.0
    %1690 = vmatpush1.msra.mxu0 0.0
    %1691 = vmatprep.subr.mxu0 0.0
    %1692 = vmatpush1.msra.mxu0 0.0
    %1693 = vmatprep.subr.mxu0 0.0
    %1694 = vmatpush1.msra.mxu0 0.0
    %1695 = vmatprep.mubr.f32.mxu0 0.0
    %1696 = vmatmul.mubr.f32.gmra.mrb[0].mxu0 %v1456
    %v1697 = vpop.f32.mrb[0].mxu0
    %v1698 = vadd.f32 %v1630, %v1697
    %v1699 = vpop.f32.mrb[0].mxu0
    %1700 = vmatprep.mubr.f32.mxu0 0.0
    %1701 = vmatmul.mubr.f32.gmra.mrb[0].mxu0 %v1459
    %v1702 = vpop.f32.mrb[0].mxu0
    %v1703 = vadd.f32 %v1630, %v1702
    %v1704 = vpop.f32.mrb[0].mxu0
    %1705 = vdwg.mxu0
    %v1707 = vsel %vm75, %v1528, 0
    %v1710 = vsel %vm75, %v1613, 0
    %1712 = vmatprep.subr.mxu0 0.0
    %1713 = vmatpush1.xpose.msra.mxu0 %v1710
    %1714 = vmatprep.subr.mxu0 0.0
    %1715 = vmatpush1.xpose.msra.mxu0 0.0
    %1716 = vmatprep.subr.mxu0 0.0
    %1717 = vmatpush1.xpose.msra.mxu0 0.0
    %1718 = vmatprep.subr.mxu0 0.0
    %1719 = vmatpush1.xpose.msra.mxu0 0.0
    %1720 = vmatprep.subr.mxu0 0.0
    %1721 = vmatpush1.xpose.msra.mxu0 0.0
    %1722 = vmatprep.subr.mxu0 0.0
    %1723 = vmatpush1.xpose.msra.mxu0 0.0
    %1724 = vmatprep.subr.mxu0 0.0
    %1725 = vmatpush1.xpose.msra.mxu0 0.0
    %1726 = vmatprep.subr.mxu0 0.0
    %1727 = vmatpush1.xpose.msra.mxu0 0.0
    %1728 = vmatprep.subr.mxu0 0.0
    %1729 = vmatpush1.xpose.msra.mxu0 0.0
    %1730 = vmatprep.subr.mxu0 0.0
    %1731 = vmatpush1.xpose.msra.mxu0 0.0
    %1732 = vmatprep.subr.mxu0 0.0
    %1733 = vmatpush1.xpose.msra.mxu0 0.0
    %1734 = vmatprep.subr.mxu0 0.0
    %1735 = vmatpush1.xpose.msra.mxu0 0.0
    %1736 = vmatprep.subr.mxu0 0.0
    %1737 = vmatpush1.xpose.msra.mxu0 0.0
    %1738 = vmatprep.subr.mxu0 0.0
    %1739 = vmatpush1.xpose.msra.mxu0 0.0
    %1740 = vmatprep.subr.mxu0 0.0
    %1741 = vmatpush1.xpose.msra.mxu0 0.0
    %1742 = vmatprep.subr.mxu0 0.0
    %1743 = vmatpush1.xpose.msra.mxu0 0.0
    %1744 = vmatprep.subr.mxu0 0.0
    %1745 = vmatpush1.xpose.msra.mxu0 0.0
    %1746 = vmatprep.subr.mxu0 0.0
    %1747 = vmatpush1.xpose.msra.mxu0 0.0
    %1748 = vmatprep.subr.mxu0 0.0
    %1749 = vmatpush1.xpose.msra.mxu0 0.0
    %1750 = vmatprep.subr.mxu0 0.0
    %1751 = vmatpush1.xpose.msra.mxu0 0.0
    %1752 = vmatprep.subr.mxu0 0.0
    %1753 = vmatpush1.xpose.msra.mxu0 0.0
    %1754 = vmatprep.subr.mxu0 0.0
    %1755 = vmatpush1.xpose.msra.mxu0 0.0
    %1756 = vmatprep.subr.mxu0 0.0
    %1757 = vmatpush1.xpose.msra.mxu0 0.0
    %1758 = vmatprep.subr.mxu0 0.0
    %1759 = vmatpush1.xpose.msra.mxu0 0.0
    %1760 = vmatprep.subr.mxu0 0.0
    %1761 = vmatpush1.xpose.msra.mxu0 0.0
    %1762 = vmatprep.subr.mxu0 0.0
    %1763 = vmatpush1.xpose.msra.mxu0 0.0
    %1764 = vmatprep.subr.mxu0 0.0
    %1765 = vmatpush1.xpose.msra.mxu0 0.0
    %1766 = vmatprep.subr.mxu0 0.0
    %1767 = vmatpush1.xpose.msra.mxu0 0.0
    %1768 = vmatprep.subr.mxu0 0.0
    %1769 = vmatpush1.xpose.msra.mxu0 0.0
    %1770 = vmatprep.subr.mxu0 0.0
    %1771 = vmatpush1.xpose.msra.mxu0 0.0
    %1772 = vmatprep.subr.mxu0 0.0
    %1773 = vmatpush1.xpose.msra.mxu0 0.0
    %1774 = vmatprep.subr.mxu0 0.0
    %1775 = vmatpush1.xpose.msra.mxu0 0.0
    %1776 = vmatprep.mubr.f32.mxu0 0.0
    %1777 = vmatmul.mubr.f32.gmra.mrb[0].mxu0 %v1707
    %v1778 = vpop.f32.mrb[0].mxu0
    %v1779 = vadd.f32 0.0, %v1778
    %v1780 = vpop.f32.mrb[0].mxu0
    %1781 = vdwg.mxu0
    %v1783 = vsel %vm75, %v1533, 0
    %v1786 = vsel %vm75, %v1618, 0
    %1788 = vmatprep.subr.mxu0 0.0
    %1789 = vmatpush1.xpose.msra.mxu0 %v1786
    %1790 = vmatprep.subr.mxu0 0.0
    %1791 = vmatpush1.xpose.msra.mxu0 0.0
    %1792 = vmatprep.subr.mxu0 0.0
    %1793 = vmatpush1.xpose.msra.mxu0 0.0
    %1794 = vmatprep.subr.mxu0 0.0
    %1795 = vmatpush1.xpose.msra.mxu0 0.0
    %1796 = vmatprep.subr.mxu0 0.0
    %1797 = vmatpush1.xpose.msra.mxu0 0.0
    %1798 = vmatprep.subr.mxu0 0.0
    %1799 = vmatpush1.xpose.msra.mxu0 0.0
    %1800 = vmatprep.subr.mxu0 0.0
    %1801 = vmatpush1.xpose.msra.mxu0 0.0
    %1802 = vmatprep.subr.mxu0 0.0
    %1803 = vmatpush1.xpose.msra.mxu0 0.0
    %1804 = vmatprep.subr.mxu0 0.0
    %1805 = vmatpush1.xpose.msra.mxu0 0.0
    %1806 = vmatprep.subr.mxu0 0.0
    %1807 = vmatpush1.xpose.msra.mxu0 0.0
    %1808 = vmatprep.subr.mxu0 0.0
    %1809 = vmatpush1.xpose.msra.mxu0 0.0
    %1810 = vmatprep.subr.mxu0 0.0
    %1811 = vmatpush1.xpose.msra.mxu0 0.0
    %1812 = vmatprep.subr.mxu0 0.0
    %1813 = vmatpush1.xpose.msra.mxu0 0.0
    %1814 = vmatprep.subr.mxu0 0.0
    %1815 = vmatpush1.xpose.msra.mxu0 0.0
    %1816 = vmatprep.subr.mxu0 0.0
    %1817 = vmatpush1.xpose.msra.mxu0 0.0
    %1818 = vmatprep.subr.mxu0 0.0
    %1819 = vmatpush1.xpose.msra.mxu0 0.0
    %1820 = vmatprep.subr.mxu0 0.0
    %1821 = vmatpush1.xpose.msra.mxu0 0.0
    %1822 = vmatprep.subr.mxu0 0.0
    %1823 = vmatpush1.xpose.msra.mxu0 0.0
    %1824 = vmatprep.subr.mxu0 0.0
    %1825 = vmatpush1.xpose.msra.mxu0 0.0
    %1826 = vmatprep.subr.mxu0 0.0
    %1827 = vmatpush1.xpose.msra.mxu0 0.0
    %1828 = vmatprep.subr.mxu0 0.0
    %1829 = vmatpush1.xpose.msra.mxu0 0.0
    %1830 = vmatprep.subr.mxu0 0.0
    %1831 = vmatpush1.xpose.msra.mxu0 0.0
    %1832 = vmatprep.subr.mxu0 0.0
    %1833 = vmatpush1.xpose.msra.mxu0 0.0
    %1834 = vmatprep.subr.mxu0 0.0
    %1835 = vmatpush1.xpose.msra.mxu0 0.0
    %1836 = vmatprep.subr.mxu0 0.0
    %1837 = vmatpush1.xpose.msra.mxu0 0.0
    %1838 = vmatprep.subr.mxu0 0.0
    %1839 = vmatpush1.xpose.msra.mxu0 0.0
    %1840 = vmatprep.subr.mxu0 0.0
    %1841 = vmatpush1.xpose.msra.mxu0 0.0
    %1842 = vmatprep.subr.mxu0 0.0
    %1843 = vmatpush1.xpose.msra.mxu0 0.0
    %1844 = vmatprep.subr.mxu0 0.0
    %1845 = vmatpush1.xpose.msra.mxu0 0.0
    %1846 = vmatprep.subr.mxu0 0.0
    %1847 = vmatpush1.xpose.msra.mxu0 0.0
    %1848 = vmatprep.subr.mxu0 0.0
    %1849 = vmatpush1.xpose.msra.mxu0 0.0
    %1850 = vmatprep.subr.mxu0 0.0
    %1851 = vmatpush1.xpose.msra.mxu0 0.0
    %1852 = vmatprep.mubr.f32.mxu0 0.0
    %1853 = vmatmul.mubr.f32.gmra.mrb[0].mxu0 %v1783
    %v1854 = vpop.f32.mrb[0].mxu0
    %v1855 = vadd.f32 0.0, %v1854
    %v1856 = vpop.f32.mrb[0].mxu0
    %1857 = vdwg.mxu0
    %v1858 = vmul.f32 %v1779, 0.25
    %v1859 = vmul.f32 %v1855, 0.25
    %v1860 = vsel %vm481, %v1858, -inf
    %1861 = vmax.xlane.f32.xlu0 %v1860
    %v1862 = vpop.xlane.xlu0 %1861
    %v1863 = vsel %vm481, %v1859, -inf
    %1864 = vmax.xlane.f32.xlu0 %v1863
    %v1865 = vpop.xlane.xlu0 %1864
    %v1866 = vsub.f32 %v1858, %v1862
    %v1867 = vsub.f32 %v1859, %v1865
    %v1868 = vmul.f32 %v1866, 1.442695
    %v1869 = vpow.pop %v1868
    %v1870 = vmul.f32 %v1867, 1.442695
    %v1871 = vpow.pop %v1870
    %v1872 = vsel %vm481, %v1869, 0.0
    %1873 = vadd.xlane.f32.xlu0 %v1872
    %v1874 = vpop.xlane.xlu0 %1873
    %v1875 = vsel %vm481, %v1871, 0.0
    %1876 = vadd.xlane.f32.xlu0 %v1875
    %v1877 = vpop.xlane.xlu0 %1876
    %v1878 = vrcp.pop %v1874
    %v1879 = vrcp.pop %v1877
    %v1880 = vmul.f32 %v1869, %v1878
    %v1881 = vmul.f32 %v1871, %v1879
    %1882 = vst.msk [vmem:[%s5] sm:$0xff] %vm481, %v1880
    %1883 = vst.msk [vmem:[%s5 + $0x8] sm:$0xff] %vm481, %v1881
    %v1885 = vsel %vm481, %v1880, 0
    %1887 = vmatprep.subr.mxu0 0.0
    %1888 = vmatpush1.msra.mxu0 %v1698
    %1889 = vmatprep.subr.mxu0 0.0
    %1890 = vmatpush1.msra.mxu0 0.0
    %1891 = vmatprep.subr.mxu0 0.0
    %1892 = vmatpush1.msra.mxu0 0.0
    %1893 = vmatprep.subr.mxu0 0.0
    %1894 = vmatpush1.msra.mxu0 0.0
    %1895 = vmatprep.subr.mxu0 0.0
    %1896 = vmatpush1.msra.mxu0 0.0
    %1897 = vmatprep.subr.mxu0 0.0
    %1898 = vmatpush1.msra.mxu0 0.0
    %1899 = vmatprep.subr.mxu0 0.0
    %1900 = vmatpush1.msra.mxu0 0.0
    %1901 = vmatprep.subr.mxu0 0.0
    %1902 = vmatpush1.msra.mxu0 0.0
    %1903 = vmatprep.subr.mxu0 0.0
    %1904 = vmatpush1.msra.mxu0 0.0
    %1905 = vmatprep.subr.mxu0 0.0
    %1906 = vmatpush1.msra.mxu0 0.0
    %1907 = vmatprep.subr.mxu0 0.0
    %1908 = vmatpush1.msra.mxu0 0.0
    %1909 = vmatprep.subr.mxu0 0.0
    %1910 = vmatpush1.msra.mxu0 0.0
    %1911 = vmatprep.subr.mxu0 0.0
    %1912 = vmatpush1.msra.mxu0 0.0
    %1913 = vmatprep.subr.mxu0 0.0
    %1914 = vmatpush1.msra.mxu0 0.0
    %1915 = vmatprep.subr.mxu0 0.0
    %1916 = vmatpush1.msra.mxu0 0.0
    %1917 = vmatprep.subr.mxu0 0.0
    %1918 = vmatpush1.msra.mxu0 0.0
    %1919 = vmatprep.subr.mxu0 0.0
    %1920 = vmatpush1.msra.mxu0 0.0
    %1921 = vmatprep.subr.mxu0 0.0
    %1922 = vmatpush1.msra.mxu0 0.0
    %1923 = vmatprep.subr.mxu0 0.0
    %1924 = vmatpush1.msra.mxu0 0.0
    %1925 = vmatprep.subr.mxu0 0.0
    %1926 = vmatpush1.msra.mxu0 0.0
    %1927 = vmatprep.subr.mxu0 0.0
    %1928 = vmatpush1.msra.mxu0 0.0
    %1929 = vmatprep.subr.mxu0 0.0
    %1930 = vmatpush1.msra.mxu0 0.0
    %1931 = vmatprep.subr.mxu0 0.0
    %1932 = vmatpush1.msra.mxu0 0.0
    %1933 = vmatprep.subr.mxu0 0.0
    %1934 = vmatpush1.msra.mxu0 0.0
    %1935 = vmatprep.subr.mxu0 0.0
    %1936 = vmatpush1.msra.mxu0 0.0
    %1937 = vmatprep.subr.mxu0 0.0
    %1938 = vmatpush1.msra.mxu0 0.0
    %1939 = vmatprep.subr.mxu0 0.0
    %1940 = vmatpush1.msra.mxu0 0.0
    %1941 = vmatprep.subr.mxu0 0.0
    %1942 = vmatpush1.msra.mxu0 0.0
    %1943 = vmatprep.subr.mxu0 0.0
    %1944 = vmatpush1.msra.mxu0 0.0
    %1945 = vmatprep.subr.mxu0 0.0
    %1946 = vmatpush1.msra.mxu0 0.0
    %1947 = vmatprep.subr.mxu0 0.0
    %1948 = vmatpush1.msra.mxu0 0.0
    %1949 = vmatprep.subr.mxu0 0.0
    %1950 = vmatpush1.msra.mxu0 0.0
    %1951 = vmatprep.mubr.f32.mxu0 0.0
    %1952 = vmatmul.mubr.f32.gmra.mrb[0].mxu0 %v1885
    %v1953 = vpop.f32.mrb[0].mxu0
    %v1954 = vadd.f32 0.0, %v1953
    %v1955 = vpop.f32.mrb[0].mxu0
    %1956 = vdwg.mxu0
    %v1958 = vsel %vm481, %v1881, 0
    %1960 = vmatprep.subr.mxu0 0.0
    %1961 = vmatpush1.msra.mxu0 %v1703
    %1962 = vmatprep.subr.mxu0 0.0
    %1963 = vmatpush1.msra.mxu0 0.0
    %1964 = vmatprep.subr.mxu0 0.0
    %1965 = vmatpush1.msra.mxu0 0.0
    %1966 = vmatprep.subr.mxu0 0.0
    %1967 = vmatpush1.msra.mxu0 0.0
    %1968 = vmatprep.subr.mxu0 0.0
    %1969 = vmatpush1.msra.mxu0 0.0
    %1970 = vmatprep.subr.mxu0 0.0
    %1971 = vmatpush1.msra.mxu0 0.0
    %1972 = vmatprep.subr.mxu0 0.0
    %1973 = vmatpush1.msra.mxu0 0.0
    %1974 = vmatprep.subr.mxu0 0.0
    %1975 = vmatpush1.msra.mxu0 0.0
    %1976 = vmatprep.subr.mxu0 0.0
    %1977 = vmatpush1.msra.mxu0 0.0
    %1978 = vmatprep.subr.mxu0 0.0
    %1979 = vmatpush1.msra.mxu0 0.0
    %1980 = vmatprep.subr.mxu0 0.0
    %1981 = vmatpush1.msra.mxu0 0.0
    %1982 = vmatprep.subr.mxu0 0.0
    %1983 = vmatpush1.msra.mxu0 0.0
    %1984 = vmatprep.subr.mxu0 0.0
    %1985 = vmatpush1.msra.mxu0 0.0
    %1986 = vmatprep.subr.mxu0 0.0
    %1987 = vmatpush1.msra.mxu0 0.0
    %1988 = vmatprep.subr.mxu0 0.0
    %1989 = vmatpush1.msra.mxu0 0.0
    %1990 = vmatprep.subr.mxu0 0.0
    %1991 = vmatpush1.msra.mxu0 0.0
    %1992 = vmatprep.subr.mxu0 0.0
    %1993 = vmatpush1.msra.mxu0 0.0
    %1994 = vmatprep.subr.mxu0 0.0
    %1995 = vmatpush1.msra.mxu0 0.0
    %1996 = vmatprep.subr.mxu0 0.0
    %1997 = vmatpush1.msra.mxu0 0.0
    %1998 = vmatprep.subr.mxu0 0.0
    %1999 = vmatpush1.msra.mxu0 0.0
    %2000 = vmatprep.subr.mxu0 0.0
    %2001 = vmatpush1.msra.mxu0 0.0
    %2002 = vmatprep.subr.mxu0 0.0
    %2003 = vmatpush1.msra.mxu0 0.0
    %2004 = vmatprep.subr.mxu0 0.0
    %2005 = vmatpush1.msra.mxu0 0.0
    %2006 = vmatprep.subr.mxu0 0.0
    %2007 = vmatpush1.msra.mxu0 0.0
    %2008 = vmatprep.subr.mxu0 0.0
    %2009 = vmatpush1.msra.mxu0 0.0
    %2010 = vmatprep.subr.mxu0 0.0
    %2011 = vmatpush1.msra.mxu0 0.0
    %2012 = vmatprep.subr.mxu0 0.0
    %2013 = vmatpush1.msra.mxu0 0.0
    %2014 = vmatprep.subr.mxu0 0.0
    %2015 = vmatpush1.msra.mxu0 0.0
    %2016 = vmatprep.subr.mxu0 0.0
    %2017 = vmatpush1.msra.mxu0 0.0
    %2018 = vmatprep.subr.mxu0 0.0
    %2019 = vmatpush1.msra.mxu0 0.0
    %2020 = vmatprep.subr.mxu0 0.0
    %2021 = vmatpush1.msra.mxu0 0.0
    %2022 = vmatprep.subr.mxu0 0.0
    %2023 = vmatpush1.msra.mxu0 0.0
    %2024 = vmatprep.mubr.f32.mxu0 0.0
    %2025 = vmatmul.mubr.f32.gmra.mrb[0].mxu0 %v1958
    %v2026 = vpop.f32.mrb[0].mxu0
    %v2027 = vadd.f32 0.0, %v2026
    %v2028 = vpop.f32.mrb[0].mxu0
    %2029 = vdwg.mxu0
    %s2030 = scalar_lea.vmem [#allocation5], 448
    %v2031 = vld [vmem:[%s2030] sm:$0xff]
    %v2032 = vld [vmem:[%s2030 + $0x8] sm:$0xff]
    %v2033 = vld [vmem:[%s2030 + $0x10] sm:$0xff]
    %v2034 = vld [vmem:[%s2030 + $0x18] sm:$0xff]
    %v2036 = vsel %vm75, %v1954, 0
    %v2039 = vsel %vm75, %v2027, 0
    %2041 = vmatprep.subr.mxu0 0.0
    %2042 = vmatpush1.msra.mxu0 %v2031
    %2043 = vmatprep.subr.mxu0 0.0
    %2044 = vmatpush1.msra.mxu0 %v2032
    %2045 = vmatprep.subr.mxu0 0.0
    %2046 = vmatpush1.msra.mxu0 %v2033
    %2047 = vmatprep.subr.mxu0 0.0
    %2048 = vmatpush1.msra.mxu0 %v2034
    %2049 = vmatprep.subr.mxu0 0.0
    %2050 = vmatpush1.msra.mxu0 0.0
    %2051 = vmatprep.subr.mxu0 0.0
    %2052 = vmatpush1.msra.mxu0 0.0
    %2053 = vmatprep.subr.mxu0 0.0
    %2054 = vmatpush1.msra.mxu0 0.0
    %2055 = vmatprep.subr.mxu0 0.0
    %2056 = vmatpush1.msra.mxu0 0.0
    %2057 = vmatprep.subr.mxu0 0.0
    %2058 = vmatpush1.msra.mxu0 0.0
    %2059 = vmatprep.subr.mxu0 0.0
    %2060 = vmatpush1.msra.mxu0 0.0
    %2061 = vmatprep.subr.mxu0 0.0
    %2062 = vmatpush1.msra.mxu0 0.0
    %2063 = vmatprep.subr.mxu0 0.0
    %2064 = vmatpush1.msra.mxu0 0.0
    %2065 = vmatprep.subr.mxu0 0.0
    %2066 = vmatpush1.msra.mxu0 0.0
    %2067 = vmatprep.subr.mxu0 0.0
    %2068 = vmatpush1.msra.mxu0 0.0
    %2069 = vmatprep.subr.mxu0 0.0
    %2070 = vmatpush1.msra.mxu0 0.0
    %2071 = vmatprep.subr.mxu0 0.0
    %2072 = vmatpush1.msra.mxu0 0.0
    %2073 = vmatprep.subr.mxu0 0.0
    %2074 = vmatpush1.msra.mxu0 0.0
    %2075 = vmatprep.subr.mxu0 0.0
    %2076 = vmatpush1.msra.mxu0 0.0
    %2077 = vmatprep.subr.mxu0 0.0
    %2078 = vmatpush1.msra.mxu0 0.0
    %2079 = vmatprep.subr.mxu0 0.0
    %2080 = vmatpush1.msra.mxu0 0.0
    %2081 = vmatprep.subr.mxu0 0.0
    %2082 = vmatpush1.msra.mxu0 0.0
    %2083 = vmatprep.subr.mxu0 0.0
    %2084 = vmatpush1.msra.mxu0 0.0
    %2085 = vmatprep.subr.mxu0 0.0
    %2086 = vmatpush1.msra.mxu0 0.0
    %2087 = vmatprep.subr.mxu0 0.0
    %2088 = vmatpush1.msra.mxu0 0.0
    %2089 = vmatprep.subr.mxu0 0.0
    %2090 = vmatpush1.msra.mxu0 0.0
    %2091 = vmatprep.subr.mxu0 0.0
    %2092 = vmatpush1.msra.mxu0 0.0
    %2093 = vmatprep.subr.mxu0 0.0
    %2094 = vmatpush1.msra.mxu0 0.0
    %2095 = vmatprep.subr.mxu0 0.0
    %2096 = vmatpush1.msra.mxu0 0.0
    %2097 = vmatprep.subr.mxu0 0.0
    %2098 = vmatpush1.msra.mxu0 0.0
    %2099 = vmatprep.subr.mxu0 0.0
    %2100 = vmatpush1.msra.mxu0 0.0
    %2101 = vmatprep.subr.mxu0 0.0
    %2102 = vmatpush1.msra.mxu0 0.0
    %2103 = vmatprep.subr.mxu0 0.0
    %2104 = vmatpush1.msra.mxu0 0.0
    %2105 = vmatprep.mubr.f32.mxu0 0.0
    %2106 = vmatmul.mubr.f32.gmra.mrb[0].mxu0 %v2036
    %v2107 = vpop.f32.mrb[0].mxu0
    %v2108 = vadd.f32 0.0, %v2107
    %v2109 = vpop.f32.mrb[0].mxu0
    %2110 = vmatprep.mubr.f32.mxu0 0.0
    %2111 = vmatmul.mubr.f32.gmra.mrb[0].mxu0 %v2039
    %v2112 = vpop.f32.mrb[0].mxu0
    %v2113 = vadd.f32 0.0, %v2112
    %v2114 = vpop.f32.mrb[0].mxu0
    %2115 = vdwg.mxu0
    %v2116 = vadd.f32 %v1444, %v2108
    %v2117 = vadd.f32 %v1444, %v2113
    %s2118 = scalar_lea.vmem [#allocation5], 288
    %v2119 = vld [vmem:[%s2118] sm:$0xff]
    %v2120 = vld [vmem:[%s2118 + $0x8] sm:$0xff]
    %v2121 = vld [vmem:[%s2118 + $0x10] sm:$0xff]
    %v2122 = vld [vmem:[%s2118 + $0x18] sm:$0xff]
    %v2123 = vld [vmem:[#allocation7 + $0x8] sm:$0x1]
    %v2124 = vlaneseq
    %v2125 = vshrl.u32 %v2124, 7
    %v2126 = vsub.s32 0, %v2125
    %v2127 = vrot.slane %v2123, %v2126
    %2128 = vmatprep.subr.mxu0 0.0
    %2129 = vmatpush1.msra.mxu0 %v2119
    %2130 = vmatprep.subr.mxu0 0.0
    %2131 = vmatpush1.msra.mxu0 %v2120
    %2132 = vmatprep.subr.mxu0 0.0
    %2133 = vmatpush1.msra.mxu0 %v2121
    %2134 = vmatprep.subr.mxu0 0.0
    %2135 = vmatpush1.msra.mxu0 %v2122
    %2136 = vmatprep.subr.mxu0 0.0
    %2137 = vmatpush1.msra.mxu0 0.0
    %2138 = vmatprep.subr.mxu0 0.0
    %2139 = vmatpush1.msra.mxu0 0.0
    %2140 = vmatprep.subr.mxu0 0.0
    %2141 = vmatpush1.msra.mxu0 0.0
    %2142 = vmatprep.subr.mxu0 0.0
    %2143 = vmatpush1.msra.mxu0 0.0
    %2144 = vmatprep.subr.mxu0 0.0
    %2145 = vmatpush1.msra.mxu0 0.0
    %2146 = vmatprep.subr.mxu0 0.0
    %2147 = vmatpush1.msra.mxu0 0.0
    %2148 = vmatprep.subr.mxu0 0.0
    %2149 = vmatpush1.msra.mxu0 0.0
    %2150 = vmatprep.subr.mxu0 0.0
    %2151 = vmatpush1.msra.mxu0 0.0
    %2152 = vmatprep.subr.mxu0 0.0
    %2153 = vmatpush1.msra.mxu0 0.0
    %2154 = vmatprep.subr.mxu0 0.0
    %2155 = vmatpush1.msra.mxu0 0.0
    %2156 = vmatprep.subr.mxu0 0.0
    %2157 = vmatpush1.msra.mxu0 0.0
    %2158 = vmatprep.subr.mxu0 0.0
    %2159 = vmatpush1.msra.mxu0 0.0
    %2160 = vmatprep.subr.mxu0 0.0
    %2161 = vmatpush1.msra.mxu0 0.0
    %2162 = vmatprep.subr.mxu0 0.0
    %2163 = vmatpush1.msra.mxu0 0.0
    %2164 = vmatprep.subr.mxu0 0.0
    %2165 = vmatpush1.msra.mxu0 0.0
    %2166 = vmatprep.subr.mxu0 0.0
    %2167 = vmatpush1.msra.mxu0 0.0
    %2168 = vmatprep.subr.mxu0 0.0
    %2169 = vmatpush1.msra.mxu0 0.0
    %2170 = vmatprep.subr.mxu0 0.0
    %2171 = vmatpush1.msra.mxu0 0.0
    %2172 = vmatprep.subr.mxu0 0.0
    %2173 = vmatpush1.msra.mxu0 0.0
    %2174 = vmatprep.subr.mxu0 0.0
    %2175 = vmatpush1.msra.mxu0 0.0
    %2176 = vmatprep.subr.mxu0 0.0
    %2177 = vmatpush1.msra.mxu0 0.0
    %2178 = vmatprep.subr.mxu0 0.0
    %2179 = vmatpush1.msra.mxu0 0.0
    %2180 = vmatprep.subr.mxu0 0.0
    %2181 = vmatpush1.msra.mxu0 0.0
    %2182 = vmatprep.subr.mxu0 0.0
    %2183 = vmatpush1.msra.mxu0 0.0
    %2184 = vmatprep.subr.mxu0 0.0
    %2185 = vmatpush1.msra.mxu0 0.0
    %2186 = vmatprep.subr.mxu0 0.0
    %2187 = vmatpush1.msra.mxu0 0.0
    %2188 = vmatprep.subr.mxu0 0.0
    %2189 = vmatpush1.msra.mxu0 0.0
    %2190 = vmatprep.subr.mxu0 0.0
    %2191 = vmatpush1.msra.mxu0 0.0
    %2192 = vmatprep.mubr.f32.mxu0 0.0
    %2193 = vmatmul.mubr.f32.gmra.mrb[0].mxu0 %v1456
    %v2194 = vpop.f32.mrb[0].mxu0
    %v2195 = vadd.f32 %v2127, %v2194
    %v2196 = vpop.f32.mrb[0].mxu0
    %2197 = vmatprep.mubr.f32.mxu0 0.0
    %2198 = vmatmul.mubr.f32.gmra.mrb[0].mxu0 %v1459
    %v2199 = vpop.f32.mrb[0].mxu0
    %v2200 = vadd.f32 %v2127, %v2199
    %v2201 = vpop.f32.mrb[0].mxu0
    %2202 = vdwg.mxu0
    %s2203 = scalar_lea.vmem [#allocation5], 352
    %v2204 = vld [vmem:[%s2203] sm:$0xff]
    %v2205 = vld [vmem:[%s2203 + $0x8] sm:$0xff]
    %v2206 = vld [vmem:[%s2203 + $0x10] sm:$0xff]
    %v2207 = vld [vmem:[%s2203 + $0x18] sm:$0xff]
    %v2208 = vld [vmem:[#allocation7 + $0xa] sm:$0x1]
    %v2209 = vlaneseq
    %v2210 = vshrl.u32 %v2209, 7
    %v2211 = vsub.s32 0, %v2210
    %v2212 = vrot.slane %v2208, %v2211
    %2213 = vmatprep.subr.mxu0 0.0
    %2214 = vmatpush1.msra.mxu0 %v2204
    %2215 = vmatprep.subr.mxu0 0.0
    %2216 = vmatpush1.msra.mxu0 %v2205
    %2217 = vmatprep.subr.mxu0 0.0
    %2218 = vmatpush1.msra.mxu0 %v2206
    %2219 = vmatprep.subr.mxu0 0.0
    %2220 = vmatpush1.msra.mxu0 %v2207
    %2221 = vmatprep.subr.mxu0 0.0
    %2222 = vmatpush1.msra.mxu0 0.0
    %2223 = vmatprep.subr.mxu0 0.0
    %2224 = vmatpush1.msra.mxu0 0.0
    %2225 = vmatprep.subr.mxu0 0.0
    %2226 = vmatpush1.msra.mxu0 0.0
    %2227 = vmatprep.subr.mxu0 0.0
    %2228 = vmatpush1.msra.mxu0 0.0
    %2229 = vmatprep.subr.mxu0 0.0
    %2230 = vmatpush1.msra.mxu0 0.0
    %2231 = vmatprep.subr.mxu0 0.0
    %2232 = vmatpush1.msra.mxu0 0.0
    %2233 = vmatprep.subr.mxu0 0.0
    %2234 = vmatpush1.msra.mxu0 0.0
    %2235 = vmatprep.subr.mxu0 0.0
    %2236 = vmatpush1.msra.mxu0 0.0
    %2237 = vmatprep.subr.mxu0 0.0
    %2238 = vmatpush1.msra.mxu0 0.0
    %2239 = vmatprep.subr.mxu0 0.0
    %2240 = vmatpush1.msra.mxu0 0.0
    %2241 = vmatprep.subr.mxu0 0.0
    %2242 = vmatpush1.msra.mxu0 0.0
    %2243 = vmatprep.subr.mxu0 0.0
    %2244 = vmatpush1.msra.mxu0 0.0
    %2245 = vmatprep.subr.mxu0 0.0
    %2246 = vmatpush1.msra.mxu0 0.0
    %2247 = vmatprep.subr.mxu0 0.0
    %2248 = vmatpush1.msra.mxu0 0.0
    %2249 = vmatprep.subr.mxu0 0.0
    %2250 = vmatpush1.msra.mxu0 0.0
    %2251 = vmatprep.subr.mxu0 0.0
    %2252 = vmatpush1.msra.mxu0 0.0
    %2253 = vmatprep.subr.mxu0 0.0
    %2254 = vmatpush1.msra.mxu0 0.0
    %2255 = vmatprep.subr.mxu0 0.0
    %2256 = vmatpush1.msra.mxu0 0.0
    %2257 = vmatprep.subr.mxu0 0.0
    %2258 = vmatpush1.msra.mxu0 0.0
    %2259 = vmatprep.subr.mxu0 0.0
    %2260 = vmatpush1.msra.mxu0 0.0
    %2261 = vmatprep.subr.mxu0 0.0
    %2262 = vmatpush1.msra.mxu0 0.0
    %2263 = vmatprep.subr.mxu0 0.0
    %2264 = vmatpush1.msra.mxu0 0.0
    %2265 = vmatprep.subr.mxu0 0.0
    %2266 = vmatpush1.msra.mxu0 0.0
    %2267 = vmatprep.subr.mxu0 0.0
    %2268 = vmatpush1.msra.mxu0 0.0
    %2269 = vmatprep.subr.mxu0 0.0
    %2270 = vmatpush1.msra.mxu0 0.0
    %2271 = vmatprep.subr.mxu0 0.0
    %2272 = vmatpush1.msra.mxu0 0.0
    %2273 = vmatprep.subr.mxu0 0.0
    %2274 = vmatpush1.msra.mxu0 0.0
    %2275 = vmatprep.subr.mxu0 0.0
    %2276 = vmatpush1.msra.mxu0 0.0
    %2277 = vmatprep.mubr.f32.mxu0 0.0
    %2278 = vmatmul.mubr.f32.gmra.mrb[0].mxu0 %v1456
    %v2279 = vpop.f32.mrb[0].mxu0
    %v2280 = vadd.f32 %v2212, %v2279
    %v2281 = vpop.f32.mrb[0].mxu0
    %2282 = vmatprep.mubr.f32.mxu0 0.0
    %2283 = vmatmul.mubr.f32.gmra.mrb[0].mxu0 %v1459
    %v2284 = vpop.f32.mrb[0].mxu0
    %v2285 = vadd.f32 %v2212, %v2284
    %v2286 = vpop.f32.mrb[0].mxu0
    %2287 = vdwg.mxu0
    %s2288 = scalar_lea.vmem [#allocation5], 416
    %v2289 = vld [vmem:[%s2288] sm:$0xff]
    %v2290 = vld [vmem:[%s2288 + $0x8] sm:$0xff]
    %v2291 = vld [vmem:[%s2288 + $0x10] sm:$0xff]
    %v2292 = vld [vmem:[%s2288 + $0x18] sm:$0xff]
    %v2293 = vld [vmem:[#allocation7 + $0xc] sm:$0x1]
    %v2294 = vlaneseq
    %v2295 = vshrl.u32 %v2294, 7
    %v2296 = vsub.s32 0, %v2295
    %v2297 = vrot.slane %v2293, %v2296
    %2298 = vmatprep.subr.mxu0 0.0
    %2299 = vmatpush1.msra.mxu0 %v2289
    %2300 = vmatprep.subr.mxu0 0.0
    %2301 = vmatpush1.msra.mxu0 %v2290
    %2302 = vmatprep.subr.mxu0 0.0
    %2303 = vmatpush1.msra.mxu0 %v2291
    %2304 = vmatprep.subr.mxu0 0.0
    %2305 = vmatpush1.msra.mxu0 %v2292
    %2306 = vmatprep.subr.mxu0 0.0
    %2307 = vmatpush1.msra.mxu0 0.0
    %2308 = vmatprep.subr.mxu0 0.0
    %2309 = vmatpush1.msra.mxu0 0.0
    %2310 = vmatprep.subr.mxu0 0.0
    %2311 = vmatpush1.msra.mxu0 0.0
    %2312 = vmatprep.subr.mxu0 0.0
    %2313 = vmatpush1.msra.mxu0 0.0
    %2314 = vmatprep.subr.mxu0 0.0
    %2315 = vmatpush1.msra.mxu0 0.0
    %2316 = vmatprep.subr.mxu0 0.0
    %2317 = vmatpush1.msra.mxu0 0.0
    %2318 = vmatprep.subr.mxu0 0.0
    %2319 = vmatpush1.msra.mxu0 0.0
    %2320 = vmatprep.subr.mxu0 0.0
    %2321 = vmatpush1.msra.mxu0 0.0
    %2322 = vmatprep.subr.mxu0 0.0
    %2323 = vmatpush1.msra.mxu0 0.0
    %2324 = vmatprep.subr.mxu0 0.0
    %2325 = vmatpush1.msra.mxu0 0.0
    %2326 = vmatprep.subr.mxu0 0.0
    %2327 = vmatpush1.msra.mxu0 0.0
    %2328 = vmatprep.subr.mxu0 0.0
    %2329 = vmatpush1.msra.mxu0 0.0
    %2330 = vmatprep.subr.mxu0 0.0
    %2331 = vmatpush1.msra.mxu0 0.0
    %2332 = vmatprep.subr.mxu0 0.0
    %2333 = vmatpush1.msra.mxu0 0.0
    %2334 = vmatprep.subr.mxu0 0.0
    %2335 = vmatpush1.msra.mxu0 0.0
    %2336 = vmatprep.subr.mxu0 0.0
    %2337 = vmatpush1.msra.mxu0 0.0
    %2338 = vmatprep.subr.mxu0 0.0
    %2339 = vmatpush1.msra.mxu0 0.0
    %2340 = vmatprep.subr.mxu0 0.0
    %2341 = vmatpush1.msra.mxu0 0.0
    %2342 = vmatprep.subr.mxu0 0.0
    %2343 = vmatpush1.msra.mxu0 0.0
    %2344 = vmatprep.subr.mxu0 0.0
    %2345 = vmatpush1.msra.mxu0 0.0
    %2346 = vmatprep.subr.mxu0 0.0
    %2347 = vmatpush1.msra.mxu0 0.0
    %2348 = vmatprep.subr.mxu0 0.0
    %2349 = vmatpush1.msra.mxu0 0.0
    %2350 = vmatprep.subr.mxu0 0.0
    %2351 = vmatpush1.msra.mxu0 0.0
    %2352 = vmatprep.subr.mxu0 0.0
    %2353 = vmatpush1.msra.mxu0 0.0
    %2354 = vmatprep.subr.mxu0 0.0
    %2355 = vmatpush1.msra.mxu0 0.0
    %2356 = vmatprep.subr.mxu0 0.0
    %2357 = vmatpush1.msra.mxu0 0.0
    %2358 = vmatprep.subr.mxu0 0.0
    %2359 = vmatpush1.msra.mxu0 0.0
    %2360 = vmatprep.subr.mxu0 0.0
    %2361 = vmatpush1.msra.mxu0 0.0
    %2362 = vmatprep.mubr.f32.mxu0 0.0
    %2363 = vmatmul.mubr.f32.gmra.mrb[0].mxu0 %v1456
    %v2364 = vpop.f32.mrb[0].mxu0
    %v2365 = vadd.f32 %v2297, %v2364
    %v2366 = vpop.f32.mrb[0].mxu0
    %2367 = vmatprep.mubr.f32.mxu0 0.0
    %2368 = vmatmul.mubr.f32.gmra.mrb[0].mxu0 %v1459
    %v2369 = vpop.f32.mrb[0].mxu0
    %v2370 = vadd.f32 %v2297, %v2369
    %v2371 = vpop.f32.mrb[0].mxu0
    %2372 = vdwg.mxu0
    %v2374 = vsel %vm75, %v2195, 0
    %v2377 = vsel %vm75, %v2280, 0
    %2379 = vmatprep.subr.mxu0 0.0
    %2380 = vmatpush1.xpose.msra.mxu0 %v2377
    %2381 = vmatprep.subr.mxu0 0.0
    %2382 = vmatpush1.xpose.msra.mxu0 0.0
    %2383 = vmatprep.subr.mxu0 0.0
    %2384 = vmatpush1.xpose.msra.mxu0 0.0
    %2385 = vmatprep.subr.mxu0 0.0
    %2386 = vmatpush1.xpose.msra.mxu0 0.0
    %2387 = vmatprep.subr.mxu0 0.0
    %2388 = vmatpush1.xpose.msra.mxu0 0.0
    %2389 = vmatprep.subr.mxu0 0.0
    %2390 = vmatpush1.xpose.msra.mxu0 0.0
    %2391 = vmatprep.subr.mxu0 0.0
    %2392 = vmatpush1.xpose.msra.mxu0 0.0
    %2393 = vmatprep.subr.mxu0 0.0
    %2394 = vmatpush1.xpose.msra.mxu0 0.0
    %2395 = vmatprep.subr.mxu0 0.0
    %2396 = vmatpush1.xpose.msra.mxu0 0.0
    %2397 = vmatprep.subr.mxu0 0.0
    %2398 = vmatpush1.xpose.msra.mxu0 0.0
    %2399 = vmatprep.subr.mxu0 0.0
    %2400 = vmatpush1.xpose.msra.mxu0 0.0
    %2401 = vmatprep.subr.mxu0 0.0
    %2402 = vmatpush1.xpose.msra.mxu0 0.0
    %2403 = vmatprep.subr.mxu0 0.0
    %2404 = vmatpush1.xpose.msra.mxu0 0.0
    %2405 = vmatprep.subr.mxu0 0.0
    %2406 = vmatpush1.xpose.msra.mxu0 0.0
    %2407 = vmatprep.subr.mxu0 0.0
    %2408 = vmatpush1.xpose.msra.mxu0 0.0
    %2409 = vmatprep.subr.mxu0 0.0
    %2410 = vmatpush1.xpose.msra.mxu0 0.0
    %2411 = vmatprep.subr.mxu0 0.0
    %2412 = vmatpush1.xpose.msra.mxu0 0.0
    %2413 = vmatprep.subr.mxu0 0.0
    %2414 = vmatpush1.xpose.msra.mxu0 0.0
    %2415 = vmatprep.subr.mxu0 0.0
    %2416 = vmatpush1.xpose.msra.mxu0 0.0
    %2417 = vmatprep.subr.mxu0 0.0
    %2418 = vmatpush1.xpose.msra.mxu0 0.0
    %2419 = vmatprep.subr.mxu0 0.0
    %2420 = vmatpush1.xpose.msra.mxu0 0.0
    %2421 = vmatprep.subr.mxu0 0.0
    %2422 = vmatpush1.xpose.msra.mxu0 0.0
    %2423 = vmatprep.subr.mxu0 0.0
    %2424 = vmatpush1.xpose.msra.mxu0 0.0
    %2425 = vmatprep.subr.mxu0 0.0
    %2426 = vmatpush1.xpose.msra.mxu0 0.0
    %2427 = vmatprep.subr.mxu0 0.0
    %2428 = vmatpush1.xpose.msra.mxu0 0.0
    %2429 = vmatprep.subr.mxu0 0.0
    %2430 = vmatpush1.xpose.msra.mxu0 0.0
    %2431 = vmatprep.subr.mxu0 0.0
    %2432 = vmatpush1.xpose.msra.mxu0 0.0
    %2433 = vmatprep.subr.mxu0 0.0
    %2434 = vmatpush1.xpose.msra.mxu0 0.0
    %2435 = vmatprep.subr.mxu0 0.0
    %2436 = vmatpush1.xpose.msra.mxu0 0.0
    %2437 = vmatprep.subr.mxu0 0.0
    %2438 = vmatpush1.xpose.msra.mxu0 0.0
    %2439 = vmatprep.subr.mxu0 0.0
    %2440 = vmatpush1.xpose.msra.mxu0 0.0
    %2441 = vmatprep.subr.mxu0 0.0
    %2442 = vmatpush1.xpose.msra.mxu0 0.0
    %2443 = vmatprep.mubr.f32.mxu0 0.0
    %2444 = vmatmul.mubr.f32.gmra.mrb[0].mxu0 %v2374
    %v2445 = vpop.f32.mrb[0].mxu0
    %v2446 = vadd.f32 0.0, %v2445
    %v2447 = vpop.f32.mrb[0].mxu0
    %2448 = vdwg.mxu0
    %v2450 = vsel %vm75, %v2200, 0
    %v2453 = vsel %vm75, %v2285, 0
    %2455 = vmatprep.subr.mxu0 0.0
    %2456 = vmatpush1.xpose.msra.mxu0 %v2453
    %2457 = vmatprep.subr.mxu0 0.0
    %2458 = vmatpush1.xpose.msra.mxu0 0.0
    %2459 = vmatprep.subr.mxu0 0.0
    %2460 = vmatpush1.xpose.msra.mxu0 0.0
    %2461 = vmatprep.subr.mxu0 0.0
    %2462 = vmatpush1.xpose.msra.mxu0 0.0
    %2463 = vmatprep.subr.mxu0 0.0
    %2464 = vmatpush1.xpose.msra.mxu0 0.0
    %2465 = vmatprep.subr.mxu0 0.0
    %2466 = vmatpush1.xpose.msra.mxu0 0.0
    %2467 = vmatprep.subr.mxu0 0.0
    %2468 = vmatpush1.xpose.msra.mxu0 0.0
    %2469 = vmatprep.subr.mxu0 0.0
    %2470 = vmatpush1.xpose.msra.mxu0 0.0
    %2471 = vmatprep.subr.mxu0 0.0
    %2472 = vmatpush1.xpose.msra.mxu0 0.0
    %2473 = vmatprep.subr.mxu0 0.0
    %2474 = vmatpush1.xpose.msra.mxu0 0.0
    %2475 = vmatprep.subr.mxu0 0.0
    %2476 = vmatpush1.xpose.msra.mxu0 0.0
    %2477 = vmatprep.subr.mxu0 0.0
    %2478 = vmatpush1.xpose.msra.mxu0 0.0
    %2479 = vmatprep.subr.mxu0 0.0
    %2480 = vmatpush1.xpose.msra.mxu0 0.0
    %2481 = vmatprep.subr.mxu0 0.0
    %2482 = vmatpush1.xpose.msra.mxu0 0.0
    %2483 = vmatprep.subr.mxu0 0.0
    %2484 = vmatpush1.xpose.msra.mxu0 0.0
    %2485 = vmatprep.subr.mxu0 0.0
    %2486 = vmatpush1.xpose.msra.mxu0 0.0
    %2487 = vmatprep.subr.mxu0 0.0
    %2488 = vmatpush1.xpose.msra.mxu0 0.0
    %2489 = vmatprep.subr.mxu0 0.0
    %2490 = vmatpush1.xpose.msra.mxu0 0.0
    %2491 = vmatprep.subr.mxu0 0.0
    %2492 = vmatpush1.xpose.msra.mxu0 0.0
    %2493 = vmatprep.subr.mxu0 0.0
    %2494 = vmatpush1.xpose.msra.mxu0 0.0
    %2495 = vmatprep.subr.mxu0 0.0
    %2496 = vmatpush1.xpose.msra.mxu0 0.0
    %2497 = vmatprep.subr.mxu0 0.0
    %2498 = vmatpush1.xpose.msra.mxu0 0.0
    %2499 = vmatprep.subr.mxu0 0.0
    %2500 = vmatpush1.xpose.msra.mxu0 0.0
    %2501 = vmatprep.subr.mxu0 0.0
    %2502 = vmatpush1.xpose.msra.mxu0 0.0
    %2503 = vmatprep.subr.mxu0 0.0
    %2504 = vmatpush1.xpose.msra.mxu0 0.0
    %2505 = vmatprep.subr.mxu0 0.0
    %2506 = vmatpush1.xpose.msra.mxu0 0.0
    %2507 = vmatprep.subr.mxu0 0.0
    %2508 = vmatpush1.xpose.msra.mxu0 0.0
    %2509 = vmatprep.subr.mxu0 0.0
    %2510 = vmatpush1.xpose.msra.mxu0 0.0
    %2511 = vmatprep.subr.mxu0 0.0
    %2512 = vmatpush1.xpose.msra.mxu0 0.0
    %2513 = vmatprep.subr.mxu0 0.0
    %2514 = vmatpush1.xpose.msra.mxu0 0.0
    %2515 = vmatprep.subr.mxu0 0.0
    %2516 = vmatpush1.xpose.msra.mxu0 0.0
    %2517 = vmatprep.subr.mxu0 0.0
    %2518 = vmatpush1.xpose.msra.mxu0 0.0
    %2519 = vmatprep.mubr.f32.mxu0 0.0
    %2520 = vmatmul.mubr.f32.gmra.mrb[0].mxu0 %v2450
    %v2521 = vpop.f32.mrb[0].mxu0
    %v2522 = vadd.f32 0.0, %v2521
    %v2523 = vpop.f32.mrb[0].mxu0
    %2524 = vdwg.mxu0
    %v2525 = vmul.f32 %v2446, 0.25
    %v2526 = vmul.f32 %v2522, 0.25
    %v2527 = vsel %vm481, %v2525, -inf
    %2528 = vmax.xlane.f32.xlu0 %v2527
    %v2529 = vpop.xlane.xlu0 %2528
    %v2530 = vsel %vm481, %v2526, -inf
    %2531 = vmax.xlane.f32.xlu0 %v2530
    %v2532 = vpop.xlane.xlu0 %2531
    %v2533 = vsub.f32 %v2525, %v2529
    %v2534 = vsub.f32 %v2526, %v2532
    %v2535 = vmul.f32 %v2533, 1.442695
    %v2536 = vpow.pop %v2535
    %v2537 = vmul.f32 %v2534, 1.442695
    %v2538 = vpow.pop %v2537
    %v2539 = vsel %vm481, %v2536, 0.0
    %2540 = vadd.xlane.f32.xlu0 %v2539
    %v2541 = vpop.xlane.xlu0 %2540
    %v2542 = vsel %vm481, %v2538, 0.0
    %2543 = vadd.xlane.f32.xlu0 %v2542
    %v2544 = vpop.xlane.xlu0 %2543
    %v2545 = vrcp.pop %v2541
    %v2546 = vrcp.pop %v2544
    %v2547 = vmul.f32 %v2536, %v2545
    %v2548 = vmul.f32 %v2538, %v2546
    %s2549 = scalar_lea.vmem %s5, 16
    %2550 = vst.msk [vmem:[%s2549] sm:$0xff] %vm481, %v2547
    %2551 = vst.msk [vmem:[%s2549 + $0x8] sm:$0xff] %vm481, %v2548
    %v2553 = vsel %vm481, %v2547, 0
    %2555 = vmatprep.subr.mxu0 0.0
    %2556 = vmatpush1.msra.mxu0 %v2365
    %2557 = vmatprep.subr.mxu0 0.0
    %2558 = vmatpush1.msra.mxu0 0.0
    %2559 = vmatprep.subr.mxu0 0.0
    %2560 = vmatpush1.msra.mxu0 0.0
    %2561 = vmatprep.subr.mxu0 0.0
    %2562 = vmatpush1.msra.mxu0 0.0
    %2563 = vmatprep.subr.mxu0 0.0
    %2564 = vmatpush1.msra.mxu0 0.0
    %2565 = vmatprep.subr.mxu0 0.0
    %2566 = vmatpush1.msra.mxu0 0.0
    %2567 = vmatprep.subr.mxu0 0.0
    %2568 = vmatpush1.msra.mxu0 0.0
    %2569 = vmatprep.subr.mxu0 0.0
    %2570 = vmatpush1.msra.mxu0 0.0
    %2571 = vmatprep.subr.mxu0 0.0
    %2572 = vmatpush1.msra.mxu0 0.0
    %2573 = vmatprep.subr.mxu0 0.0
    %2574 = vmatpush1.msra.mxu0 0.0
    %2575 = vmatprep.subr.mxu0 0.0
    %2576 = vmatpush1.msra.mxu0 0.0
    %2577 = vmatprep.subr.mxu0 0.0
    %2578 = vmatpush1.msra.mxu0 0.0
    %2579 = vmatprep.subr.mxu0 0.0
    %2580 = vmatpush1.msra.mxu0 0.0
    %2581 = vmatprep.subr.mxu0 0.0
    %2582 = vmatpush1.msra.mxu0 0.0
    %2583 = vmatprep.subr.mxu0 0.0
    %2584 = vmatpush1.msra.mxu0 0.0
    %2585 = vmatprep.subr.mxu0 0.0
    %2586 = vmatpush1.msra.mxu0 0.0
    %2587 = vmatprep.subr.mxu0 0.0
    %2588 = vmatpush1.msra.mxu0 0.0
    %2589 = vmatprep.subr.mxu0 0.0
    %2590 = vmatpush1.msra.mxu0 0.0
    %2591 = vmatprep.subr.mxu0 0.0
    %2592 = vmatpush1.msra.mxu0 0.0
    %2593 = vmatprep.subr.mxu0 0.0
    %2594 = vmatpush1.msra.mxu0 0.0
    %2595 = vmatprep.subr.mxu0 0.0
    %2596 = vmatpush1.msra.mxu0 0.0
    %2597 = vmatprep.subr.mxu0 0.0
    %2598 = vmatpush1.msra.mxu0 0.0
    %2599 = vmatprep.subr.mxu0 0.0
    %2600 = vmatpush1.msra.mxu0 0.0
    %2601 = vmatprep.subr.mxu0 0.0
    %2602 = vmatpush1.msra.mxu0 0.0
    %2603 = vmatprep.subr.mxu0 0.0
    %2604 = vmatpush1.msra.mxu0 0.0
    %2605 = vmatprep.subr.mxu0 0.0
    %2606 = vmatpush1.msra.mxu0 0.0
    %2607 = vmatprep.subr.mxu0 0.0
    %2608 = vmatpush1.msra.mxu0 0.0
    %2609 = vmatprep.subr.mxu0 0.0
    %2610 = vmatpush1.msra.mxu0 0.0
    %2611 = vmatprep.subr.mxu0 0.0
    %2612 = vmatpush1.msra.mxu0 0.0
    %2613 = vmatprep.subr.mxu0 0.0
    %2614 = vmatpush1.msra.mxu0 0.0
    %2615 = vmatprep.subr.mxu0 0.0
    %2616 = vmatpush1.msra.mxu0 0.0
    %2617 = vmatprep.subr.mxu0 0.0
    %2618 = vmatpush1.msra.mxu0 0.0
    %2619 = vmatprep.mubr.f32.mxu0 0.0
    %2620 = vmatmul.mubr.f32.gmra.mrb[0].mxu0 %v2553
    %v2621 = vpop.f32.mrb[0].mxu0
    %v2622 = vadd.f32 0.0, %v2621
    %v2623 = vpop.f32.mrb[0].mxu0
    %2624 = vdwg.mxu0
    %v2626 = vsel %vm481, %v2548, 0
    %2628 = vmatprep.subr.mxu0 0.0
    %2629 = vmatpush1.msra.mxu0 %v2370
    %2630 = vmatprep.subr.mxu0 0.0
    %2631 = vmatpush1.msra.mxu0 0.0
    %2632 = vmatprep.subr.mxu0 0.0
    %2633 = vmatpush1.msra.mxu0 0.0
    %2634 = vmatprep.subr.mxu0 0.0
    %2635 = vmatpush1.msra.mxu0 0.0
    %2636 = vmatprep.subr.mxu0 0.0
    %2637 = vmatpush1.msra.mxu0 0.0
    %2638 = vmatprep.subr.mxu0 0.0
    %2639 = vmatpush1.msra.mxu0 0.0
    %2640 = vmatprep.subr.mxu0 0.0
    %2641 = vmatpush1.msra.mxu0 0.0
    %2642 = vmatprep.subr.mxu0 0.0
    %2643 = vmatpush1.msra.mxu0 0.0
    %2644 = vmatprep.subr.mxu0 0.0
    %2645 = vmatpush1.msra.mxu0 0.0
    %2646 = vmatprep.subr.mxu0 0.0
    %2647 = vmatpush1.msra.mxu0 0.0
    %2648 = vmatprep.subr.mxu0 0.0
    %2649 = vmatpush1.msra.mxu0 0.0
    %2650 = vmatprep.subr.mxu0 0.0
    %2651 = vmatpush1.msra.mxu0 0.0
    %2652 = vmatprep.subr.mxu0 0.0
    %2653 = vmatpush1.msra.mxu0 0.0
    %2654 = vmatprep.subr.mxu0 0.0
    %2655 = vmatpush1.msra.mxu0 0.0
    %2656 = vmatprep.subr.mxu0 0.0
    %2657 = vmatpush1.msra.mxu0 0.0
    %2658 = vmatprep.subr.mxu0 0.0
    %2659 = vmatpush1.msra.mxu0 0.0
    %2660 = vmatprep.subr.mxu0 0.0
    %2661 = vmatpush1.msra.mxu0 0.0
    %2662 = vmatprep.subr.mxu0 0.0
    %2663 = vmatpush1.msra.mxu0 0.0
    %2664 = vmatprep.subr.mxu0 0.0
    %2665 = vmatpush1.msra.mxu0 0.0
    %2666 = vmatprep.subr.mxu0 0.0
    %2667 = vmatpush1.msra.mxu0 0.0
    %2668 = vmatprep.subr.mxu0 0.0
    %2669 = vmatpush1.msra.mxu0 0.0
    %2670 = vmatprep.subr.mxu0 0.0
    %2671 = vmatpush1.msra.mxu0 0.0
    %2672 = vmatprep.subr.mxu0 0.0
    %2673 = vmatpush1.msra.mxu0 0.0
    %2674 = vmatprep.subr.mxu0 0.0
    %2675 = vmatpush1.msra.mxu0 0.0
    %2676 = vmatprep.subr.mxu0 0.0
    %2677 = vmatpush1.msra.mxu0 0.0
    %2678 = vmatprep.subr.mxu0 0.0
    %2679 = vmatpush1.msra.mxu0 0.0
    %2680 = vmatprep.subr.mxu0 0.0
    %2681 = vmatpush1.msra.mxu0 0.0
    %2682 = vmatprep.subr.mxu0 0.0
    %2683 = vmatpush1.msra.mxu0 0.0
    %2684 = vmatprep.subr.mxu0 0.0
    %2685 = vmatpush1.msra.mxu0 0.0
    %2686 = vmatprep.subr.mxu0 0.0
    %2687 = vmatpush1.msra.mxu0 0.0
    %2688 = vmatprep.subr.mxu0 0.0
    %2689 = vmatpush1.msra.mxu0 0.0
    %2690 = vmatprep.subr.mxu0 0.0
    %2691 = vmatpush1.msra.mxu0 0.0
    %2692 = vmatprep.mubr.f32.mxu0 0.0
    %2693 = vmatmul.mubr.f32.gmra.mrb[0].mxu0 %v2626
    %v2694 = vpop.f32.mrb[0].mxu0
    %v2695 = vadd.f32 0.0, %v2694
    %v2696 = vpop.f32.mrb[0].mxu0
    %2697 = vdwg.mxu0
    %s2698 = scalar_lea.vmem [#allocation5], 480
    %v2699 = vld [vmem:[%s2698] sm:$0xff]
    %v2700 = vld [vmem:[%s2698 + $0x8] sm:$0xff]
    %v2701 = vld [vmem:[%s2698 + $0x10] sm:$0xff]
    %v2702 = vld [vmem:[%s2698 + $0x18] sm:$0xff]
    %v2704 = vsel %vm75, %v2622, 0
    %v2707 = vsel %vm75, %v2695, 0
    %2709 = vmatprep.subr.mxu0 0.0
    %2710 = vmatpush1.msra.mxu0 %v2699
    %2711 = vmatprep.subr.mxu0 0.0
    %2712 = vmatpush1.msra.mxu0 %v2700
    %2713 = vmatprep.subr.mxu0 0.0
    %2714 = vmatpush1.msra.mxu0 %v2701
    %2715 = vmatprep.subr.mxu0 0.0
    %2716 = vmatpush1.msra.mxu0 %v2702
    %2717 = vmatprep.subr.mxu0 0.0
    %2718 = vmatpush1.msra.mxu0 0.0
    %2719 = vmatprep.subr.mxu0 0.0
    %2720 = vmatpush1.msra.mxu0 0.0
    %2721 = vmatprep.subr.mxu0 0.0
    %2722 = vmatpush1.msra.mxu0 0.0
    %2723 = vmatprep.subr.mxu0 0.0
    %2724 = vmatpush1.msra.mxu0 0.0
    %2725 = vmatprep.subr.mxu0 0.0
    %2726 = vmatpush1.msra.mxu0 0.0
    %2727 = vmatprep.subr.mxu0 0.0
    %2728 = vmatpush1.msra.mxu0 0.0
    %2729 = vmatprep.subr.mxu0 0.0
    %2730 = vmatpush1.msra.mxu0 0.0
    %2731 = vmatprep.subr.mxu0 0.0
    %2732 = vmatpush1.msra.mxu0 0.0
    %2733 = vmatprep.subr.mxu0 0.0
    %2734 = vmatpush1.msra.mxu0 0.0
    %2735 = vmatprep.subr.mxu0 0.0
    %2736 = vmatpush1.msra.mxu0 0.0
    %2737 = vmatprep.subr.mxu0 0.0
    %2738 = vmatpush1.msra.mxu0 0.0
    %2739 = vmatprep.subr.mxu0 0.0
    %2740 = vmatpush1.msra.mxu0 0.0
    %2741 = vmatprep.subr.mxu0 0.0
    %2742 = vmatpush1.msra.mxu0 0.0
    %2743 = vmatprep.subr.mxu0 0.0
    %2744 = vmatpush1.msra.mxu0 0.0
    %2745 = vmatprep.subr.mxu0 0.0
    %2746 = vmatpush1.msra.mxu0 0.0
    %2747 = vmatprep.subr.mxu0 0.0
    %2748 = vmatpush1.msra.mxu0 0.0
    %2749 = vmatprep.subr.mxu0 0.0
    %2750 = vmatpush1.msra.mxu0 0.0
    %2751 = vmatprep.subr.mxu0 0.0
    %2752 = vmatpush1.msra.mxu0 0.0
    %2753 = vmatprep.subr.mxu0 0.0
    %2754 = vmatpush1.msra.mxu0 0.0
    %2755 = vmatprep.subr.mxu0 0.0
    %2756 = vmatpush1.msra.mxu0 0.0
    %2757 = vmatprep.subr.mxu0 0.0
    %2758 = vmatpush1.msra.mxu0 0.0
    %2759 = vmatprep.subr.mxu0 0.0
    %2760 = vmatpush1.msra.mxu0 0.0
    %2761 = vmatprep.subr.mxu0 0.0
    %2762 = vmatpush1.msra.mxu0 0.0
    %2763 = vmatprep.subr.mxu0 0.0
    %2764 = vmatpush1.msra.mxu0 0.0
    %2765 = vmatprep.subr.mxu0 0.0
    %2766 = vmatpush1.msra.mxu0 0.0
    %2767 = vmatprep.subr.mxu0 0.0
    %2768 = vmatpush1.msra.mxu0 0.0
    %2769 = vmatprep.subr.mxu0 0.0
    %2770 = vmatpush1.msra.mxu0 0.0
    %2771 = vmatprep.subr.mxu0 0.0
    %2772 = vmatpush1.msra.mxu0 0.0
    %2773 = vmatprep.mubr.f32.mxu0 0.0
    %2774 = vmatmul.mubr.f32.gmra.mrb[0].mxu0 %v2704
    %v2775 = vpop.f32.mrb[0].mxu0
    %v2776 = vadd.f32 0.0, %v2775
    %v2777 = vpop.f32.mrb[0].mxu0
    %2778 = vmatprep.mubr.f32.mxu0 0.0
    %2779 = vmatmul.mubr.f32.gmra.mrb[0].mxu0 %v2707
    %v2780 = vpop.f32.mrb[0].mxu0
    %v2781 = vadd.f32 0.0, %v2780
    %v2782 = vpop.f32.mrb[0].mxu0
    %2783 = vdwg.mxu0
    %v2784 = vadd.f32 %v2116, %v2776
    %v2785 = vadd.f32 %v2117, %v2781
    %v2786 = vadd.f32 %v2784, %v1438
    %v2787 = vadd.f32 %v2785, %v1439
    %v2788 = vsel %vm75, %v2786, 0.0
    %2789 = vadd.xlane.f32.xlu0 %v2788
    %v2790 = vpop.xlane.xlu0 %2789
    %v2791 = vsel %vm75, %v2787, 0.0
    %2792 = vadd.xlane.f32.xlu0 %v2791
    %v2793 = vpop.xlane.xlu0 %2792
    %v2794 = vmul.f32 %v2790, 0.03125
    %v2795 = vmul.f32 %v2793, 0.03125
    %v2796 = vmul.f32 %v2786, %v2786
    %v2797 = vmul.f32 %v2787, %v2787
    %v2798 = vsel %vm75, %v2796, 0.0
    %2799 = vadd.xlane.f32.xlu0 %v2798
    %v2800 = vpop.xlane.xlu0 %2799
    %v2801 = vsel %vm75, %v2797, 0.0
    %2802 = vadd.xlane.f32.xlu0 %v2801
    %v2803 = vpop.xlane.xlu0 %2802
    %v2804 = vmul.f32 %v2800, 0.03125
    %v2805 = vmul.f32 %v2803, 0.03125
    %v2806 = vmul.f32 %v2794, %v2794
    %v2807 = vmul.f32 %v2795, %v2795
    %v2808 = vsub.f32 %v2804, %v2806
    %v2809 = vsub.f32 %v2805, %v2807
    %v2810 = vsub.f32 %v2786, %v2794
    %v2811 = vsub.f32 %v2787, %v2795
    %v2812 = vadd.f32 %v2808, 1e-05
    %v2813 = vadd.f32 %v2809, 1e-05
    %v2814 = vrsqrt.pop %v2812
    %v2815 = vrsqrt.pop %v2813
    %v2816 = vmul.f32 %v2810, %v2814
    %v2817 = vmul.f32 %v2811, %v2815
    %s2818 = scalar_lea.vmem [#allocation5], 512
    %v2819 = vld [vmem:[%s2818] sm:$0xff]
    %v2820 = vld [vmem:[%s2818 + $0x8] sm:$0xff]
    %v2821 = vld [vmem:[%s2818 + $0x10] sm:$0xff]
    %v2822 = vld [vmem:[%s2818 + $0x18] sm:$0xff]
    %v2823 = vld [vmem:[#allocation7 + $0xe] sm:$0x1]
    %v2824 = vlaneseq
    %v2825 = vshrl.u32 %v2824, 7
    %v2826 = vsub.s32 0, %v2825
    %v2827 = vrot.slane %v2823, %v2826
    %v2829 = vsel %vm75, %v2816, 0
    %v2832 = vsel %vm75, %v2817, 0
    %2834 = vmatprep.subr.mxu0 0.0
    %2835 = vmatpush1.msra.mxu0 %v2819
    %2836 = vmatprep.subr.mxu0 0.0
    %2837 = vmatpush1.msra.mxu0 %v2820
    %2838 = vmatprep.subr.mxu0 0.0
    %2839 = vmatpush1.msra.mxu0 %v2821
    %2840 = vmatprep.subr.mxu0 0.0
    %2841 = vmatpush1.msra.mxu0 %v2822
    %2842 = vmatprep.subr.mxu0 0.0
    %2843 = vmatpush1.msra.mxu0 0.0
    %2844 = vmatprep.subr.mxu0 0.0
    %2845 = vmatpush1.msra.mxu0 0.0
    %2846 = vmatprep.subr.mxu0 0.0
    %2847 = vmatpush1.msra.mxu0 0.0
    %2848 = vmatprep.subr.mxu0 0.0
    %2849 = vmatpush1.msra.mxu0 0.0
    %2850 = vmatprep.subr.mxu0 0.0
    %2851 = vmatpush1.msra.mxu0 0.0
    %2852 = vmatprep.subr.mxu0 0.0
    %2853 = vmatpush1.msra.mxu0 0.0
    %2854 = vmatprep.subr.mxu0 0.0
    %2855 = vmatpush1.msra.mxu0 0.0
    %2856 = vmatprep.subr.mxu0 0.0
    %2857 = vmatpush1.msra.mxu0 0.0
    %2858 = vmatprep.subr.mxu0 0.0
    %2859 = vmatpush1.msra.mxu0 0.0
    %2860 = vmatprep.subr.mxu0 0.0
    %2861 = vmatpush1.msra.mxu0 0.0
    %2862 = vmatprep.subr.mxu0 0.0
    %2863 = vmatpush1.msra.mxu0 0.0
    %2864 = vmatprep.subr.mxu0 0.0
    %2865 = vmatpush1.msra.mxu0 0.0
    %2866 = vmatprep.subr.mxu0 0.0
    %2867 = vmatpush1.msra.mxu0 0.0
    %2868 = vmatprep.subr.mxu0 0.0
    %2869 = vmatpush1.msra.mxu0 0.0
    %2870 = vmatprep.subr.mxu0 0.0
    %2871 = vmatpush1.msra.mxu0 0.0
    %2872 = vmatprep.subr.mxu0 0.0
    %2873 = vmatpush1.msra.mxu0 0.0
    %2874 = vmatprep.subr.mxu0 0.0
    %2875 = vmatpush1.msra.mxu0 0.0
    %2876 = vmatprep.subr.mxu0 0.0
    %2877 = vmatpush1.msra.mxu0 0.0
    %2878 = vmatprep.subr.mxu0 0.0
    %2879 = vmatpush1.msra.mxu0 0.0
    %2880 = vmatprep.subr.mxu0 0.0
    %2881 = vmatpush1.msra.mxu0 0.0
    %2882 = vmatprep.subr.mxu0 0.0
    %2883 = vmatpush1.msra.mxu0 0.0
    %2884 = vmatprep.subr.mxu0 0.0
    %2885 = vmatpush1.msra.mxu0 0.0
    %2886 = vmatprep.subr.mxu0 0.0
    %2887 = vmatpush1.msra.mxu0 0.0
    %2888 = vmatprep.subr.mxu0 0.0
    %2889 = vmatpush1.msra.mxu0 0.0
    %2890 = vmatprep.subr.mxu0 0.0
    %2891 = vmatpush1.msra.mxu0 0.0
    %2892 = vmatprep.subr.mxu0 0.0
    %2893 = vmatpush1.msra.mxu0 0.0
    %2894 = vmatprep.subr.mxu0 0.0
    %2895 = vmatpush1.msra.mxu0 0.0
    %2896 = vmatprep.subr.mxu0 0.0
    %2897 = vmatpush1.msra.mxu0 0.0
    %2898 = vmatprep.mubr.f32.mxu0 0.0
    %2899 = vmatmul.mubr.f32.gmra.mrb[0].mxu0 %v2829
    %v2900 = vpop.f32.mrb[0].mxu0
    %v2901 = vadd.f32 %v2827, %v2900
    %v2902 = vpop.f32.mrb[0].mxu0
    %2903 = vmatprep.mubr.f32.mxu0 0.0
    %2904 = vmatmul.mubr.f32.gmra.mrb[0].mxu0 %v2832
    %v2905 = vpop.f32.mrb[0].mxu0
    %v2906 = vadd.f32 %v2827, %v2905
    %v2907 = vpop.f32.mrb[0].mxu0
    %2908 = vdwg.mxu0
    %v2909 = vmax.f32 %v2901, 0.0
    %v2910 = vmax.f32 %v2906, 0.0
    %s2911 = scalar_lea.vmem [#allocation5], 544
    %v2912 = vld [vmem:[%s2911] sm:$0xff]
    %v2913 = vld [vmem:[%s2911 + $0x8] sm:$0xff]
    %v2914 = vld [vmem:[%s2911 + $0x10] sm:$0xff]
    %v2915 = vld [vmem:[%s2911 + $0x18] sm:$0xff]
    %v2916 = vld [vmem:[#allocation7 + $0xf] sm:$0x1]
    %v2917 = vlaneseq
    %v2918 = vshrl.u32 %v2917, 7
    %v2919 = vsub.s32 0, %v2918
    %v2920 = vrot.slane %v2916, %v2919
    %v2922 = vsel %vm75, %v2909, 0
    %v2925 = vsel %vm75, %v2910, 0
    %2927 = vmatprep.subr.mxu0 0.0
    %2928 = vmatpush1.msra.mxu0 %v2912
    %2929 = vmatprep.subr.mxu0 0.0
    %2930 = vmatpush1.msra.mxu0 %v2913
    %2931 = vmatprep.subr.mxu0 0.0
    %2932 = vmatpush1.msra.mxu0 %v2914
    %2933 = vmatprep.subr.mxu0 0.0
    %2934 = vmatpush1.msra.mxu0 %v2915
    %2935 = vmatprep.subr.mxu0 0.0
    %2936 = vmatpush1.msra.mxu0 0.0
    %2937 = vmatprep.subr.mxu0 0.0
    %2938 = vmatpush1.msra.mxu0 0.0
    %2939 = vmatprep.subr.mxu0 0.0
    %2940 = vmatpush1.msra.mxu0 0.0
    %2941 = vmatprep.subr.mxu0 0.0
    %2942 = vmatpush1.msra.mxu0 0.0
    %2943 = vmatprep.subr.mxu0 0.0
    %2944 = vmatpush1.msra.mxu0 0.0
    %2945 = vmatprep.subr.mxu0 0.0
    %2946 = vmatpush1.msra.mxu0 0.0
    %2947 = vmatprep.subr.mxu0 0.0
    %2948 = vmatpush1.msra.mxu0 0.0
    %2949 = vmatprep.subr.mxu0 0.0
    %2950 = vmatpush1.msra.mxu0 0.0
    %2951 = vmatprep.subr.mxu0 0.0
    %2952 = vmatpush1.msra.mxu0 0.0
    %2953 = vmatprep.subr.mxu0 0.0
    %2954 = vmatpush1.msra.mxu0 0.0
    %2955 = vmatprep.subr.mxu0 0.0
    %2956 = vmatpush1.msra.mxu0 0.0
    %2957 = vmatprep.subr.mxu0 0.0
    %2958 = vmatpush1.msra.mxu0 0.0
    %2959 = vmatprep.subr.mxu0 0.0
    %2960 = vmatpush1.msra.mxu0 0.0
    %2961 = vmatprep.subr.mxu0 0.0
    %2962 = vmatpush1.msra.mxu0 0.0
    %2963 = vmatprep.subr.mxu0 0.0
    %2964 = vmatpush1.msra.mxu0 0.0
    %2965 = vmatprep.subr.mxu0 0.0
    %2966 = vmatpush1.msra.mxu0 0.0
    %2967 = vmatprep.subr.mxu0 0.0
    %2968 = vmatpush1.msra.mxu0 0.0
    %2969 = vmatprep.subr.mxu0 0.0
    %2970 = vmatpush1.msra.mxu0 0.0
    %2971 = vmatprep.subr.mxu0 0.0
    %2972 = vmatpush1.msra.mxu0 0.0
    %2973 = vmatprep.subr.mxu0 0.0
    %2974 = vmatpush1.msra.mxu0 0.0
    %2975 = vmatprep.subr.mxu0 0.0
    %2976 = vmatpush1.msra.mxu0 0.0
    %2977 = vmatprep.subr.mxu0 0.0
    %2978 = vmatpush1.msra.mxu0 0.0
    %2979 = vmatprep.subr.mxu0 0.0
    %2980 = vmatpush1.msra.mxu0 0.0
    %2981 = vmatprep.subr.mxu0 0.0
    %2982 = vmatpush1.msra.mxu0 0.0
    %2983 = vmatprep.subr.mxu0 0.0
    %2984 = vmatpush1.msra.mxu0 0.0
    %2985 = vmatprep.subr.mxu0 0.0
    %2986 = vmatpush1.msra.mxu0 0.0
    %2987 = vmatprep.subr.mxu0 0.0
    %2988 = vmatpush1.msra.mxu0 0.0
    %2989 = vmatprep.subr.mxu0 0.0
    %2990 = vmatpush1.msra.mxu0 0.0
    %2991 = vmatprep.mubr.f32.mxu0 0.0
    %2992 = vmatmul.mubr.f32.gmra.mrb[0].mxu0 %v2922
    %v2993 = vpop.f32.mrb[0].mxu0
    %v2994 = vadd.f32 %v2920, %v2993
    %v2995 = vpop.f32.mrb[0].mxu0
    %2996 = vmatprep.mubr.f32.mxu0 0.0
    %2997 = vmatmul.mubr.f32.gmra.mrb[0].mxu0 %v2925
    %v2998 = vpop.f32.mrb[0].mxu0
    %v2999 = vadd.f32 %v2920, %v2998
    %v3000 = vpop.f32.mrb[0].mxu0
    %3001 = vdwg.mxu0
    %v3002 = vmax.f32 %v2994, 0.0
    %v3003 = vmax.f32 %v2999, 0.0
    %s3004 = scalar_lea.vmem [#allocation5], 576
    %v3005 = vld [vmem:[%s3004] sm:$0xff]
    %v3006 = vld [vmem:[%s3004 + $0x8] sm:$0xff]
    %v3007 = vld [vmem:[%s3004 + $0x10] sm:$0xff]
    %v3008 = vld [vmem:[%s3004 + $0x18] sm:$0xff]
    %v3009 = vld [vmem:[#allocation7 + $0x10] sm:$0x1]
    %v3010 = vlaneseq
    %v3011 = vshrl.u32 %v3010, 7
    %v3012 = vsub.s32 0, %v3011
    %v3013 = vrot.slane %v3009, %v3012
    %v3015 = vsel %vm75, %v3002, 0
    %v3018 = vsel %vm75, %v3003, 0
    %3020 = vmatprep.subr.mxu0 0.0
    %3021 = vmatpush1.msra.mxu0 %v3005
    %3022 = vmatprep.subr.mxu0 0.0
    %3023 = vmatpush1.msra.mxu0 %v3006
    %3024 = vmatprep.subr.mxu0 0.0
    %3025 = vmatpush1.msra.mxu0 %v3007
    %3026 = vmatprep.subr.mxu0 0.0
    %3027 = vmatpush1.msra.mxu0 %v3008
    %3028 = vmatprep.subr.mxu0 0.0
    %3029 = vmatpush1.msra.mxu0 0.0
    %3030 = vmatprep.subr.mxu0 0.0
    %3031 = vmatpush1.msra.mxu0 0.0
    %3032 = vmatprep.subr.mxu0 0.0
    %3033 = vmatpush1.msra.mxu0 0.0
    %3034 = vmatprep.subr.mxu0 0.0
    %3035 = vmatpush1.msra.mxu0 0.0
    %3036 = vmatprep.subr.mxu0 0.0
    %3037 = vmatpush1.msra.mxu0 0.0
    %3038 = vmatprep.subr.mxu0 0.0
    %3039 = vmatpush1.msra.mxu0 0.0
    %3040 = vmatprep.subr.mxu0 0.0
    %3041 = vmatpush1.msra.mxu0 0.0
    %3042 = vmatprep.subr.mxu0 0.0
    %3043 = vmatpush1.msra.mxu0 0.0
    %3044 = vmatprep.subr.mxu0 0.0
    %3045 = vmatpush1.msra.mxu0 0.0
    %3046 = vmatprep.subr.mxu0 0.0
    %3047 = vmatpush1.msra.mxu0 0.0
    %3048 = vmatprep.subr.mxu0 0.0
    %3049 = vmatpush1.msra.mxu0 0.0
    %3050 = vmatprep.subr.mxu0 0.0
    %3051 = vmatpush1.msra.mxu0 0.0
    %3052 = vmatprep.subr.mxu0 0.0
    %3053 = vmatpush1.msra.mxu0 0.0
    %3054 = vmatprep.subr.mxu0 0.0
    %3055 = vmatpush1.msra.mxu0 0.0
    %3056 = vmatprep.subr.mxu0 0.0
    %3057 = vmatpush1.msra.mxu0 0.0
    %3058 = vmatprep.subr.mxu0 0.0
    %3059 = vmatpush1.msra.mxu0 0.0
    %3060 = vmatprep.subr.mxu0 0.0
    %3061 = vmatpush1.msra.mxu0 0.0
    %3062 = vmatprep.subr.mxu0 0.0
    %3063 = vmatpush1.msra.mxu0 0.0
    %3064 = vmatprep.subr.mxu0 0.0
    %3065 = vmatpush1.msra.mxu0 0.0
    %3066 = vmatprep.subr.mxu0 0.0
    %3067 = vmatpush1.msra.mxu0 0.0
    %3068 = vmatprep.subr.mxu0 0.0
    %3069 = vmatpush1.msra.mxu0 0.0
    %3070 = vmatprep.subr.mxu0 0.0
    %3071 = vmatpush1.msra.mxu0 0.0
    %3072 = vmatprep.subr.mxu0 0.0
    %3073 = vmatpush1.msra.mxu0 0.0
    %3074 = vmatprep.subr.mxu0 0.0
    %3075 = vmatpush1.msra.mxu0 0.0
    %3076 = vmatprep.subr.mxu0 0.0
    %3077 = vmatpush1.msra.mxu0 0.0
    %3078 = vmatprep.subr.mxu0 0.0
    %3079 = vmatpush1.msra.mxu0 0.0
    %3080 = vmatprep.subr.mxu0 0.0
    %3081 = vmatpush1.msra.mxu0 0.0
    %3082 = vmatprep.subr.mxu0 0.0
    %3083 = vmatpush1.msra.mxu0 0.0
    %3084 = vmatprep.mubr.f32.mxu0 0.0
    %3085 = vmatmul.mubr.f32.gmra.mrb[0].mxu0 %v3015
    %v3086 = vpop.f32.mrb[0].mxu0
    %v3087 = vadd.f32 %v3013, %v3086
    %v3088 = vpop.f32.mrb[0].mxu0
    %3089 = vmatprep.mubr.f32.mxu0 0.0
    %3090 = vmatmul.mubr.f32.gmra.mrb[0].mxu0 %v3018
    %v3091 = vpop.f32.mrb[0].mxu0
    %v3092 = vadd.f32 %v3013, %v3091
    %v3093 = vpop.f32.mrb[0].mxu0
    %3094 = vdwg.mxu0
    %v3095 = vadd.f32 %v3087, %v2816
    %v3096 = vadd.f32 %v3092, %v2817
    %v3097 = vsel %vm75, %v3095, 0.0
    %3098 = vadd.xlane.f32.xlu0 %v3097
    %v3099 = vpop.xlane.xlu0 %3098
    %v3100 = vsel %vm75, %v3096, 0.0
    %3101 = vadd.xlane.f32.xlu0 %v3100
    %v3102 = vpop.xlane.xlu0 %3101
    %v3103 = vmul.f32 %v3099, 0.03125
    %v3104 = vmul.f32 %v3102, 0.03125
    %v3105 = vmul.f32 %v3095, %v3095
    %v3106 = vmul.f32 %v3096, %v3096
    %v3107 = vsel %vm75, %v3105, 0.0
    %3108 = vadd.xlane.f32.xlu0 %v3107
    %v3109 = vpop.xlane.xlu0 %3108
    %v3110 = vsel %vm75, %v3106, 0.0
    %3111 = vadd.xlane.f32.xlu0 %v3110
    %v3112 = vpop.xlane.xlu0 %3111
    %v3113 = vmul.f32 %v3109, 0.03125
    %v3114 = vmul.f32 %v3112, 0.03125
    %v3115 = vmul.f32 %v3103, %v3103
    %v3116 = vmul.f32 %v3104, %v3104
    %v3117 = vsub.f32 %v3113, %v3115
    %v3118 = vsub.f32 %v3114, %v3116
    %v3119 = vsub.f32 %v3095, %v3103
    %v3120 = vsub.f32 %v3096, %v3104
    %v3121 = vadd.f32 %v3117, 1e-05
    %v3122 = vadd.f32 %v3118, 1e-05
    %v3123 = vrsqrt.pop %v3121
    %v3124 = vrsqrt.pop %v3122
    %v3125 = vmul.f32 %v3119, %v3123
    %v3126 = vmul.f32 %v3120, %v3124
    %3127 = vst.msk [vmem:[#allocation8] sm:$0xff] %vm75, %v3125
    %3128 = vst.msk [vmem:[#allocation8 + $0x8] sm:$0xff] %vm75, %v3126
    // Predicated region
    $region26: #{decoder_layer.1} parent=1 // pred_check
      _
    $region27: #{decoder_layer.1} parent=1 // pred_check_branch
      %3130 = sbr.rel (0) target = $region29
    $region28: #{decoder_layer.1} parent=1 // pred_region
      %s3132 = ssub.s32 256, 256
      %3133 = vsyncadd [#allocation4], %s3132
      %s3134 = sshll.u32 [#allocation8], 4
      %s3135 = int_to_ptr.vmem [resolvable:$true] %s3134
      %3140 = dma.vmem_to_hbm [thread:$0]  %s3135, 256, %s3, [#allocation4], 128, 128, 8
    $region29: #{decoder_layer.1} parent=1 // pred_fallthru
      _
    // Predicated region
    $region30: #{decoder_layer.1} parent=1 // pred_check
      _
    $region31: #{decoder_layer.1} parent=1 // pred_check_branch
      %3142 = sbr.rel (0) target = $region33
    $region32: #{decoder_layer.1} parent=1 // pred_region
      _
    $region33: #{decoder_layer.1} parent=1 // pred_fallthru
      _
    // Predicated region
    $region34: #{decoder_layer.1} parent=1 // pred_check
      _
    $region35: #{decoder_layer.1} parent=1 // pred_check_branch
      %3144 = sbr.rel (0) target = $region37
    $region36: #{decoder_layer.1} parent=1 // pred_region
      _
    $region37: #{decoder_layer.1} parent=1 // pred_fallthru
      _
    // Predicated region
    $region38: #{decoder_layer.1} parent=1 // pred_check
      _
    $region39: #{decoder_layer.1} parent=1 // pred_check_branch
      %3146 = sbr.rel (0) target = $region41
    $region40: #{decoder_layer.1} parent=1 // pred_region
      %3147 = dma.done [#allocation4], 256
    $region41: #{decoder_layer.1} parent=1 // pred_fallthru
      _
    // Predicated region
    $region42: #{decoder_layer.1} parent=1 // pred_check
      _
    $region43: #{decoder_layer.1} parent=1 // pred_check_branch
      %3149 = sbr.rel (0) target = $region45
    $region44: #{decoder_layer.1} parent=1 // pred_region
      _
    $region45: #{decoder_layer.1} parent=1 // pred_fallthru
      _
    // Predicated region
    $region46: #{decoder_layer.1} parent=1 // pred_check
      _
    $region47: #{decoder_layer.1} parent=1 // pred_check_branch
      %3151 = sbr.rel (0) target = $region49
    $region48: #{decoder_layer.1} parent=1 // pred_region
      _
    $region49: #{decoder_layer.1} parent=1 // pred_fallthru
      _
    %3152 = vsyncpa [#allocation3], 1
    %3153 = vsyncpa [#allocation6], 1
    %3154 = vsyncpa [#allocation4], 1

</llo_original>
